<compile_context>
chip_gen: v7x
topology: tpu7x:2x2x1
jax: 0.10.0
libtpu: 0.0.40
codegen_flags: <defaults>
</compile_context>

<pallas_src>
import functools

import numpy as np
import jax
import jax.numpy as jnp
from jax.experimental import pallas as pl
from jax.experimental.pallas import tpu as pltpu

_LANE = 128
_VMEM_LIMIT = 48 * 1024 * 1024
_BN_EPS = 1e-5


# ----------------------------------------------------------------------------
# helpers
# ----------------------------------------------------------------------------
def _round_up(x, m):
    return (x + m - 1) // m * m


def _largest_divisor(n, limit, mult=1):
    d = min(n, limit)
    while d >= 1:
        if n % d == 0 and d % mult == 0:
            return d
        d -= 1
    return n  # full extent — always a legal block (equals the array dim)


def _pick_row_tile(H, W, cin_p, cout_p, budget_bytes=8 * 1024 * 1024):
    """Largest th dividing H with (th*W) % 8 == 0 and tile buffers in budget."""
    for th in range(H, 0, -1):
        if H % th:
            continue
        rows = th * W
        if rows % 8:
            continue
        est = rows * (9 * cin_p * 2 * 2      # bf16 im2col patch (+ tap slices)
                      + cout_p * 4           # f32 matmul accumulator
                      + cout_p * 4 * 2)      # double-buffered f32 output block
        if est <= budget_bytes:
            return th
    for th in range(1, H + 1):               # over budget: smallest legal tile
        if H % th == 0 and (th * W) % 8 == 0:
            return th
    return H


# ----------------------------------------------------------------------------
# Pallas kernel 1: conv3x3 (input spatially pre-padded) + bias, one fused
# K=9*Cin MXU matmul per row tile, plus per-tile BN partial statistics.
# ----------------------------------------------------------------------------
def _conv3x3_stats_kernel(x_ref, w_ref, b_ref, out_ref, stats_ref, *, th, out_w):
    # x_ref:     (H+2, W+2, Cp)    bf16, padded image of the current sample
    # w_ref:     (9*Cp, Coutp)     bf16, tap-major flattened conv weights
    # b_ref:     (1, Coutp)        f32, conv bias
    # out_ref:   (th*W, Coutp)     f32, raw (pre-BN) conv output rows
    # stats_ref: (1, 1, 2, Coutp)  f32, per-tile [sum, sum_of_squares]
    t = pl.program_id(1)
    cp = x_ref.shape[-1]
    cout = out_ref.shape[-1]

    start = pl.multiple_of(t * th, th)
    x_img = x_ref[pl.ds(start, th + 2), :, :]            # (th+2, W+2, Cp)

    taps = []
    for dy in range(3):
        for dx in range(3):
            taps.append(x_img[dy:dy + th, dx:dx + out_w, :])
    patch = jnp.concatenate(taps, axis=-1).reshape(th * out_w, 9 * cp)

    acc = jnp.dot(patch, w_ref[...], preferred_element_type=jnp.float32)
    acc = acc + b_ref[...]                               # conv bias (f32)

    out_ref[...] = acc                                   # unmasked lane-dense store

    s = jnp.sum(acc, axis=0, keepdims=True)              # (1, Coutp)
    ss = jnp.sum(acc * acc, axis=0, keepdims=True)       # (1, Coutp)
    stats_ref[...] = jnp.concatenate([s, ss], axis=0).reshape(1, 1, 2, cout)


def _conv3x3_bias(xp_flat_bf16, w_mat, b, th, N, H, W):
    cp = xp_flat_bf16.shape[-1]
    cout_p = w_mat.shape[-1]
    n_ht = H // th
    kernel = functools.partial(_conv3x3_stats_kernel, th=th, out_w=W)
    conv_raw, stats = pl.pallas_call(
        kernel,
        grid=(N, n_ht),
        in_specs=[
            pl.BlockSpec((H + 2, W + 2, cp), lambda n, t: (n, 0, 0)),
            pl.BlockSpec((9 * cp, cout_p), lambda n, t: (0, 0)),
            pl.BlockSpec((1, cout_p), lambda n, t: (0, 0)),
        ],
        out_specs=[
            pl.BlockSpec((th * W, cout_p), lambda n, t: (n * n_ht + t, 0)),
            pl.BlockSpec((1, 1, 2, cout_p), lambda n, t: (n, t, 0, 0)),
        ],
        out_shape=[
            jax.ShapeDtypeStruct((N * H * W, cout_p), jnp.float32),
            jax.ShapeDtypeStruct((N, n_ht, 2, cout_p), jnp.float32),
        ],
        compiler_params=pltpu.CompilerParams(
            dimension_semantics=("parallel", "parallel"),
            vmem_limit_bytes=_VMEM_LIMIT),
    )(xp_flat_bf16, w_mat, b)
    return conv_raw, stats


# ----------------------------------------------------------------------------
# Pallas kernel 2: fused BatchNorm (precomputed scale/shift) + ReLU, tiled.
# ----------------------------------------------------------------------------
def _bn_relu_kernel(x_ref, scale_ref, shift_ref, o_ref):
    y = x_ref[...] * scale_ref[...] + shift_ref[...]
    o_ref[...] = jnp.maximum(y, 0.0).astype(o_ref.dtype)


def _bn_relu(x2d, scale, shift, out_dtype):
    R, C = x2d.shape
    limit = max(8, (4 * 1024 * 1024) // (C * 8))
    tr = _largest_divisor(R, limit=limit, mult=8)
    return pl.pallas_call(
        _bn_relu_kernel,
        grid=(R // tr,),
        in_specs=[
            pl.BlockSpec((tr, C), lambda i: (i, 0)),
            pl.BlockSpec((1, C), lambda i: (0, 0)),
            pl.BlockSpec((1, C), lambda i: (0, 0)),
        ],
        out_specs=pl.BlockSpec((tr, C), lambda i: (i, 0)),
        out_shape=jax.ShapeDtypeStruct((R, C), out_dtype),
        compiler_params=pltpu.CompilerParams(
            dimension_semantics=("parallel",),
            vmem_limit_bytes=_VMEM_LIMIT),
    )(x2d, scale, shift)


# ----------------------------------------------------------------------------
# One (conv => BN => ReLU) stage
# ----------------------------------------------------------------------------
def conv_bn_relu_stage(x_nhwc, w_mat, b, gamma, beta, out_dtype):
    N, H, W, cp = x_nhwc.shape
    cout_p = w_mat.shape[-1]

    # TODO(synk): the 1-px spatial pad + the stage boundary are plain-JAX HBM
    # round-trips; fusing them into the conv kernel needs halo-aware blocks.
    xp = jnp.pad(x_nhwc.astype(jnp.bfloat16), ((0, 0), (1, 1), (1, 1), (0, 0)))
    xp_flat = xp.reshape(N * (H + 2), W + 2, cp)

    th = _pick_row_tile(H, W, cp, cout_p)
    conv_raw, stats = _conv3x3_bias(xp_flat, w_mat, b, th, N, H, W)

    # Finalize BatchNorm (training mode): batch mean / biased variance, in f32.
    count = float(N * H * W)
    s = jnp.sum(stats, axis=(0, 1))                       # (2, Coutp)
    mean = s[0] / count
    var = jnp.maximum(s[1] / count - mean * mean, 0.0)    # clamp E[x^2]-E[x]^2
    inv = jax.lax.rsqrt(var + _BN_EPS)
    scale = (gamma[0] * inv).reshape(1, cout_p)
    shift = (beta[0] - mean * gamma[0] * inv).reshape(1, cout_p)

    y = _bn_relu(conv_raw, scale, shift, out_dtype)       # (N*H*W, Coutp)
    return y.reshape(N, H, W, cout_p)


# ----------------------------------------------------------------------------
# Parameters (PyTorch init: xavier_uniform_ weights, bias = 0.05, BN gamma=1,
# beta=0), packed into padded lane-dense layouts.
# ----------------------------------------------------------------------------
def xavier_uniform_conv(key, out_ch, in_ch, k=3):
    fan_in, fan_out = in_ch * k * k, out_ch * k * k
    a = float(np.sqrt(6.0 / (fan_in + fan_out)))
    return jax.random.uniform(key, (out_ch, in_ch, k, k), jnp.float32, -a, a)


def _conv_w_to_mat(w, cin_p, cout_p):
    # (Cout, Cin, 3, 3) -> (9*Cin_p, Cout_p) bf16, tap index = dy*3+dx
    o, i = w.shape[0], w.shape[1]
    taps = jnp.transpose(w, (2, 3, 1, 0)).reshape(9, i, o)
    taps = jnp.pad(taps, ((0, 0), (0, cin_p - i), (0, cout_p - o)))
    return taps.reshape(9 * cin_p, cout_p).astype(jnp.bfloat16)


def _pad_vec(v, cpad):
    return jnp.pad(v, (0, cpad - v.shape[0])).reshape(1, cpad).astype(jnp.float32)


def make_double_conv_params(key, in_ch, out_ch):
    cin_p = _round_up(in_ch, _LANE)
    cout_p = _round_up(out_ch, _LANE)
    k1, k2 = jax.random.split(key)
    w1 = xavier_uniform_conv(k1, out_ch, in_ch)
    w2 = xavier_uniform_conv(k2, out_ch, out_ch)
    return {
        "in_ch": in_ch, "out_ch": out_ch, "cin_p": cin_p, "cout_p": cout_p,
        "w1": _conv_w_to_mat(w1, cin_p, cout_p),
        "b1": _pad_vec(jnp.full((out_ch,), 0.05, jnp.float32), cout_p),
        "g1": _pad_vec(jnp.ones((out_ch,), jnp.float32), cout_p),
        "be1": _pad_vec(jnp.zeros((out_ch,), jnp.float32), cout_p),
        "w2": _conv_w_to_mat(w2, cout_p, cout_p),
        "b2": _pad_vec(jnp.full((out_ch,), 0.05, jnp.float32), cout_p),
        "g2": _pad_vec(jnp.ones((out_ch,), jnp.float32), cout_p),
        "be2": _pad_vec(jnp.zeros((out_ch,), jnp.float32), cout_p),
    }


# ----------------------------------------------------------------------------
# double_conv forward (external API: NCHW in, NCHW out, like PyTorch)
# ----------------------------------------------------------------------------
def double_conv_forward(x_nchw, params):
    N, C, H, W = x_nchw.shape
    cin_p, out_ch = params["cin_p"], params["out_ch"]

    xn = jnp.transpose(x_nchw, (0, 2, 3, 1))                       # NHWC
    xn = jnp.pad(xn, ((0, 0), (0, 0), (0, 0), (0, cin_p - C)))     # lane-pad C

    y = conv_bn_relu_stage(xn, params["w1"], params["b1"],
                           params["g1"], params["be1"], out_dtype=jnp.bfloat16)
    y = conv_bn_relu_stage(y, params["w2"], params["b2"],
                           params["g2"], params["be2"], out_dtype=jnp.float32)

    y = y[..., :out_ch]                                            # drop pad
    return jnp.transpose(y, (0, 3, 1, 2))                          # NCHW


if __name__ == "__main__":
    key = jax.random.PRNGKey(0)
    kx, kp = jax.random.split(key)

    N, in_ch, H, W = 2, 4, 16, 16
    out_ch = 8

    x = jax.random.normal(kx, (N, in_ch, H, W), jnp.float32)
    params = make_double_conv_params(kp, in_ch, out_ch)

    fwd = jax.jit(lambda inp: double_conv_forward(inp, params))
    out = fwd(x)
    jax.block_until_ready(out)

    assert out.shape == (N, out_ch, H, W)
    assert bool(jnp.all(jnp.isfinite(out)))
    print("KERNEL_OK")
</pallas_src>

<mosaic_0001>
module attributes {stable_mosaic.version = 11 : i64} {
  func.func @_conv3x3_stats_kernel(%arg0: i32, %arg1: i32, %arg2: memref<18x18x128xbf16, #tpu.memory_space<vmem>>, %arg3: memref<1152x128xbf16, #tpu.memory_space<vmem>>, %arg4: memref<1x128xf32, #tpu.memory_space<vmem>>, %arg5: memref<256x128xf32, #tpu.memory_space<vmem>>, %arg6: memref<1x1x2x128xf32, #tpu.memory_space<vmem>>) attributes {dimension_semantics = [#tpu.dimension_semantics<parallel>, #tpu.dimension_semantics<parallel>], iteration_bounds = array<i64: 2, 1>, scalar_prefetch = 0 : i64, scratch_operands = 0 : i64, tpu.core_type = #tpu.core_type<tc>, window_params = [{transform_indices = @transform_0, window_bounds = array<i64: 18, 18, 128>}, {pipeline_mode = #tpu.pipeline_mode<synchronous>, transform_indices = @transform_1, window_bounds = array<i64: 1152, 128>}, {pipeline_mode = #tpu.pipeline_mode<synchronous>, transform_indices = @transform_2, window_bounds = array<i64: 1, 128>}, {transform_indices = @transform_3, window_bounds = array<i64: 256, 128>}, {transform_indices = @transform_4, window_bounds = array<i64: 1, 1, 2, 128>}]} {
    %c16_i32 = arith.constant 16 : i32
    %0 = arith.muli %arg1, %c16_i32 : i32
    %1 = tpu.assume_multiple %0, 16 : i32
    %2 = arith.index_cast %1 : i32 to index
    %c0 = arith.constant 0 : index
    %c0_0 = arith.constant 0 : index
    %3 = vector.load %arg2[%2, %c0, %c0_0] : memref<18x18x128xbf16, #tpu.memory_space<vmem>>, vector<18x18x128xbf16>
    %4 = vector.extract_strided_slice %3 {offsets = [0, 0, 0], sizes = [16, 16, 128], strides = [1, 1, 1]} : vector<18x18x128xbf16> to vector<16x16x128xbf16>
    %5 = vector.extract_strided_slice %3 {offsets = [0, 1, 0], sizes = [16, 16, 128], strides = [1, 1, 1]} : vector<18x18x128xbf16> to vector<16x16x128xbf16>
    %6 = vector.extract_strided_slice %3 {offsets = [0, 2, 0], sizes = [16, 16, 128], strides = [1, 1, 1]} : vector<18x18x128xbf16> to vector<16x16x128xbf16>
    %7 = vector.extract_strided_slice %3 {offsets = [1, 0, 0], sizes = [16, 16, 128], strides = [1, 1, 1]} : vector<18x18x128xbf16> to vector<16x16x128xbf16>
    %8 = vector.extract_strided_slice %3 {offsets = [1, 1, 0], sizes = [16, 16, 128], strides = [1, 1, 1]} : vector<18x18x128xbf16> to vector<16x16x128xbf16>
    %9 = vector.extract_strided_slice %3 {offsets = [1, 2, 0], sizes = [16, 16, 128], strides = [1, 1, 1]} : vector<18x18x128xbf16> to vector<16x16x128xbf16>
    %10 = vector.extract_strided_slice %3 {offsets = [2, 0, 0], sizes = [16, 16, 128], strides = [1, 1, 1]} : vector<18x18x128xbf16> to vector<16x16x128xbf16>
    %11 = vector.extract_strided_slice %3 {offsets = [2, 1, 0], sizes = [16, 16, 128], strides = [1, 1, 1]} : vector<18x18x128xbf16> to vector<16x16x128xbf16>
    %12 = vector.extract_strided_slice %3 {offsets = [2, 2, 0], sizes = [16, 16, 128], strides = [1, 1, 1]} : vector<18x18x128xbf16> to vector<16x16x128xbf16>
    %13 = tpu.concatenate %4, %5, %6, %7, %8, %9, %10, %11, %12 in 2 : vector<16x16x128xbf16>, vector<16x16x128xbf16>, vector<16x16x128xbf16>, vector<16x16x128xbf16>, vector<16x16x128xbf16>, vector<16x16x128xbf16>, vector<16x16x128xbf16>, vector<16x16x128xbf16>, vector<16x16x128xbf16> -> vector<16x16x1152xbf16>
    %14 = vector.shape_cast %13 : vector<16x16x1152xbf16> to vector<256x1152xbf16>
    %c0_1 = arith.constant 0 : index
    %c0_2 = arith.constant 0 : index
    %15 = vector.load %arg3[%c0_1, %c0_2] : memref<1152x128xbf16, #tpu.memory_space<vmem>>, vector<1152x128xbf16>
    %cst = arith.constant dense<0.000000e+00> : vector<256x128xf32>
    %16 = tpu.matmul %14, %15, %cst {dimension_numbers = #tpu.dot_dimension_numbers<[1], [0], [0], [1], [0, 0, 1, 1], [], []>} : vector<256x1152xbf16>, vector<1152x128xbf16>, vector<256x128xf32> -> vector<256x128xf32>
    %c0_3 = arith.constant 0 : index
    %c0_4 = arith.constant 0 : index
    %17 = vector.load %arg4[%c0_3, %c0_4] : memref<1x128xf32, #tpu.memory_space<vmem>>, vector<1x128xf32>
    %18 = vector.broadcast %17 : vector<1x128xf32> to vector<256x128xf32>
    %19 = arith.addf %16, %18 : vector<256x128xf32>
    %c0_5 = arith.constant 0 : index
    %c0_6 = arith.constant 0 : index
    %20 = vector.load %arg5[%c0_5, %c0_6] : memref<256x128xf32, #tpu.memory_space<vmem>>, vector<256x128xf32>
    tpu.vector_store %arg5[%c0_5, %c0_6], %19 {strides = array<i32>} : memref<256x128xf32, #tpu.memory_space<vmem>>, vector<256x128xf32>,
    %cst_7 = arith.constant dense<0.000000e+00> : vector<128xf32>
    %21 = vector.multi_reduction <add>, %19, %cst_7 [0] : vector<256x128xf32> to vector<128xf32>
    %22 = vector.shape_cast %21 : vector<128xf32> to vector<1x128xf32>
    %23 = arith.mulf %19, %19 : vector<256x128xf32>
    %cst_8 = arith.constant dense<0.000000e+00> : vector<128xf32>
    %24 = vector.multi_reduction <add>, %23, %cst_8 [0] : vector<256x128xf32> to vector<128xf32>
    %25 = vector.shape_cast %24 : vector<128xf32> to vector<1x128xf32>
    %26 = tpu.concatenate %22, %25 in 0 : vector<1x128xf32>, vector<1x128xf32> -> vector<2x128xf32>
    %27 = vector.shape_cast %26 : vector<2x128xf32> to vector<1x1x2x128xf32>
    %c0_9 = arith.constant 0 : index
    %c0_10 = arith.constant 0 : index
    %c0_11 = arith.constant 0 : index
    %c0_12 = arith.constant 0 : index
    %28 = vector.load %arg6[%c0_9, %c0_10, %c0_11, %c0_12] : memref<1x1x2x128xf32, #tpu.memory_space<vmem>>, vector<1x1x2x128xf32>
    tpu.vector_store %arg6[%c0_9, %c0_10, %c0_11, %c0_12], %27 {strides = array<i32>} : memref<1x1x2x128xf32, #tpu.memory_space<vmem>>, vector<1x1x2x128xf32>,
    return
  }
  func.func @transform_0(%arg0: i32, %arg1: i32) -> (i32, i32, i32) {
    %c0_i32 = arith.constant 0 : i32
    %c0_i32_0 = arith.constant 0 : i32
    %c0_i32_1 = arith.constant 0 : i32
    return %arg0, %c0_i32, %c0_i32_0 : i32, i32, i32
  }
  func.func @transform_1(%arg0: i32, %arg1: i32) -> (i32, i32) {
    %c0_i32 = arith.constant 0 : i32
    %c0_i32_0 = arith.constant 0 : i32
    %c0_i32_1 = arith.constant 0 : i32
    return %c0_i32, %c0_i32_0 : i32, i32
  }
  func.func @transform_2(%arg0: i32, %arg1: i32) -> (i32, i32) {
    %c0_i32 = arith.constant 0 : i32
    %c0_i32_0 = arith.constant 0 : i32
    %c0_i32_1 = arith.constant 0 : i32
    return %c0_i32, %c0_i32_0 : i32, i32
  }
  func.func @transform_3(%arg0: i32, %arg1: i32) -> (i32, i32) {
    %c1_i32 = arith.constant 1 : i32
    %0 = arith.muli %arg0, %c1_i32 : i32
    %1 = arith.addi %0, %arg1 : i32
    %c0_i32 = arith.constant 0 : i32
    %c0_i32_0 = arith.constant 0 : i32
    return %1, %c0_i32 : i32, i32
  }
  func.func @transform_4(%arg0: i32, %arg1: i32) -> (i32, i32, i32, i32) {
    %c0_i32 = arith.constant 0 : i32
    %c0_i32_0 = arith.constant 0 : i32
    %c0_i32_1 = arith.constant 0 : i32
    return %arg0, %arg1, %c0_i32, %c0_i32_0 : i32, i32, i32, i32
  }
}

module attributes {stable_mosaic.version = 11 : i64} {
  func.func @_bn_relu_kernel(%arg0: i32, %arg1: memref<512x128xf32, #tpu.memory_space<vmem>>, %arg2: memref<1x128xf32, #tpu.memory_space<vmem>>, %arg3: memref<1x128xf32, #tpu.memory_space<vmem>>, %arg4: memref<512x128xbf16, #tpu.memory_space<vmem>>) attributes {dimension_semantics = [#tpu.dimension_semantics<parallel>], iteration_bounds = array<i64: 1>, scalar_prefetch = 0 : i64, scratch_operands = 0 : i64, tpu.core_type = #tpu.core_type<tc>, window_params = [{transform_indices = @transform_0, window_bounds = array<i64: 512, 128>}, {pipeline_mode = #tpu.pipeline_mode<synchronous>, transform_indices = @transform_1, window_bounds = array<i64: 1, 128>}, {pipeline_mode = #tpu.pipeline_mode<synchronous>, transform_indices = @transform_2, window_bounds = array<i64: 1, 128>}, {transform_indices = @transform_3, window_bounds = array<i64: 512, 128>}]} {
    %c0 = arith.constant 0 : index
    %c0_0 = arith.constant 0 : index
    %0 = vector.load %arg1[%c0, %c0_0] : memref<512x128xf32, #tpu.memory_space<vmem>>, vector<512x128xf32>
    %c0_1 = arith.constant 0 : index
    %c0_2 = arith.constant 0 : index
    %1 = vector.load %arg2[%c0_1, %c0_2] : memref<1x128xf32, #tpu.memory_space<vmem>>, vector<1x128xf32>
    %2 = vector.broadcast %1 : vector<1x128xf32> to vector<512x128xf32>
    %3 = arith.mulf %0, %2 : vector<512x128xf32>
    %c0_3 = arith.constant 0 : index
    %c0_4 = arith.constant 0 : index
    %4 = vector.load %arg3[%c0_3, %c0_4] : memref<1x128xf32, #tpu.memory_space<vmem>>, vector<1x128xf32>
    %5 = vector.broadcast %4 : vector<1x128xf32> to vector<512x128xf32>
    %6 = arith.addf %3, %5 : vector<512x128xf32>
    %cst = arith.constant 0.000000e+00 : f32
    %7 = vector.broadcast %cst : f32 to vector<512x128xf32>
    %8 = arith.maximumf %6, %7 : vector<512x128xf32>
    %9 = arith.truncf %8 : vector<512x128xf32> to vector<512x128xbf16>
    %c0_5 = arith.constant 0 : index
    %c0_6 = arith.constant 0 : index
    %10 = vector.load %arg4[%c0_5, %c0_6] : memref<512x128xbf16, #tpu.memory_space<vmem>>, vector<512x128xbf16>
    tpu.vector_store %arg4[%c0_5, %c0_6], %9 {strides = array<i32>} : memref<512x128xbf16, #tpu.memory_space<vmem>>, vector<512x128xbf16>,
    return
  }
  func.func @transform_0(%arg0: i32) -> (i32, i32) {
    %c0_i32 = arith.constant 0 : i32
    %c0_i32_0 = arith.constant 0 : i32
    return %arg0, %c0_i32 : i32, i32
  }
  func.func @transform_1(%arg0: i32) -> (i32, i32) {
    %c0_i32 = arith.constant 0 : i32
    %c0_i32_0 = arith.constant 0 : i32
    %c0_i32_1 = arith.constant 0 : i32
    return %c0_i32, %c0_i32_0 : i32, i32
  }
  func.func @transform_2(%arg0: i32) -> (i32, i32) {
    %c0_i32 = arith.constant 0 : i32
    %c0_i32_0 = arith.constant 0 : i32
    %c0_i32_1 = arith.constant 0 : i32
    return %c0_i32, %c0_i32_0 : i32, i32
  }
  func.func @transform_3(%arg0: i32) -> (i32, i32) {
    %c0_i32 = arith.constant 0 : i32
    %c0_i32_0 = arith.constant 0 : i32
    return %arg0, %c0_i32 : i32, i32
  }
}

module attributes {stable_mosaic.version = 11 : i64} {
  func.func @_bn_relu_kernel(%arg0: i32, %arg1: memref<512x128xf32, #tpu.memory_space<vmem>>, %arg2: memref<1x128xf32, #tpu.memory_space<vmem>>, %arg3: memref<1x128xf32, #tpu.memory_space<vmem>>, %arg4: memref<512x128xf32, #tpu.memory_space<vmem>>) attributes {dimension_semantics = [#tpu.dimension_semantics<parallel>], iteration_bounds = array<i64: 1>, scalar_prefetch = 0 : i64, scratch_operands = 0 : i64, tpu.core_type = #tpu.core_type<tc>, window_params = [{transform_indices = @transform_0, window_bounds = array<i64: 512, 128>}, {pipeline_mode = #tpu.pipeline_mode<synchronous>, transform_indices = @transform_1, window_bounds = array<i64: 1, 128>}, {pipeline_mode = #tpu.pipeline_mode<synchronous>, transform_indices = @transform_2, window_bounds = array<i64: 1, 128>}, {transform_indices = @transform_3, window_bounds = array<i64: 512, 128>}]} {
    %c0 = arith.constant 0 : index
    %c0_0 = arith.constant 0 : index
    %0 = vector.load %arg1[%c0, %c0_0] : memref<512x128xf32, #tpu.memory_space<vmem>>, vector<512x128xf32>
    %c0_1 = arith.constant 0 : index
    %c0_2 = arith.constant 0 : index
    %1 = vector.load %arg2[%c0_1, %c0_2] : memref<1x128xf32, #tpu.memory_space<vmem>>, vector<1x128xf32>
    %2 = vector.broadcast %1 : vector<1x128xf32> to vector<512x128xf32>
    %3 = arith.mulf %0, %2 : vector<512x128xf32>
    %c0_3 = arith.constant 0 : index
    %c0_4 = arith.constant 0 : index
    %4 = vector.load %arg3[%c0_3, %c0_4] : memref<1x128xf32, #tpu.memory_space<vmem>>, vector<1x128xf32>
    %5 = vector.broadcast %4 : vector<1x128xf32> to vector<512x128xf32>
    %6 = arith.addf %3, %5 : vector<512x128xf32>
    %cst = arith.constant 0.000000e+00 : f32
    %7 = vector.broadcast %cst : f32 to vector<512x128xf32>
    %8 = arith.maximumf %6, %7 : vector<512x128xf32>
    %c0_5 = arith.constant 0 : index
    %c0_6 = arith.constant 0 : index
    %9 = vector.load %arg4[%c0_5, %c0_6] : memref<512x128xf32, #tpu.memory_space<vmem>>, vector<512x128xf32>
    tpu.vector_store %arg4[%c0_5, %c0_6], %8 {strides = array<i32>} : memref<512x128xf32, #tpu.memory_space<vmem>>, vector<512x128xf32>,
    return
  }
  func.func @transform_0(%arg0: i32) -> (i32, i32) {
    %c0_i32 = arith.constant 0 : i32
    %c0_i32_0 = arith.constant 0 : i32
    return %arg0, %c0_i32 : i32, i32
  }
  func.func @transform_1(%arg0: i32) -> (i32, i32) {
    %c0_i32 = arith.constant 0 : i32
    %c0_i32_0 = arith.constant 0 : i32
    %c0_i32_1 = arith.constant 0 : i32
    return %c0_i32, %c0_i32_0 : i32, i32
  }
  func.func @transform_2(%arg0: i32) -> (i32, i32) {
    %c0_i32 = arith.constant 0 : i32
    %c0_i32_0 = arith.constant 0 : i32
    %c0_i32_1 = arith.constant 0 : i32
    return %c0_i32, %c0_i32_0 : i32, i32
  }
  func.func @transform_3(%arg0: i32) -> (i32, i32) {
    %c0_i32 = arith.constant 0 : i32
    %c0_i32_0 = arith.constant 0 : i32
    return %arg0, %c0_i32 : i32, i32
  }
}

</mosaic_0001>

<llo_original>
// kernel: squeeze.0
$region0: #{squeeze.0}
  #allocation0 [shape = 's32[1]{0}', space=sflag, size = 0x4, scoped, tag = 'scoped memory for squeeze.0']
  %s0 = inlined_call_operand.vmem [shape: f32[1,128], index: 0, kind: input, shape index: {}]
  %s1 = inlined_call_operand.vmem [shape: f32[1,128], index: 1, kind: input, shape index: {}]
  %s2 = inlined_call_operand.vmem [shape: f32[1,128], index: 2, kind: output, shape index: {}]
  %v3 = vld [vmem:[%s0] sm:$0x1]
  %v4 = vld [vmem:[%s1] sm:$0x1]
  %5 = xla_tuple %v3, %v4
  %6 = xla_tuple %5
  %v7 = vmul.f32 %v3, %v4
  %8 = xla_tuple %v7
  %9 = vst [vmem:[%s2] sm:$0x1] %v7

// kernel: _lambda_.7
$region0: #{_lambda_.7}
  #allocation0 [shape = 'u32[]', space=smem, size = 0x4, offset = 0x4, fixed_abs, tag = 'smem constant byte address 0x4 - core index']
  #allocation1 [shape = 'u32[144,128]{1,0:T(1,128)}', space=vmem, size = 0x12000, scoped, tag = 'internal scratch']
  %s0 = inlined_call_operand.vmem [shape: f32[512,128], index: 0, kind: input, shape index: {}]
  %s1 = inlined_call_operand.vmem [shape: f32[1,128], index: 1, kind: input, shape index: {}]
  %s2 = inlined_call_operand.vmem [shape: f32[1,128], index: 2, kind: input, shape index: {}]
  %s3 = inlined_call_operand.vmem [shape: f32[512,128], index: 3, kind: output, shape index: {}]
  %s4 = sld [smem:[#allocation0]]
  $region22: #{_lambda_.7} parent=0
    _
  %s6 = ssub.s32 1, %s4
  %s7 = scalar_select 0, %s6, %s4
  // Predicated region
  $region2: #{_lambda_.7} parent=0 // pred_check
    _
  $region3: #{_lambda_.7} parent=0 // pred_check_branch
    %9 = sbr.rel (0) target = $region5
  $region4: #{_lambda_.7} parent=0 // pred_region
    _
  $region5: #{_lambda_.7} parent=0 // pred_fallthru
    _
  // Predicated region
  $region6: #{_lambda_.7} parent=0 // pred_check
    _
  $region7: #{_lambda_.7} parent=0 // pred_check_branch
    %11 = sbr.rel (0) target = $region9
  $region8: #{_lambda_.7} parent=0 // pred_region
    _
  $region9: #{_lambda_.7} parent=0 // pred_fallthru
    _
  // Predicated region
  $region10: #{_lambda_.7} parent=0 // pred_check
    _
  $region11: #{_lambda_.7} parent=0 // pred_check_branch
    %13 = sbr.rel (0) target = $region13
  $region12: #{_lambda_.7} parent=0 // pred_region
    _
  $region13: #{_lambda_.7} parent=0 // pred_fallthru
    _
  %v14 = vld [vmem:[%s0] sm:$0xff]
  %v15 = vld [vmem:[%s0 + $0x8] sm:$0xff]
  %v16 = vld [vmem:[%s0 + $0x10] sm:$0xff]
  %v17 = vld [vmem:[%s0 + $0x18] sm:$0xff]
  %v18 = vld [vmem:[%s0 + $0x20] sm:$0xff]
  %v19 = vld [vmem:[%s0 + $0x28] sm:$0xff]
  %v20 = vld [vmem:[%s0 + $0x30] sm:$0xff]
  %v21 = vld [vmem:[%s0 + $0x38] sm:$0xff]
  %v22 = vld [vmem:[%s0 + $0x40] sm:$0xff]
  %v23 = vld [vmem:[%s0 + $0x48] sm:$0xff]
  %v24 = vld [vmem:[%s0 + $0x50] sm:$0xff]
  %v25 = vld [vmem:[%s0 + $0x58] sm:$0xff]
  %v26 = vld [vmem:[%s0 + $0x60] sm:$0xff]
  %v27 = vld [vmem:[%s0 + $0x68] sm:$0xff]
  %v28 = vld [vmem:[%s0 + $0x70] sm:$0xff]
  %v29 = vld [vmem:[%s0 + $0x78] sm:$0xff]
  %v30 = vld [vmem:[%s0 + $0x80] sm:$0xff]
  %v31 = vld [vmem:[%s0 + $0x88] sm:$0xff]
  %v32 = vld [vmem:[%s0 + $0x90] sm:$0xff]
  %v33 = vld [vmem:[%s0 + $0x98] sm:$0xff]
  %v34 = vld [vmem:[%s0 + $0xa0] sm:$0xff]
  %v35 = vld [vmem:[%s0 + $0xa8] sm:$0xff]
  %v36 = vld [vmem:[%s0 + $0xb0] sm:$0xff]
  %v37 = vld [vmem:[%s0 + $0xb8] sm:$0xff]
  %v38 = vld [vmem:[%s0 + $0xc0] sm:$0xff]
  %v39 = vld [vmem:[%s0 + $0xc8] sm:$0xff]
  %v40 = vld [vmem:[%s0 + $0xd0] sm:$0xff]
  %v41 = vld [vmem:[%s0 + $0xd8] sm:$0xff]
  %v42 = vld [vmem:[%s0 + $0xe0] sm:$0xff]
  %v43 = vld [vmem:[%s0 + $0xe8] sm:$0xff]
  %v44 = vld [vmem:[%s0 + $0xf0] sm:$0xff]
  %v45 = vld [vmem:[%s0 + $0xf8] sm:$0xff]
  %v46 = vld [vmem:[%s0 + $0x100] sm:$0xff]
  %v47 = vld [vmem:[%s0 + $0x108] sm:$0xff]
  %v48 = vld [vmem:[%s0 + $0x110] sm:$0xff]
  %v49 = vld [vmem:[%s0 + $0x118] sm:$0xff]
  %v50 = vld [vmem:[%s0 + $0x120] sm:$0xff]
  %v51 = vld [vmem:[%s0 + $0x128] sm:$0xff]
  %v52 = vld [vmem:[%s0 + $0x130] sm:$0xff]
  %v53 = vld [vmem:[%s0 + $0x138] sm:$0xff]
  %v54 = vld [vmem:[%s0 + $0x140] sm:$0xff]
  %v55 = vld [vmem:[%s0 + $0x148] sm:$0xff]
  %v56 = vld [vmem:[%s0 + $0x150] sm:$0xff]
  %v57 = vld [vmem:[%s0 + $0x158] sm:$0xff]
  %v58 = vld [vmem:[%s0 + $0x160] sm:$0xff]
  %v59 = vld [vmem:[%s0 + $0x168] sm:$0xff]
  %v60 = vld [vmem:[%s0 + $0x170] sm:$0xff]
  %v61 = vld [vmem:[%s0 + $0x178] sm:$0xff]
  %v62 = vld [vmem:[%s0 + $0x180] sm:$0xff]
  %v63 = vld [vmem:[%s0 + $0x188] sm:$0xff]
  %v64 = vld [vmem:[%s0 + $0x190] sm:$0xff]
  %v65 = vld [vmem:[%s0 + $0x198] sm:$0xff]
  %v66 = vld [vmem:[%s0 + $0x1a0] sm:$0xff]
  %v67 = vld [vmem:[%s0 + $0x1a8] sm:$0xff]
  %v68 = vld [vmem:[%s0 + $0x1b0] sm:$0xff]
  %v69 = vld [vmem:[%s0 + $0x1b8] sm:$0xff]
  %v70 = vld [vmem:[%s0 + $0x1c0] sm:$0xff]
  %v71 = vld [vmem:[%s0 + $0x1c8] sm:$0xff]
  %v72 = vld [vmem:[%s0 + $0x1d0] sm:$0xff]
  %v73 = vld [vmem:[%s0 + $0x1d8] sm:$0xff]
  %v74 = vld [vmem:[%s0 + $0x1e0] sm:$0xff]
  %v75 = vld [vmem:[%s0 + $0x1e8] sm:$0xff]
  %v76 = vld [vmem:[%s0 + $0x1f0] sm:$0xff]
  %v77 = vld [vmem:[%s0 + $0x1f8] sm:$0xff]
  %v78 = vld [vmem:[%s1] sm:$0x1]
  %v80 = vlaneseq
  %v81 = vshrl.u32 %v80, 7
  %v82 = vsub.s32 0, %v81
  %v83 = vrot.slane %v78, %v82
  %v85 = vmul.f32 %v14, %v83
  %v86 = vmul.f32 %v15, %v83
  %v87 = vmul.f32 %v16, %v83
  %v88 = vmul.f32 %v17, %v83
  %v89 = vmul.f32 %v18, %v83
  %v90 = vmul.f32 %v19, %v83
  %v91 = vmul.f32 %v20, %v83
  %v92 = vmul.f32 %v21, %v83
  %v93 = vmul.f32 %v22, %v83
  %v94 = vmul.f32 %v23, %v83
  %v95 = vmul.f32 %v24, %v83
  %v96 = vmul.f32 %v25, %v83
  %v97 = vmul.f32 %v26, %v83
  %v98 = vmul.f32 %v27, %v83
  %v99 = vmul.f32 %v28, %v83
  %v100 = vmul.f32 %v29, %v83
  %v101 = vmul.f32 %v30, %v83
  %v102 = vmul.f32 %v31, %v83
  %v103 = vmul.f32 %v32, %v83
  %v104 = vmul.f32 %v33, %v83
  %v105 = vmul.f32 %v34, %v83
  %v106 = vmul.f32 %v35, %v83
  %v107 = vmul.f32 %v36, %v83
  %v108 = vmul.f32 %v37, %v83
  %v109 = vmul.f32 %v38, %v83
  %v110 = vmul.f32 %v39, %v83
  %v111 = vmul.f32 %v40, %v83
  %v112 = vmul.f32 %v41, %v83
  %v113 = vmul.f32 %v42, %v83
  %v114 = vmul.f32 %v43, %v83
  %v115 = vmul.f32 %v44, %v83
  %v116 = vmul.f32 %v45, %v83
  %v117 = vmul.f32 %v46, %v83
  %v118 = vmul.f32 %v47, %v83
  %v119 = vmul.f32 %v48, %v83
  %v120 = vmul.f32 %v49, %v83
  %v121 = vmul.f32 %v50, %v83
  %v122 = vmul.f32 %v51, %v83
  %v123 = vmul.f32 %v52, %v83
  %v124 = vmul.f32 %v53, %v83
  %v125 = vmul.f32 %v54, %v83
  %v126 = vmul.f32 %v55, %v83
  %v127 = vmul.f32 %v56, %v83
  %v128 = vmul.f32 %v57, %v83
  %v129 = vmul.f32 %v58, %v83
  %v130 = vmul.f32 %v59, %v83
  %v131 = vmul.f32 %v60, %v83
  %v132 = vmul.f32 %v61, %v83
  %v133 = vmul.f32 %v62, %v83
  %v134 = vmul.f32 %v63, %v83
  %v135 = vmul.f32 %v64, %v83
  %v136 = vmul.f32 %v65, %v83
  %v137 = vmul.f32 %v66, %v83
  %v138 = vmul.f32 %v67, %v83
  %v139 = vmul.f32 %v68, %v83
  %v140 = vmul.f32 %v69, %v83
  %v141 = vmul.f32 %v70, %v83
  %v142 = vmul.f32 %v71, %v83
  %v143 = vmul.f32 %v72, %v83
  %v144 = vmul.f32 %v73, %v83
  %v145 = vmul.f32 %v74, %v83
  %v146 = vmul.f32 %v75, %v83
  %v147 = vmul.f32 %v76, %v83
  %v148 = vmul.f32 %v77, %v83
  %v149 = vld [vmem:[%s2] sm:$0x1]
  %v151 = vlaneseq
  %v152 = vshrl.u32 %v151, 7
  %v153 = vsub.s32 0, %v152
  %v154 = vrot.slane %v149, %v153
  %v156 = vadd.f32 %v85, %v154
  %v157 = vadd.f32 %v86, %v154
  %v158 = vadd.f32 %v87, %v154
  %v159 = vadd.f32 %v88, %v154
  %v160 = vadd.f32 %v89, %v154
  %v161 = vadd.f32 %v90, %v154
  %v162 = vadd.f32 %v91, %v154
  %v163 = vadd.f32 %v92, %v154
  %v164 = vadd.f32 %v93, %v154
  %v165 = vadd.f32 %v94, %v154
  %v166 = vadd.f32 %v95, %v154
  %v167 = vadd.f32 %v96, %v154
  %v168 = vadd.f32 %v97, %v154
  %v169 = vadd.f32 %v98, %v154
  %v170 = vadd.f32 %v99, %v154
  %v171 = vadd.f32 %v100, %v154
  %v172 = vadd.f32 %v101, %v154
  %v173 = vadd.f32 %v102, %v154
  %v174 = vadd.f32 %v103, %v154
  %v175 = vadd.f32 %v104, %v154
  %v176 = vadd.f32 %v105, %v154
  %v177 = vadd.f32 %v106, %v154
  %v178 = vadd.f32 %v107, %v154
  %v179 = vadd.f32 %v108, %v154
  %v180 = vadd.f32 %v109, %v154
  %v181 = vadd.f32 %v110, %v154
  %v182 = vadd.f32 %v111, %v154
  %v183 = vadd.f32 %v112, %v154
  %v184 = vadd.f32 %v113, %v154
  %v185 = vadd.f32 %v114, %v154
  %v186 = vadd.f32 %v115, %v154
  %v187 = vadd.f32 %v116, %v154
  %v188 = vadd.f32 %v117, %v154
  %v189 = vadd.f32 %v118, %v154
  %v190 = vadd.f32 %v119, %v154
  %v191 = vadd.f32 %v120, %v154
  %v192 = vadd.f32 %v121, %v154
  %v193 = vadd.f32 %v122, %v154
  %v194 = vadd.f32 %v123, %v154
  %v195 = vadd.f32 %v124, %v154
  %v196 = vadd.f32 %v125, %v154
  %v197 = vadd.f32 %v126, %v154
  %v198 = vadd.f32 %v127, %v154
  %v199 = vadd.f32 %v128, %v154
  %v200 = vadd.f32 %v129, %v154
  %v201 = vadd.f32 %v130, %v154
  %v202 = vadd.f32 %v131, %v154
  %v203 = vadd.f32 %v132, %v154
  %v204 = vadd.f32 %v133, %v154
  %v205 = vadd.f32 %v134, %v154
  %v206 = vadd.f32 %v135, %v154
  %v207 = vadd.f32 %v136, %v154
  %v208 = vadd.f32 %v137, %v154
  %v209 = vadd.f32 %v138, %v154
  %v210 = vadd.f32 %v139, %v154
  %v211 = vadd.f32 %v140, %v154
  %v212 = vadd.f32 %v141, %v154
  %v213 = vadd.f32 %v142, %v154
  %v214 = vadd.f32 %v143, %v154
  %v215 = vadd.f32 %v144, %v154
  %v216 = vadd.f32 %v145, %v154
  %v217 = vadd.f32 %v146, %v154
  %v218 = vadd.f32 %v147, %v154
  %v219 = vadd.f32 %v148, %v154
  %v220 = vmax.f32 %v156, 0.0
  %v221 = vmax.f32 %v157, 0.0
  %v222 = vmax.f32 %v158, 0.0
  %v223 = vmax.f32 %v159, 0.0
  %v224 = vmax.f32 %v160, 0.0
  %v225 = vmax.f32 %v161, 0.0
  %v226 = vmax.f32 %v162, 0.0
  %v227 = vmax.f32 %v163, 0.0
  %v228 = vmax.f32 %v164, 0.0
  %v229 = vmax.f32 %v165, 0.0
  %v230 = vmax.f32 %v166, 0.0
  %v231 = vmax.f32 %v167, 0.0
  %v232 = vmax.f32 %v168, 0.0
  %v233 = vmax.f32 %v169, 0.0
  %v234 = vmax.f32 %v170, 0.0
  %v235 = vmax.f32 %v171, 0.0
  %v236 = vmax.f32 %v172, 0.0
  %v237 = vmax.f32 %v173, 0.0
  %v238 = vmax.f32 %v174, 0.0
  %v239 = vmax.f32 %v175, 0.0
  %v240 = vmax.f32 %v176, 0.0
  %v241 = vmax.f32 %v177, 0.0
  %v242 = vmax.f32 %v178, 0.0
  %v243 = vmax.f32 %v179, 0.0
  %v244 = vmax.f32 %v180, 0.0
  %v245 = vmax.f32 %v181, 0.0
  %v246 = vmax.f32 %v182, 0.0
  %v247 = vmax.f32 %v183, 0.0
  %v248 = vmax.f32 %v184, 0.0
  %v249 = vmax.f32 %v185, 0.0
  %v250 = vmax.f32 %v186, 0.0
  %v251 = vmax.f32 %v187, 0.0
  %v252 = vmax.f32 %v188, 0.0
  %v253 = vmax.f32 %v189, 0.0
  %v254 = vmax.f32 %v190, 0.0
  %v255 = vmax.f32 %v191, 0.0
  %v256 = vmax.f32 %v192, 0.0
  %v257 = vmax.f32 %v193, 0.0
  %v258 = vmax.f32 %v194, 0.0
  %v259 = vmax.f32 %v195, 0.0
  %v260 = vmax.f32 %v196, 0.0
  %v261 = vmax.f32 %v197, 0.0
  %v262 = vmax.f32 %v198, 0.0
  %v263 = vmax.f32 %v199, 0.0
  %v264 = vmax.f32 %v200, 0.0
  %v265 = vmax.f32 %v201, 0.0
  %v266 = vmax.f32 %v202, 0.0
  %v267 = vmax.f32 %v203, 0.0
  %v268 = vmax.f32 %v204, 0.0
  %v269 = vmax.f32 %v205, 0.0
  %v270 = vmax.f32 %v206, 0.0
  %v271 = vmax.f32 %v207, 0.0
  %v272 = vmax.f32 %v208, 0.0
  %v273 = vmax.f32 %v209, 0.0
  %v274 = vmax.f32 %v210, 0.0
  %v275 = vmax.f32 %v211, 0.0
  %v276 = vmax.f32 %v212, 0.0
  %v277 = vmax.f32 %v213, 0.0
  %v278 = vmax.f32 %v214, 0.0
  %v279 = vmax.f32 %v215, 0.0
  %v280 = vmax.f32 %v216, 0.0
  %v281 = vmax.f32 %v217, 0.0
  %v282 = vmax.f32 %v218, 0.0
  %v283 = vmax.f32 %v219, 0.0
  %284 = vst [vmem:[%s3] sm:$0xff] %v220
  %285 = vst [vmem:[%s3 + $0x8] sm:$0xff] %v221
  %286 = vst [vmem:[%s3 + $0x10] sm:$0xff] %v222
  %287 = vst [vmem:[%s3 + $0x18] sm:$0xff] %v223
  %288 = vst [vmem:[%s3 + $0x20] sm:$0xff] %v224
  %289 = vst [vmem:[%s3 + $0x28] sm:$0xff] %v225
  %290 = vst [vmem:[%s3 + $0x30] sm:$0xff] %v226
  %291 = vst [vmem:[%s3 + $0x38] sm:$0xff] %v227
  %292 = vst [vmem:[%s3 + $0x40] sm:$0xff] %v228
  %293 = vst [vmem:[%s3 + $0x48] sm:$0xff] %v229
  %294 = vst [vmem:[%s3 + $0x50] sm:$0xff] %v230
  %295 = vst [vmem:[%s3 + $0x58] sm:$0xff] %v231
  %296 = vst [vmem:[%s3 + $0x60] sm:$0xff] %v232
  %297 = vst [vmem:[%s3 + $0x68] sm:$0xff] %v233
  %298 = vst [vmem:[%s3 + $0x70] sm:$0xff] %v234
  %299 = vst [vmem:[%s3 + $0x78] sm:$0xff] %v235
  %300 = vst [vmem:[%s3 + $0x80] sm:$0xff] %v236
  %301 = vst [vmem:[%s3 + $0x88] sm:$0xff] %v237
  %302 = vst [vmem:[%s3 + $0x90] sm:$0xff] %v238
  %303 = vst [vmem:[%s3 + $0x98] sm:$0xff] %v239
  %304 = vst [vmem:[%s3 + $0xa0] sm:$0xff] %v240
  %305 = vst [vmem:[%s3 + $0xa8] sm:$0xff] %v241
  %306 = vst [vmem:[%s3 + $0xb0] sm:$0xff] %v242
  %307 = vst [vmem:[%s3 + $0xb8] sm:$0xff] %v243
  %308 = vst [vmem:[%s3 + $0xc0] sm:$0xff] %v244
  %309 = vst [vmem:[%s3 + $0xc8] sm:$0xff] %v245
  %310 = vst [vmem:[%s3 + $0xd0] sm:$0xff] %v246
  %311 = vst [vmem:[%s3 + $0xd8] sm:$0xff] %v247
  %312 = vst [vmem:[%s3 + $0xe0] sm:$0xff] %v248
  %313 = vst [vmem:[%s3 + $0xe8] sm:$0xff] %v249
  %314 = vst [vmem:[%s3 + $0xf0] sm:$0xff] %v250
  %315 = vst [vmem:[%s3 + $0xf8] sm:$0xff] %v251
  %316 = vst [vmem:[%s3 + $0x100] sm:$0xff] %v252
  %317 = vst [vmem:[%s3 + $0x108] sm:$0xff] %v253
  %318 = vst [vmem:[%s3 + $0x110] sm:$0xff] %v254
  %319 = vst [vmem:[%s3 + $0x118] sm:$0xff] %v255
  %320 = vst [vmem:[%s3 + $0x120] sm:$0xff] %v256
  %321 = vst [vmem:[%s3 + $0x128] sm:$0xff] %v257
  %322 = vst [vmem:[%s3 + $0x130] sm:$0xff] %v258
  %323 = vst [vmem:[%s3 + $0x138] sm:$0xff] %v259
  %324 = vst [vmem:[%s3 + $0x140] sm:$0xff] %v260
  %325 = vst [vmem:[%s3 + $0x148] sm:$0xff] %v261
  %326 = vst [vmem:[%s3 + $0x150] sm:$0xff] %v262
  %327 = vst [vmem:[%s3 + $0x158] sm:$0xff] %v263
  %328 = vst [vmem:[%s3 + $0x160] sm:$0xff] %v264
  %329 = vst [vmem:[%s3 + $0x168] sm:$0xff] %v265
  %330 = vst [vmem:[%s3 + $0x170] sm:$0xff] %v266
  %331 = vst [vmem:[%s3 + $0x178] sm:$0xff] %v267
  %332 = vst [vmem:[%s3 + $0x180] sm:$0xff] %v268
  %333 = vst [vmem:[%s3 + $0x188] sm:$0xff] %v269
  %334 = vst [vmem:[%s3 + $0x190] sm:$0xff] %v270
  %335 = vst [vmem:[%s3 + $0x198] sm:$0xff] %v271
  %336 = vst [vmem:[%s3 + $0x1a0] sm:$0xff] %v272
  %337 = vst [vmem:[%s3 + $0x1a8] sm:$0xff] %v273
  %338 = vst [vmem:[%s3 + $0x1b0] sm:$0xff] %v274
  %339 = vst [vmem:[%s3 + $0x1b8] sm:$0xff] %v275
  %340 = vst [vmem:[%s3 + $0x1c0] sm:$0xff] %v276
  %341 = vst [vmem:[%s3 + $0x1c8] sm:$0xff] %v277
  %342 = vst [vmem:[%s3 + $0x1d0] sm:$0xff] %v278
  %343 = vst [vmem:[%s3 + $0x1d8] sm:$0xff] %v279
  %344 = vst [vmem:[%s3 + $0x1e0] sm:$0xff] %v280
  %345 = vst [vmem:[%s3 + $0x1e8] sm:$0xff] %v281
  %346 = vst [vmem:[%s3 + $0x1f0] sm:$0xff] %v282
  %347 = vst [vmem:[%s3 + $0x1f8] sm:$0xff] %v283
  // Predicated region
  $region14: #{_lambda_.7} parent=0 // pred_check
    _
  $region15: #{_lambda_.7} parent=0 // pred_check_branch
    %349 = sbr.rel (0) target = $region17
  $region16: #{_lambda_.7} parent=0 // pred_region
    _
  $region17: #{_lambda_.7} parent=0 // pred_fallthru
    _
  // Predicated region
  $region18: #{_lambda_.7} parent=0 // pred_check
    _
  $region19: #{_lambda_.7} parent=0 // pred_check_branch
    %351 = sbr.rel (0) target = $region21
  $region20: #{_lambda_.7} parent=0 // pred_region
    _
  $region21: #{_lambda_.7} parent=0 // pred_fallthru
    _

// kernel: _lambda_.5
$region0: #{_lambda_.5}
  #allocation0 [shape = 'u32[]', space=smem, size = 0x4, offset = 0x4, fixed_abs, tag = 'smem constant byte address 0x4 - core index']
  #allocation1 [shape = 'u32[144,128]{1,0:T(1,128)}', space=vmem, size = 0x12000, scoped, tag = 'internal scratch']
  %s0 = inlined_call_operand.vmem [shape: f32[512,128], index: 0, kind: input, shape index: {}]
  %s1 = inlined_call_operand.vmem [shape: f32[1,128], index: 1, kind: input, shape index: {}]
  %s2 = inlined_call_operand.vmem [shape: f32[1,128], index: 2, kind: input, shape index: {}]
  %s3 = inlined_call_operand.vmem [shape: bf16[512,128], index: 3, kind: output, shape index: {}]
  %s4 = sld [smem:[#allocation0]]
  $region22: #{_lambda_.5} parent=0
    _
  %s6 = ssub.s32 1, %s4
  %s7 = scalar_select 0, %s6, %s4
  // Predicated region
  $region2: #{_lambda_.5} parent=0 // pred_check
    _
  $region3: #{_lambda_.5} parent=0 // pred_check_branch
    %9 = sbr.rel (0) target = $region5
  $region4: #{_lambda_.5} parent=0 // pred_region
    _
  $region5: #{_lambda_.5} parent=0 // pred_fallthru
    _
  // Predicated region
  $region6: #{_lambda_.5} parent=0 // pred_check
    _
  $region7: #{_lambda_.5} parent=0 // pred_check_branch
    %11 = sbr.rel (0) target = $region9
  $region8: #{_lambda_.5} parent=0 // pred_region
    _
  $region9: #{_lambda_.5} parent=0 // pred_fallthru
    _
  // Predicated region
  $region10: #{_lambda_.5} parent=0 // pred_check
    _
  $region11: #{_lambda_.5} parent=0 // pred_check_branch
    %13 = sbr.rel (0) target = $region13
  $region12: #{_lambda_.5} parent=0 // pred_region
    _
  $region13: #{_lambda_.5} parent=0 // pred_fallthru
    _
  %v14 = vld [vmem:[%s0] sm:$0xff]
  %v15 = vld [vmem:[%s0 + $0x8] sm:$0xff]
  %v16 = vld [vmem:[%s0 + $0x10] sm:$0xff]
  %v17 = vld [vmem:[%s0 + $0x18] sm:$0xff]
  %v18 = vld [vmem:[%s0 + $0x20] sm:$0xff]
  %v19 = vld [vmem:[%s0 + $0x28] sm:$0xff]
  %v20 = vld [vmem:[%s0 + $0x30] sm:$0xff]
  %v21 = vld [vmem:[%s0 + $0x38] sm:$0xff]
  %v22 = vld [vmem:[%s0 + $0x40] sm:$0xff]
  %v23 = vld [vmem:[%s0 + $0x48] sm:$0xff]
  %v24 = vld [vmem:[%s0 + $0x50] sm:$0xff]
  %v25 = vld [vmem:[%s0 + $0x58] sm:$0xff]
  %v26 = vld [vmem:[%s0 + $0x60] sm:$0xff]
  %v27 = vld [vmem:[%s0 + $0x68] sm:$0xff]
  %v28 = vld [vmem:[%s0 + $0x70] sm:$0xff]
  %v29 = vld [vmem:[%s0 + $0x78] sm:$0xff]
  %v30 = vld [vmem:[%s0 + $0x80] sm:$0xff]
  %v31 = vld [vmem:[%s0 + $0x88] sm:$0xff]
  %v32 = vld [vmem:[%s0 + $0x90] sm:$0xff]
  %v33 = vld [vmem:[%s0 + $0x98] sm:$0xff]
  %v34 = vld [vmem:[%s0 + $0xa0] sm:$0xff]
  %v35 = vld [vmem:[%s0 + $0xa8] sm:$0xff]
  %v36 = vld [vmem:[%s0 + $0xb0] sm:$0xff]
  %v37 = vld [vmem:[%s0 + $0xb8] sm:$0xff]
  %v38 = vld [vmem:[%s0 + $0xc0] sm:$0xff]
  %v39 = vld [vmem:[%s0 + $0xc8] sm:$0xff]
  %v40 = vld [vmem:[%s0 + $0xd0] sm:$0xff]
  %v41 = vld [vmem:[%s0 + $0xd8] sm:$0xff]
  %v42 = vld [vmem:[%s0 + $0xe0] sm:$0xff]
  %v43 = vld [vmem:[%s0 + $0xe8] sm:$0xff]
  %v44 = vld [vmem:[%s0 + $0xf0] sm:$0xff]
  %v45 = vld [vmem:[%s0 + $0xf8] sm:$0xff]
  %v46 = vld [vmem:[%s0 + $0x100] sm:$0xff]
  %v47 = vld [vmem:[%s0 + $0x108] sm:$0xff]
  %v48 = vld [vmem:[%s0 + $0x110] sm:$0xff]
  %v49 = vld [vmem:[%s0 + $0x118] sm:$0xff]
  %v50 = vld [vmem:[%s0 + $0x120] sm:$0xff]
  %v51 = vld [vmem:[%s0 + $0x128] sm:$0xff]
  %v52 = vld [vmem:[%s0 + $0x130] sm:$0xff]
  %v53 = vld [vmem:[%s0 + $0x138] sm:$0xff]
  %v54 = vld [vmem:[%s0 + $0x140] sm:$0xff]
  %v55 = vld [vmem:[%s0 + $0x148] sm:$0xff]
  %v56 = vld [vmem:[%s0 + $0x150] sm:$0xff]
  %v57 = vld [vmem:[%s0 + $0x158] sm:$0xff]
  %v58 = vld [vmem:[%s0 + $0x160] sm:$0xff]
  %v59 = vld [vmem:[%s0 + $0x168] sm:$0xff]
  %v60 = vld [vmem:[%s0 + $0x170] sm:$0xff]
  %v61 = vld [vmem:[%s0 + $0x178] sm:$0xff]
  %v62 = vld [vmem:[%s0 + $0x180] sm:$0xff]
  %v63 = vld [vmem:[%s0 + $0x188] sm:$0xff]
  %v64 = vld [vmem:[%s0 + $0x190] sm:$0xff]
  %v65 = vld [vmem:[%s0 + $0x198] sm:$0xff]
  %v66 = vld [vmem:[%s0 + $0x1a0] sm:$0xff]
  %v67 = vld [vmem:[%s0 + $0x1a8] sm:$0xff]
  %v68 = vld [vmem:[%s0 + $0x1b0] sm:$0xff]
  %v69 = vld [vmem:[%s0 + $0x1b8] sm:$0xff]
  %v70 = vld [vmem:[%s0 + $0x1c0] sm:$0xff]
  %v71 = vld [vmem:[%s0 + $0x1c8] sm:$0xff]
  %v72 = vld [vmem:[%s0 + $0x1d0] sm:$0xff]
  %v73 = vld [vmem:[%s0 + $0x1d8] sm:$0xff]
  %v74 = vld [vmem:[%s0 + $0x1e0] sm:$0xff]
  %v75 = vld [vmem:[%s0 + $0x1e8] sm:$0xff]
  %v76 = vld [vmem:[%s0 + $0x1f0] sm:$0xff]
  %v77 = vld [vmem:[%s0 + $0x1f8] sm:$0xff]
  %v78 = vld [vmem:[%s1] sm:$0x1]
  %v80 = vlaneseq
  %v81 = vshrl.u32 %v80, 7
  %v82 = vsub.s32 0, %v81
  %v83 = vrot.slane %v78, %v82
  %v85 = vmul.f32 %v14, %v83
  %v86 = vmul.f32 %v15, %v83
  %v87 = vmul.f32 %v16, %v83
  %v88 = vmul.f32 %v17, %v83
  %v89 = vmul.f32 %v18, %v83
  %v90 = vmul.f32 %v19, %v83
  %v91 = vmul.f32 %v20, %v83
  %v92 = vmul.f32 %v21, %v83
  %v93 = vmul.f32 %v22, %v83
  %v94 = vmul.f32 %v23, %v83
  %v95 = vmul.f32 %v24, %v83
  %v96 = vmul.f32 %v25, %v83
  %v97 = vmul.f32 %v26, %v83
  %v98 = vmul.f32 %v27, %v83
  %v99 = vmul.f32 %v28, %v83
  %v100 = vmul.f32 %v29, %v83
  %v101 = vmul.f32 %v30, %v83
  %v102 = vmul.f32 %v31, %v83
  %v103 = vmul.f32 %v32, %v83
  %v104 = vmul.f32 %v33, %v83
  %v105 = vmul.f32 %v34, %v83
  %v106 = vmul.f32 %v35, %v83
  %v107 = vmul.f32 %v36, %v83
  %v108 = vmul.f32 %v37, %v83
  %v109 = vmul.f32 %v38, %v83
  %v110 = vmul.f32 %v39, %v83
  %v111 = vmul.f32 %v40, %v83
  %v112 = vmul.f32 %v41, %v83
  %v113 = vmul.f32 %v42, %v83
  %v114 = vmul.f32 %v43, %v83
  %v115 = vmul.f32 %v44, %v83
  %v116 = vmul.f32 %v45, %v83
  %v117 = vmul.f32 %v46, %v83
  %v118 = vmul.f32 %v47, %v83
  %v119 = vmul.f32 %v48, %v83
  %v120 = vmul.f32 %v49, %v83
  %v121 = vmul.f32 %v50, %v83
  %v122 = vmul.f32 %v51, %v83
  %v123 = vmul.f32 %v52, %v83
  %v124 = vmul.f32 %v53, %v83
  %v125 = vmul.f32 %v54, %v83
  %v126 = vmul.f32 %v55, %v83
  %v127 = vmul.f32 %v56, %v83
  %v128 = vmul.f32 %v57, %v83
  %v129 = vmul.f32 %v58, %v83
  %v130 = vmul.f32 %v59, %v83
  %v131 = vmul.f32 %v60, %v83
  %v132 = vmul.f32 %v61, %v83
  %v133 = vmul.f32 %v62, %v83
  %v134 = vmul.f32 %v63, %v83
  %v135 = vmul.f32 %v64, %v83
  %v136 = vmul.f32 %v65, %v83
  %v137 = vmul.f32 %v66, %v83
  %v138 = vmul.f32 %v67, %v83
  %v139 = vmul.f32 %v68, %v83
  %v140 = vmul.f32 %v69, %v83
  %v141 = vmul.f32 %v70, %v83
  %v142 = vmul.f32 %v71, %v83
  %v143 = vmul.f32 %v72, %v83
  %v144 = vmul.f32 %v73, %v83
  %v145 = vmul.f32 %v74, %v83
  %v146 = vmul.f32 %v75, %v83
  %v147 = vmul.f32 %v76, %v83
  %v148 = vmul.f32 %v77, %v83
  %v149 = vld [vmem:[%s2] sm:$0x1]
  %v151 = vlaneseq
  %v152 = vshrl.u32 %v151, 7
  %v153 = vsub.s32 0, %v152
  %v154 = vrot.slane %v149, %v153
  %v156 = vadd.f32 %v85, %v154
  %v157 = vadd.f32 %v86, %v154
  %v158 = vadd.f32 %v87, %v154
  %v159 = vadd.f32 %v88, %v154
  %v160 = vadd.f32 %v89, %v154
  %v161 = vadd.f32 %v90, %v154
  %v162 = vadd.f32 %v91, %v154
  %v163 = vadd.f32 %v92, %v154
  %v164 = vadd.f32 %v93, %v154
  %v165 = vadd.f32 %v94, %v154
  %v166 = vadd.f32 %v95, %v154
  %v167 = vadd.f32 %v96, %v154
  %v168 = vadd.f32 %v97, %v154
  %v169 = vadd.f32 %v98, %v154
  %v170 = vadd.f32 %v99, %v154
  %v171 = vadd.f32 %v100, %v154
  %v172 = vadd.f32 %v101, %v154
  %v173 = vadd.f32 %v102, %v154
  %v174 = vadd.f32 %v103, %v154
  %v175 = vadd.f32 %v104, %v154
  %v176 = vadd.f32 %v105, %v154
  %v177 = vadd.f32 %v106, %v154
  %v178 = vadd.f32 %v107, %v154
  %v179 = vadd.f32 %v108, %v154
  %v180 = vadd.f32 %v109, %v154
  %v181 = vadd.f32 %v110, %v154
  %v182 = vadd.f32 %v111, %v154
  %v183 = vadd.f32 %v112, %v154
  %v184 = vadd.f32 %v113, %v154
  %v185 = vadd.f32 %v114, %v154
  %v186 = vadd.f32 %v115, %v154
  %v187 = vadd.f32 %v116, %v154
  %v188 = vadd.f32 %v117, %v154
  %v189 = vadd.f32 %v118, %v154
  %v190 = vadd.f32 %v119, %v154
  %v191 = vadd.f32 %v120, %v154
  %v192 = vadd.f32 %v121, %v154
  %v193 = vadd.f32 %v122, %v154
  %v194 = vadd.f32 %v123, %v154
  %v195 = vadd.f32 %v124, %v154
  %v196 = vadd.f32 %v125, %v154
  %v197 = vadd.f32 %v126, %v154
  %v198 = vadd.f32 %v127, %v154
  %v199 = vadd.f32 %v128, %v154
  %v200 = vadd.f32 %v129, %v154
  %v201 = vadd.f32 %v130, %v154
  %v202 = vadd.f32 %v131, %v154
  %v203 = vadd.f32 %v132, %v154
  %v204 = vadd.f32 %v133, %v154
  %v205 = vadd.f32 %v134, %v154
  %v206 = vadd.f32 %v135, %v154
  %v207 = vadd.f32 %v136, %v154
  %v208 = vadd.f32 %v137, %v154
  %v209 = vadd.f32 %v138, %v154
  %v210 = vadd.f32 %v139, %v154
  %v211 = vadd.f32 %v140, %v154
  %v212 = vadd.f32 %v141, %v154
  %v213 = vadd.f32 %v142, %v154
  %v214 = vadd.f32 %v143, %v154
  %v215 = vadd.f32 %v144, %v154
  %v216 = vadd.f32 %v145, %v154
  %v217 = vadd.f32 %v146, %v154
  %v218 = vadd.f32 %v147, %v154
  %v219 = vadd.f32 %v148, %v154
  %v220 = vmax.f32 %v156, 0.0
  %v221 = vmax.f32 %v157, 0.0
  %v222 = vmax.f32 %v158, 0.0
  %v223 = vmax.f32 %v159, 0.0
  %v224 = vmax.f32 %v160, 0.0
  %v225 = vmax.f32 %v161, 0.0
  %v226 = vmax.f32 %v162, 0.0
  %v227 = vmax.f32 %v163, 0.0
  %v228 = vmax.f32 %v164, 0.0
  %v229 = vmax.f32 %v165, 0.0
  %v230 = vmax.f32 %v166, 0.0
  %v231 = vmax.f32 %v167, 0.0
  %v232 = vmax.f32 %v168, 0.0
  %v233 = vmax.f32 %v169, 0.0
  %v234 = vmax.f32 %v170, 0.0
  %v235 = vmax.f32 %v171, 0.0
  %v236 = vmax.f32 %v172, 0.0
  %v237 = vmax.f32 %v173, 0.0
  %v238 = vmax.f32 %v174, 0.0
  %v239 = vmax.f32 %v175, 0.0
  %v240 = vmax.f32 %v176, 0.0
  %v241 = vmax.f32 %v177, 0.0
  %v242 = vmax.f32 %v178, 0.0
  %v243 = vmax.f32 %v179, 0.0
  %v244 = vmax.f32 %v180, 0.0
  %v245 = vmax.f32 %v181, 0.0
  %v246 = vmax.f32 %v182, 0.0
  %v247 = vmax.f32 %v183, 0.0
  %v248 = vmax.f32 %v184, 0.0
  %v249 = vmax.f32 %v185, 0.0
  %v250 = vmax.f32 %v186, 0.0
  %v251 = vmax.f32 %v187, 0.0
  %v252 = vmax.f32 %v188, 0.0
  %v253 = vmax.f32 %v189, 0.0
  %v254 = vmax.f32 %v190, 0.0
  %v255 = vmax.f32 %v191, 0.0
  %v256 = vmax.f32 %v192, 0.0
  %v257 = vmax.f32 %v193, 0.0
  %v258 = vmax.f32 %v194, 0.0
  %v259 = vmax.f32 %v195, 0.0
  %v260 = vmax.f32 %v196, 0.0
  %v261 = vmax.f32 %v197, 0.0
  %v262 = vmax.f32 %v198, 0.0
  %v263 = vmax.f32 %v199, 0.0
  %v264 = vmax.f32 %v200, 0.0
  %v265 = vmax.f32 %v201, 0.0
  %v266 = vmax.f32 %v202, 0.0
  %v267 = vmax.f32 %v203, 0.0
  %v268 = vmax.f32 %v204, 0.0
  %v269 = vmax.f32 %v205, 0.0
  %v270 = vmax.f32 %v206, 0.0
  %v271 = vmax.f32 %v207, 0.0
  %v272 = vmax.f32 %v208, 0.0
  %v273 = vmax.f32 %v209, 0.0
  %v274 = vmax.f32 %v210, 0.0
  %v275 = vmax.f32 %v211, 0.0
  %v276 = vmax.f32 %v212, 0.0
  %v277 = vmax.f32 %v213, 0.0
  %v278 = vmax.f32 %v214, 0.0
  %v279 = vmax.f32 %v215, 0.0
  %v280 = vmax.f32 %v216, 0.0
  %v281 = vmax.f32 %v217, 0.0
  %v282 = vmax.f32 %v218, 0.0
  %v283 = vmax.f32 %v219, 0.0
  %v284 = vpack.c.bf16 %v221, %v220
  %v285 = vpack.c.bf16 %v223, %v222
  %v286 = vpack.c.bf16 %v225, %v224
  %v287 = vpack.c.bf16 %v227, %v226
  %v288 = vpack.c.bf16 %v229, %v228
  %v289 = vpack.c.bf16 %v231, %v230
  %v290 = vpack.c.bf16 %v233, %v232
  %v291 = vpack.c.bf16 %v235, %v234
  %v292 = vpack.c.bf16 %v237, %v236
  %v293 = vpack.c.bf16 %v239, %v238
  %v294 = vpack.c.bf16 %v241, %v240
  %v295 = vpack.c.bf16 %v243, %v242
  %v296 = vpack.c.bf16 %v245, %v244
  %v297 = vpack.c.bf16 %v247, %v246
  %v298 = vpack.c.bf16 %v249, %v248
  %v299 = vpack.c.bf16 %v251, %v250
  %v300 = vpack.c.bf16 %v253, %v252
  %v301 = vpack.c.bf16 %v255, %v254
  %v302 = vpack.c.bf16 %v257, %v256
  %v303 = vpack.c.bf16 %v259, %v258
  %v304 = vpack.c.bf16 %v261, %v260
  %v305 = vpack.c.bf16 %v263, %v262
  %v306 = vpack.c.bf16 %v265, %v264
  %v307 = vpack.c.bf16 %v267, %v266
  %v308 = vpack.c.bf16 %v269, %v268
  %v309 = vpack.c.bf16 %v271, %v270
  %v310 = vpack.c.bf16 %v273, %v272
  %v311 = vpack.c.bf16 %v275, %v274
  %v312 = vpack.c.bf16 %v277, %v276
  %v313 = vpack.c.bf16 %v279, %v278
  %v314 = vpack.c.bf16 %v281, %v280
  %v315 = vpack.c.bf16 %v283, %v282
  %v348 = vunpack.c.l.b16 %v284
  %v349 = vunpack.c.h.b16 %v284
  %v350 = vunpack.c.l.b16 %v285
  %v351 = vunpack.c.h.b16 %v285
  %v352 = vunpack.c.l.b16 %v286
  %v353 = vunpack.c.h.b16 %v286
  %v354 = vunpack.c.l.b16 %v287
  %v355 = vunpack.c.h.b16 %v287
  %v356 = vunpack.c.l.b16 %v288
  %v357 = vunpack.c.h.b16 %v288
  %v358 = vunpack.c.l.b16 %v289
  %v359 = vunpack.c.h.b16 %v289
  %v360 = vunpack.c.l.b16 %v290
  %v361 = vunpack.c.h.b16 %v290
  %v362 = vunpack.c.l.b16 %v291
  %v363 = vunpack.c.h.b16 %v291
  %v364 = vunpack.c.l.b16 %v292
  %v365 = vunpack.c.h.b16 %v292
  %v366 = vunpack.c.l.b16 %v293
  %v367 = vunpack.c.h.b16 %v293
  %v368 = vunpack.c.l.b16 %v294
  %v369 = vunpack.c.h.b16 %v294
  %v370 = vunpack.c.l.b16 %v295
  %v371 = vunpack.c.h.b16 %v295
  %v372 = vunpack.c.l.b16 %v296
  %v373 = vunpack.c.h.b16 %v296
  %v374 = vunpack.c.l.b16 %v297
  %v375 = vunpack.c.h.b16 %v297
  %v376 = vunpack.c.l.b16 %v298
  %v377 = vunpack.c.h.b16 %v298
  %v378 = vunpack.c.l.b16 %v299
  %v379 = vunpack.c.h.b16 %v299
  %v380 = vunpack.c.l.b16 %v300
  %v381 = vunpack.c.h.b16 %v300
  %v382 = vunpack.c.l.b16 %v301
  %v383 = vunpack.c.h.b16 %v301
  %v384 = vunpack.c.l.b16 %v302
  %v385 = vunpack.c.h.b16 %v302
  %v386 = vunpack.c.l.b16 %v303
  %v387 = vunpack.c.h.b16 %v303
  %v388 = vunpack.c.l.b16 %v304
  %v389 = vunpack.c.h.b16 %v304
  %v390 = vunpack.c.l.b16 %v305
  %v391 = vunpack.c.h.b16 %v305
  %v392 = vunpack.c.l.b16 %v306
  %v393 = vunpack.c.h.b16 %v306
  %v394 = vunpack.c.l.b16 %v307
  %v395 = vunpack.c.h.b16 %v307
  %v396 = vunpack.c.l.b16 %v308
  %v397 = vunpack.c.h.b16 %v308
  %v398 = vunpack.c.l.b16 %v309
  %v399 = vunpack.c.h.b16 %v309
  %v400 = vunpack.c.l.b16 %v310
  %v401 = vunpack.c.h.b16 %v310
  %v402 = vunpack.c.l.b16 %v311
  %v403 = vunpack.c.h.b16 %v311
  %v404 = vunpack.c.l.b16 %v312
  %v405 = vunpack.c.h.b16 %v312
  %v406 = vunpack.c.l.b16 %v313
  %v407 = vunpack.c.h.b16 %v313
  %v408 = vunpack.c.l.b16 %v314
  %v409 = vunpack.c.h.b16 %v314
  %v410 = vunpack.c.l.b16 %v315
  %v411 = vunpack.c.h.b16 %v315
  %v412 = vpack.c.b16 %v348, %v348
  %v413 = vpack.c.b16 %v349, %v349
  %v414 = vpack.c.b16 %v350, %v350
  %v415 = vpack.c.b16 %v351, %v351
  %v416 = vpack.c.b16 %v352, %v352
  %v417 = vpack.c.b16 %v353, %v353
  %v418 = vpack.c.b16 %v354, %v354
  %v419 = vpack.c.b16 %v355, %v355
  %v420 = vpack.c.b16 %v356, %v356
  %v421 = vpack.c.b16 %v357, %v357
  %v422 = vpack.c.b16 %v358, %v358
  %v423 = vpack.c.b16 %v359, %v359
  %v424 = vpack.c.b16 %v360, %v360
  %v425 = vpack.c.b16 %v361, %v361
  %v426 = vpack.c.b16 %v362, %v362
  %v427 = vpack.c.b16 %v363, %v363
  %v428 = vpack.c.b16 %v364, %v364
  %v429 = vpack.c.b16 %v365, %v365
  %v430 = vpack.c.b16 %v366, %v366
  %v431 = vpack.c.b16 %v367, %v367
  %v432 = vpack.c.b16 %v368, %v368
  %v433 = vpack.c.b16 %v369, %v369
  %v434 = vpack.c.b16 %v370, %v370
  %v435 = vpack.c.b16 %v371, %v371
  %v436 = vpack.c.b16 %v372, %v372
  %v437 = vpack.c.b16 %v373, %v373
  %v438 = vpack.c.b16 %v374, %v374
  %v439 = vpack.c.b16 %v375, %v375
  %v440 = vpack.c.b16 %v376, %v376
  %v441 = vpack.c.b16 %v377, %v377
  %v442 = vpack.c.b16 %v378, %v378
  %v443 = vpack.c.b16 %v379, %v379
  %v444 = vpack.c.b16 %v380, %v380
  %v445 = vpack.c.b16 %v381, %v381
  %v446 = vpack.c.b16 %v382, %v382
  %v447 = vpack.c.b16 %v383, %v383
  %v448 = vpack.c.b16 %v384, %v384
  %v449 = vpack.c.b16 %v385, %v385
  %v450 = vpack.c.b16 %v386, %v386
  %v451 = vpack.c.b16 %v387, %v387
  %v452 = vpack.c.b16 %v388, %v388
  %v453 = vpack.c.b16 %v389, %v389
  %v454 = vpack.c.b16 %v390, %v390
  %v455 = vpack.c.b16 %v391, %v391
  %v456 = vpack.c.b16 %v392, %v392
  %v457 = vpack.c.b16 %v393, %v393
  %v458 = vpack.c.b16 %v394, %v394
  %v459 = vpack.c.b16 %v395, %v395
  %v460 = vpack.c.b16 %v396, %v396
  %v461 = vpack.c.b16 %v397, %v397
  %v462 = vpack.c.b16 %v398, %v398
  %v463 = vpack.c.b16 %v399, %v399
  %v464 = vpack.c.b16 %v400, %v400
  %v465 = vpack.c.b16 %v401, %v401
  %v466 = vpack.c.b16 %v402, %v402
  %v467 = vpack.c.b16 %v403, %v403
  %v468 = vpack.c.b16 %v404, %v404
  %v469 = vpack.c.b16 %v405, %v405
  %v470 = vpack.c.b16 %v406, %v406
  %v471 = vpack.c.b16 %v407, %v407
  %v472 = vpack.c.b16 %v408, %v408
  %v473 = vpack.c.b16 %v409, %v409
  %v474 = vpack.c.b16 %v410, %v410
  %v475 = vpack.c.b16 %v411, %v411
  %540 = vst [vmem:[%s3] sm:$0xf] %v412
  %541 = vst [vmem:[%s3 + $0x4] sm:$0xf] %v413
  %542 = vst [vmem:[%s3 + $0x8] sm:$0xf] %v414
  %543 = vst [vmem:[%s3 + $0xc] sm:$0xf] %v415
  %544 = vst [vmem:[%s3 + $0x10] sm:$0xf] %v416
  %545 = vst [vmem:[%s3 + $0x14] sm:$0xf] %v417
  %546 = vst [vmem:[%s3 + $0x18] sm:$0xf] %v418
  %547 = vst [vmem:[%s3 + $0x1c] sm:$0xf] %v419
  %548 = vst [vmem:[%s3 + $0x20] sm:$0xf] %v420
  %549 = vst [vmem:[%s3 + $0x24] sm:$0xf] %v421
  %550 = vst [vmem:[%s3 + $0x28] sm:$0xf] %v422
  %551 = vst [vmem:[%s3 + $0x2c] sm:$0xf] %v423
  %552 = vst [vmem:[%s3 + $0x30] sm:$0xf] %v424
  %553 = vst [vmem:[%s3 + $0x34] sm:$0xf] %v425
  %554 = vst [vmem:[%s3 + $0x38] sm:$0xf] %v426
  %555 = vst [vmem:[%s3 + $0x3c] sm:$0xf] %v427
  %556 = vst [vmem:[%s3 + $0x40] sm:$0xf] %v428
  %557 = vst [vmem:[%s3 + $0x44] sm:$0xf] %v429
  %558 = vst [vmem:[%s3 + $0x48] sm:$0xf] %v430
  %559 = vst [vmem:[%s3 + $0x4c] sm:$0xf] %v431
  %560 = vst [vmem:[%s3 + $0x50] sm:$0xf] %v432
  %561 = vst [vmem:[%s3 + $0x54] sm:$0xf] %v433
  %562 = vst [vmem:[%s3 + $0x58] sm:$0xf] %v434
  %563 = vst [vmem:[%s3 + $0x5c] sm:$0xf] %v435
  %564 = vst [vmem:[%s3 + $0x60] sm:$0xf] %v436
  %565 = vst [vmem:[%s3 + $0x64] sm:$0xf] %v437
  %566 = vst [vmem:[%s3 + $0x68] sm:$0xf] %v438
  %567 = vst [vmem:[%s3 + $0x6c] sm:$0xf] %v439
  %568 = vst [vmem:[%s3 + $0x70] sm:$0xf] %v440
  %569 = vst [vmem:[%s3 + $0x74] sm:$0xf] %v441
  %570 = vst [vmem:[%s3 + $0x78] sm:$0xf] %v442
  %571 = vst [vmem:[%s3 + $0x7c] sm:$0xf] %v443
  %572 = vst [vmem:[%s3 + $0x80] sm:$0xf] %v444
  %573 = vst [vmem:[%s3 + $0x84] sm:$0xf] %v445
  %574 = vst [vmem:[%s3 + $0x88] sm:$0xf] %v446
  %575 = vst [vmem:[%s3 + $0x8c] sm:$0xf] %v447
  %576 = vst [vmem:[%s3 + $0x90] sm:$0xf] %v448
  %577 = vst [vmem:[%s3 + $0x94] sm:$0xf] %v449
  %578 = vst [vmem:[%s3 + $0x98] sm:$0xf] %v450
  %579 = vst [vmem:[%s3 + $0x9c] sm:$0xf] %v451
  %580 = vst [vmem:[%s3 + $0xa0] sm:$0xf] %v452
  %581 = vst [vmem:[%s3 + $0xa4] sm:$0xf] %v453
  %582 = vst [vmem:[%s3 + $0xa8] sm:$0xf] %v454
  %583 = vst [vmem:[%s3 + $0xac] sm:$0xf] %v455
  %584 = vst [vmem:[%s3 + $0xb0] sm:$0xf] %v456
  %585 = vst [vmem:[%s3 + $0xb4] sm:$0xf] %v457
  %586 = vst [vmem:[%s3 + $0xb8] sm:$0xf] %v458
  %587 = vst [vmem:[%s3 + $0xbc] sm:$0xf] %v459
  %588 = vst [vmem:[%s3 + $0xc0] sm:$0xf] %v460
  %589 = vst [vmem:[%s3 + $0xc4] sm:$0xf] %v461
  %590 = vst [vmem:[%s3 + $0xc8] sm:$0xf] %v462
  %591 = vst [vmem:[%s3 + $0xcc] sm:$0xf] %v463
  %592 = vst [vmem:[%s3 + $0xd0] sm:$0xf] %v464
  %593 = vst [vmem:[%s3 + $0xd4] sm:$0xf] %v465
  %594 = vst [vmem:[%s3 + $0xd8] sm:$0xf] %v466
  %595 = vst [vmem:[%s3 + $0xdc] sm:$0xf] %v467
  %596 = vst [vmem:[%s3 + $0xe0] sm:$0xf] %v468
  %597 = vst [vmem:[%s3 + $0xe4] sm:$0xf] %v469
  %598 = vst [vmem:[%s3 + $0xe8] sm:$0xf] %v470
  %599 = vst [vmem:[%s3 + $0xec] sm:$0xf] %v471
  %600 = vst [vmem:[%s3 + $0xf0] sm:$0xf] %v472
  %601 = vst [vmem:[%s3 + $0xf4] sm:$0xf] %v473
  %602 = vst [vmem:[%s3 + $0xf8] sm:$0xf] %v474
  %603 = vst [vmem:[%s3 + $0xfc] sm:$0xf] %v475
  // Predicated region
  $region14: #{_lambda_.5} parent=0 // pred_check
    _
  $region15: #{_lambda_.5} parent=0 // pred_check_branch
    %605 = sbr.rel (0) target = $region17
  $region16: #{_lambda_.5} parent=0 // pred_region
    _
  $region17: #{_lambda_.5} parent=0 // pred_fallthru
    _
  // Predicated region
  $region18: #{_lambda_.5} parent=0 // pred_check
    _
  $region19: #{_lambda_.5} parent=0 // pred_check_branch
    %607 = sbr.rel (0) target = $region21
  $region20: #{_lambda_.5} parent=0 // pred_region
    _
  $region21: #{_lambda_.5} parent=0 // pred_fallthru
    _

// kernel: _lambda_.4
$region0: #{_lambda_.4}
  #allocation0 [shape = 'u32[]', space=smem, size = 0x4, offset = 0x4, fixed_abs, tag = 'smem constant byte address 0x4 - core index']
  #allocation1 [shape = 'u32[144,128]{1,0:T(1,128)}', space=vmem, size = 0x12000, scoped, tag = 'internal scratch']
  %s0 = inlined_call_operand.vmem [shape: bf16[36,18,128], index: 0, kind: input, shape index: {}]
  %s1 = inlined_call_operand.vmem [shape: bf16[1152,128], index: 1, kind: input, shape index: {}]
  %s2 = inlined_call_operand.vmem [shape: f32[1,128], index: 2, kind: input, shape index: {}]
  %s3 = inlined_call_operand.vmem [shape: f32[512,128], index: 3, kind: output, shape index: {0}]
  %s4 = inlined_call_operand.vmem [shape: f32[2,1,2,128], index: 4, kind: output, shape index: {1}]
  %5 = xla_tuple %s3, %s4
  %s6 = sld [smem:[#allocation0]]
  $region53: #{_lambda_.4} parent=0
    _
  %s8 = ssub.s32 1, %s6
  %s9 = scalar_select 0, %s8, %s6
  loop: start=0, step=1, limit=4
  $region2: #{_lambda_.4} parent=0 // loop_pre_header
    _
  $region3: #{_lambda_.4} parent=0 // loop_header
    %s11 = sphi 0, %s15
    %p12 = scmp.ge.s32.totalorder %s11, 4
    %s18 = sphi 0, %s30
    %s19 = sphi 0, %s26
    %s20 = sphi 0, %s18
    %s21 = sphi 0, %s19
    %s22 = sphi 0, %s20
    %s23 = sphi 0, %s21
    %s33 = sphi 0, %s35
    %s36 = sphi 0, %s33
    %s37 = sphi 0, %s36
    %s53 = sphi 0, %s37
    %s57 = sphi 0, %s57
    %s59 = sphi 0, %s57
    %s60 = sphi 0, %s59
    %s74 = sphi 0, %s60
    %s78 = sphi 0, %s78
    %s80 = sphi 0, %s78
    %s81 = sphi 0, %s80
    %s95 = sphi 0, %s81
    %s103 = sphi 0, %s105
    %s106 = sphi 0, %s103
    %s107 = sphi 0, %s106
    %s123 = sphi 0, %s107
    %s131 = sphi 0, %s133
    %s134 = sphi 0, %s131
    %s135 = sphi 0, %s134
    %s151 = sphi 0, %s135
  $region4: #{_lambda_.4} parent=0 // loop_header_branch
    %14 = sbr.rel (%p12) target = $region8
  $region5: #{_lambda_.4} parent=0 // loop_body
    %s16 = ssub.s32 %s11, 1
    %s17 = ssub.s32 %s11, 2
    %s24 = sadd.s32 1, %s19
    %p25 = scmp.ge.s32.totalorder %s24, 1
    %s26 = scalar_select %p25, 0, %s24
    %s27 = sadd.s32 1, %s18
    %s28 = scalar_select %p25, %s27, %s18
    %p29 = scmp.ge.s32.totalorder %s28, 2
    %s30 = scalar_select %p29, 0, %s28
    %s31 = ssub.s32 %s18, %s30
    %p32 = scmp.eq.s32.totalorder %s31, 0
    %s34 = sadd.s32 %s33, 1
    %s35 = scalar_select %p32, %s33, %s34
    %p38 = pneg %p32
    %p39 = scmp.eq.s32.totalorder %s11, 1
    %p40 = por %p38, %p39
    %p41 = scmp.ne.s32.totalorder %s33, %s36
    %p42 = scmp.eq.s32.totalorder %s11, 0
    %p43 = por %p41, %p42
    %p44 = scmp.ne.s32.totalorder %s33, %s36
    %p45 = scmp.eq.s32.totalorder %s16, 1
    %p46 = por %p44, %p45
    %p47 = scmp.ne.s32.totalorder %s36, %s37
    %p48 = scmp.eq.s32.totalorder %s16, 0
    %p49 = por %p47, %p48
    %p50 = scmp.ne.s32.totalorder %s36, %s37
    %p51 = scmp.eq.s32.totalorder %s17, 1
    %p52 = por %p50, %p51
    %p54 = scmp.ne.s32.totalorder %s37, %s53
    %p55 = scmp.eq.s32.totalorder %s17, 0
    %p56 = por %p54, %p55
    %s58 = sadd.s32 %s57, 1
    %p61 = scmp.eq.s32.totalorder %s11, 1
    %p62 = scmp.ne.s32.totalorder %s57, %s59
    %p63 = scmp.eq.s32.totalorder %s11, 0
    %p64 = por %p62, %p63
    %p65 = scmp.ne.s32.totalorder %s57, %s59
    %p66 = scmp.eq.s32.totalorder %s16, 1
    %p67 = por %p65, %p66
    %p68 = scmp.ne.s32.totalorder %s59, %s60
    %p69 = scmp.eq.s32.totalorder %s16, 0
    %p70 = por %p68, %p69
    %p71 = scmp.ne.s32.totalorder %s59, %s60
    %p72 = scmp.eq.s32.totalorder %s17, 1
    %p73 = por %p71, %p72
    %p75 = scmp.ne.s32.totalorder %s60, %s74
    %p76 = scmp.eq.s32.totalorder %s17, 0
    %p77 = por %p75, %p76
    %s79 = sadd.s32 %s78, 1
    %p82 = scmp.eq.s32.totalorder %s11, 1
    %p83 = scmp.ne.s32.totalorder %s78, %s80
    %p84 = scmp.eq.s32.totalorder %s11, 0
    %p85 = por %p83, %p84
    %p86 = scmp.ne.s32.totalorder %s78, %s80
    %p87 = scmp.eq.s32.totalorder %s16, 1
    %p88 = por %p86, %p87
    %p89 = scmp.ne.s32.totalorder %s80, %s81
    %p90 = scmp.eq.s32.totalorder %s16, 0
    %p91 = por %p89, %p90
    %p92 = scmp.ne.s32.totalorder %s80, %s81
    %p93 = scmp.eq.s32.totalorder %s17, 1
    %p94 = por %p92, %p93
    %p96 = scmp.ne.s32.totalorder %s81, %s95
    %p97 = scmp.eq.s32.totalorder %s17, 0
    %p98 = por %p96, %p97
    %s99 = sadd.s32 %s18, %s19
    %s100 = sadd.s32 %s30, %s26
    %s101 = ssub.s32 %s99, %s100
    %p102 = scmp.eq.s32.totalorder %s101, 0
    %s104 = sadd.s32 %s103, 1
    %s105 = scalar_select %p102, %s103, %s104
    %p108 = pneg %p102
    %p109 = scmp.eq.s32.totalorder %s11, 1
    %p110 = por %p108, %p109
    %p111 = scmp.ne.s32.totalorder %s103, %s106
    %p112 = scmp.eq.s32.totalorder %s11, 0
    %p113 = por %p111, %p112
    %p114 = scmp.ne.s32.totalorder %s103, %s106
    %p115 = scmp.eq.s32.totalorder %s16, 1
    %p116 = por %p114, %p115
    %p117 = scmp.ne.s32.totalorder %s106, %s107
    %p118 = scmp.eq.s32.totalorder %s16, 0
    %p119 = por %p117, %p118
    %p120 = scmp.ne.s32.totalorder %s106, %s107
    %p121 = scmp.eq.s32.totalorder %s17, 1
    %p122 = por %p120, %p121
    %p124 = scmp.ne.s32.totalorder %s107, %s123
    %p125 = scmp.eq.s32.totalorder %s17, 0
    %p126 = por %p124, %p125
    %s127 = ssub.s32 %s18, %s30
    %s128 = ssub.s32 %s19, %s26
    %s129 = sor.u32 %s127, %s128
    %p130 = scmp.eq.s32.totalorder %s129, 0
    %s132 = sadd.s32 %s131, 1
    %s133 = scalar_select %p130, %s131, %s132
    %p136 = pneg %p130
    %p137 = scmp.eq.s32.totalorder %s11, 1
    %p138 = por %p136, %p137
    %p139 = scmp.ne.s32.totalorder %s131, %s134
    %p140 = scmp.eq.s32.totalorder %s11, 0
    %p141 = por %p139, %p140
    %p142 = scmp.ne.s32.totalorder %s131, %s134
    %p143 = scmp.eq.s32.totalorder %s16, 1
    %p144 = por %p142, %p143
    %p145 = scmp.ne.s32.totalorder %s134, %s135
    %p146 = scmp.eq.s32.totalorder %s16, 0
    %p147 = por %p145, %p146
    %p148 = scmp.ne.s32.totalorder %s134, %s135
    %p149 = scmp.eq.s32.totalorder %s17, 1
    %p150 = por %p148, %p149
    %p152 = scmp.ne.s32.totalorder %s135, %s151
    %p153 = scmp.eq.s32.totalorder %s17, 0
    %p154 = por %p152, %p153
    %p155 = scmp.le.s32.totalorder 1, %s11
    %p156 = scmp.lt.s32.totalorder %s11, 3
    %p157 = pnand %p155, %p156
    %p158 = pneg %p157
    // Predicated region
    $region9: #{_lambda_.4} parent=5 // pred_check
      _
    $region10: #{_lambda_.4} parent=5 // pred_check_branch
      %160 = sbr.rel (%p157) target = $region12
    $region11: #{_lambda_.4} parent=5 // pred_region
      %s161 = ssub.s32 %s11, 1
      // Predicated region
      $region13: #{_lambda_.4} parent=11 // pred_check
        %p162 = pneg %p70
      $region14: #{_lambda_.4} parent=11 // pred_check_branch
        %164 = sbr.rel (%p162) target = $region16
      $region15: #{_lambda_.4} parent=11 // pred_region
        _
      $region16: #{_lambda_.4} parent=11 // pred_fallthru
        _
      // Predicated region
      $region17: #{_lambda_.4} parent=11 // pred_check
        %p165 = pneg %p91
      $region18: #{_lambda_.4} parent=11 // pred_check_branch
        %167 = sbr.rel (%p165) target = $region20
      $region19: #{_lambda_.4} parent=11 // pred_region
        _
      $region20: #{_lambda_.4} parent=11 // pred_fallthru
        _
    $region12: #{_lambda_.4} parent=5 // pred_fallthru
      _
    %p168 = scmp.lt.s32.totalorder %s11, 2
    // Predicated region
    $region21: #{_lambda_.4} parent=5 // pred_check
      %p169 = pneg %p168
    $region22: #{_lambda_.4} parent=5 // pred_check_branch
      %171 = sbr.rel (%p169) target = $region24
    $region23: #{_lambda_.4} parent=5 // pred_region
      // Predicated region
      $region25: #{_lambda_.4} parent=23 // pred_check
        %p172 = pneg %p43
      $region26: #{_lambda_.4} parent=23 // pred_check_branch
        %174 = sbr.rel (%p172) target = $region28
      $region27: #{_lambda_.4} parent=23 // pred_region
        %s175 = smul.u32 18, %s18
        %p176 = scmp.lt.s32.totalorder %s175, 35
        %s177 = scalar_select %p176, %s175, 35
        %s178 = smul.addr %s177, 3
        %s179 = smul.addr %s178, 4
        %s180 = scalar_lea.vmem %s0, %s179
        %s181 = smul.u32 18, %s18
      $region28: #{_lambda_.4} parent=23 // pred_fallthru
        _
    $region24: #{_lambda_.4} parent=5 // pred_fallthru
      _
    %p182 = scmp.le.s32.totalorder 1, %s11
    %p183 = scmp.lt.s32.totalorder %s11, 3
    %p184 = pnand %p182, %p183
    %p185 = pneg %p184
    // Predicated region
    $region29: #{_lambda_.4} parent=5 // pred_check
      _
    $region30: #{_lambda_.4} parent=5 // pred_check_branch
      %187 = sbr.rel (%p184) target = $region32
    $region31: #{_lambda_.4} parent=5 // pred_region
      %s188 = ssub.s32 %s11, 1
      %s189 = smul.u32 18, %s20
      %p190 = scmp.lt.s32.totalorder %s189, 35
      %s191 = scalar_select %p190, %s189, 35
      %s192 = smul.addr %s191, 3
      %s193 = smul.addr %s192, 4
      %s194 = scalar_lea.vmem %s0, %s193
      %p195 = pneg %p49
      %p196 = pneg %p46
      %p197 = pneg %p70
      %p198 = pneg %p67
      %p199 = pneg %p91
      %p200 = pneg %p88
      %p201 = pneg %p119
      %p202 = pneg %p116
      %s203 = sadd.s32 %s20, %s21
      %s204 = smul.u32 32, %s203
      %p205 = scmp.lt.s32.totalorder %s204, 63
      %s206 = scalar_select %p205, %s204, 63
      %s207 = smul.addr %s206, 8
      %s208 = scalar_lea.vmem %s3, %s207
      %p209 = pneg %p147
      %p210 = pneg %p144
      %p211 = scmp.lt.s32.totalorder %s20, 1
      %s212 = scalar_select %p211, %s20, 1
      %p213 = scmp.lt.s32.totalorder %s21, 0
      %s214 = scalar_select %p213, %s21, 0
      %s215 = sadd.s32 %s214, %s212
      %s216 = smul.addr %s215, 2
      %s217 = scalar_lea.vmem %s4, %s216
      %s218 = smul.u32 18, %s20
      %p219 = scmp.lt.s32.totalorder %s218, 35
      %s220 = scalar_select %p219, %s218, 35
      %s221 = smul.addr %s220, 3
      %s222 = smul.addr %s221, 4
      %s223 = scalar_lea.vmem %s0, %s222
      %s224 = smul.u32 18, %s20
      %s225 = sadd.s32 %s20, %s21
      %s226 = smul.u32 32, %s225
      %p227 = scmp.lt.s32.totalorder %s226, 63
      %s228 = scalar_select %p227, %s226, 63
      %s229 = smul.addr %s228, 8
      %s230 = scalar_lea.vmem %s3, %s229
      %s231 = sadd.s32 %s20, %s21
      %s232 = smul.u32 32, %s231
      %p233 = scmp.lt.s32.totalorder %s20, 1
      %s234 = scalar_select %p233, %s20, 1
      %p235 = scmp.lt.s32.totalorder %s21, 0
      %s236 = scalar_select %p235, %s21, 0
      %s237 = sadd.s32 %s236, %s234
      %s238 = smul.addr %s237, 2
      %s239 = scalar_lea.vmem %s4, %s238
      %s241 = smul.u32 %s21, 16
      %s242 = smul.u32 %s241, 3
      %s243 = smul.addr %s242, 4
      %s244 = scalar_lea.vmem %s223, %s243
      %v245 = vld [vmem:[%s244] sm:$0xf]
      %v246 = vld [vmem:[%s244 + $0x4] sm:$0xf]
      %v247 = vld [vmem:[%s244 + $0x8] sm:$0x1]
      %v248 = vld [vmem:[%s244 + $0xc] sm:$0xf]
      %v249 = vld [vmem:[%s244 + $0x10] sm:$0xf]
      %v250 = vld [vmem:[%s244 + $0x14] sm:$0x1]
      %v251 = vld [vmem:[%s244 + $0x18] sm:$0xf]
      %v252 = vld [vmem:[%s244 + $0x1c] sm:$0xf]
      %v253 = vld [vmem:[%s244 + $0x20] sm:$0x1]
      %v254 = vld [vmem:[%s244 + $0x24] sm:$0xf]
      %v255 = vld [vmem:[%s244 + $0x28] sm:$0xf]
      %v256 = vld [vmem:[%s244 + $0x2c] sm:$0x1]
      %v257 = vld [vmem:[%s244 + $0x30] sm:$0xf]
      %v258 = vld [vmem:[%s244 + $0x34] sm:$0xf]
      %v259 = vld [vmem:[%s244 + $0x38] sm:$0x1]
      %v260 = vld [vmem:[%s244 + $0x3c] sm:$0xf]
      %v261 = vld [vmem:[%s244 + $0x40] sm:$0xf]
      %v262 = vld [vmem:[%s244 + $0x44] sm:$0x1]
      %v263 = vld [vmem:[%s244 + $0x48] sm:$0xf]
      %v264 = vld [vmem:[%s244 + $0x4c] sm:$0xf]
      %v265 = vld [vmem:[%s244 + $0x50] sm:$0x1]
      %v266 = vld [vmem:[%s244 + $0x54] sm:$0xf]
      %v267 = vld [vmem:[%s244 + $0x58] sm:$0xf]
      %v268 = vld [vmem:[%s244 + $0x5c] sm:$0x1]
      %v269 = vld [vmem:[%s244 + $0x60] sm:$0xf]
      %v270 = vld [vmem:[%s244 + $0x64] sm:$0xf]
      %v271 = vld [vmem:[%s244 + $0x68] sm:$0x1]
      %v272 = vld [vmem:[%s244 + $0x6c] sm:$0xf]
      %v273 = vld [vmem:[%s244 + $0x70] sm:$0xf]
      %v274 = vld [vmem:[%s244 + $0x74] sm:$0x1]
      %v275 = vld [vmem:[%s244 + $0x78] sm:$0xf]
      %v276 = vld [vmem:[%s244 + $0x7c] sm:$0xf]
      %v277 = vld [vmem:[%s244 + $0x80] sm:$0x1]
      %v278 = vld [vmem:[%s244 + $0x84] sm:$0xf]
      %v279 = vld [vmem:[%s244 + $0x88] sm:$0xf]
      %v280 = vld [vmem:[%s244 + $0x8c] sm:$0x1]
      %v281 = vld [vmem:[%s244 + $0x90] sm:$0xf]
      %v282 = vld [vmem:[%s244 + $0x94] sm:$0xf]
      %v283 = vld [vmem:[%s244 + $0x98] sm:$0x1]
      %v284 = vld [vmem:[%s244 + $0x9c] sm:$0xf]
      %v285 = vld [vmem:[%s244 + $0xa0] sm:$0xf]
      %v286 = vld [vmem:[%s244 + $0xa4] sm:$0x1]
      %v287 = vld [vmem:[%s244 + $0xa8] sm:$0xf]
      %v288 = vld [vmem:[%s244 + $0xac] sm:$0xf]
      %v289 = vld [vmem:[%s244 + $0xb0] sm:$0x1]
      %v290 = vld [vmem:[%s244 + $0xb4] sm:$0xf]
      %v291 = vld [vmem:[%s244 + $0xb8] sm:$0xf]
      %v292 = vld [vmem:[%s244 + $0xbc] sm:$0x1]
      %v293 = vld [vmem:[%s244 + $0xc0] sm:$0xf]
      %v294 = vld [vmem:[%s244 + $0xc4] sm:$0xf]
      %v295 = vld [vmem:[%s244 + $0xc8] sm:$0x1]
      %v296 = vld [vmem:[%s244 + $0xcc] sm:$0xf]
      %v297 = vld [vmem:[%s244 + $0xd0] sm:$0xf]
      %v298 = vld [vmem:[%s244 + $0xd4] sm:$0x1]
      %v331 = vunpack.c.l.b16 %v245
      %v332 = vunpack.c.l.b16 %v246
      %v333 = vunpack.c.l.b16 %v248
      %v334 = vunpack.c.l.b16 %v249
      %v335 = vunpack.c.l.b16 %v251
      %v336 = vunpack.c.l.b16 %v252
      %v337 = vunpack.c.l.b16 %v254
      %v338 = vunpack.c.l.b16 %v255
      %v339 = vunpack.c.l.b16 %v257
      %v340 = vunpack.c.l.b16 %v258
      %v341 = vunpack.c.l.b16 %v260
      %v342 = vunpack.c.l.b16 %v261
      %v343 = vunpack.c.l.b16 %v263
      %v344 = vunpack.c.l.b16 %v264
      %v345 = vunpack.c.l.b16 %v266
      %v346 = vunpack.c.l.b16 %v267
      %v347 = vunpack.c.l.b16 %v269
      %v348 = vunpack.c.l.b16 %v270
      %v349 = vunpack.c.l.b16 %v272
      %v350 = vunpack.c.l.b16 %v273
      %v351 = vunpack.c.l.b16 %v275
      %v352 = vunpack.c.l.b16 %v276
      %v353 = vunpack.c.l.b16 %v278
      %v354 = vunpack.c.l.b16 %v279
      %v355 = vunpack.c.l.b16 %v281
      %v356 = vunpack.c.l.b16 %v282
      %v357 = vunpack.c.l.b16 %v284
      %v358 = vunpack.c.l.b16 %v285
      %v359 = vunpack.c.l.b16 %v287
      %v360 = vunpack.c.l.b16 %v288
      %v361 = vunpack.c.l.b16 %v290
      %v362 = vunpack.c.l.b16 %v291
      %v363 = vpack.c.b16 %v332, %v331
      %v364 = vpack.c.b16 %v334, %v333
      %v365 = vpack.c.b16 %v336, %v335
      %v366 = vpack.c.b16 %v338, %v337
      %v367 = vpack.c.b16 %v340, %v339
      %v368 = vpack.c.b16 %v342, %v341
      %v369 = vpack.c.b16 %v344, %v343
      %v370 = vpack.c.b16 %v346, %v345
      %v371 = vpack.c.b16 %v348, %v347
      %v372 = vpack.c.b16 %v350, %v349
      %v373 = vpack.c.b16 %v352, %v351
      %v374 = vpack.c.b16 %v354, %v353
      %v375 = vpack.c.b16 %v356, %v355
      %v376 = vpack.c.b16 %v358, %v357
      %v377 = vpack.c.b16 %v360, %v359
      %v378 = vpack.c.b16 %v362, %v361
      %v411 = vunpack.c.l.b16 %v247
      %v412 = vunpack.c.l.b16 %v250
      %v413 = vunpack.c.l.b16 %v253
      %v414 = vunpack.c.l.b16 %v256
      %v415 = vunpack.c.l.b16 %v259
      %v416 = vunpack.c.l.b16 %v262
      %v417 = vunpack.c.l.b16 %v265
      %v418 = vunpack.c.l.b16 %v268
      %v419 = vunpack.c.l.b16 %v271
      %v420 = vunpack.c.l.b16 %v274
      %v421 = vunpack.c.l.b16 %v277
      %v422 = vunpack.c.l.b16 %v280
      %v423 = vunpack.c.l.b16 %v283
      %v424 = vunpack.c.l.b16 %v286
      %v425 = vunpack.c.l.b16 %v289
      %v426 = vunpack.c.l.b16 %v292
      %v427 = vpack.c.b16 %v411, %v411
      %v428 = vpack.c.b16 %v412, %v412
      %v429 = vpack.c.b16 %v413, %v413
      %v430 = vpack.c.b16 %v414, %v414
      %v431 = vpack.c.b16 %v415, %v415
      %v432 = vpack.c.b16 %v416, %v416
      %v433 = vpack.c.b16 %v417, %v417
      %v434 = vpack.c.b16 %v418, %v418
      %v435 = vpack.c.b16 %v419, %v419
      %v436 = vpack.c.b16 %v420, %v420
      %v437 = vpack.c.b16 %v421, %v421
      %v438 = vpack.c.b16 %v422, %v422
      %v439 = vpack.c.b16 %v423, %v423
      %v440 = vpack.c.b16 %v424, %v424
      %v441 = vpack.c.b16 %v425, %v425
      %v442 = vpack.c.b16 %v426, %v426
      %vm443 = vsmask.f32 7424
      %v445 = vshrl.u32 %v363, 16
      %v447 = vshll.u32 %v363, 16
      %v449 = vrot.slane %v447, 1
      %v450 = vor.u32 %v445, %v449
      %v452 = vshll.u32 %v427, 16
      %v454 = vrot.slane %v452, 1
      %v455 = vsel %vm443, %v450, %v454
      %v457 = vshrl.u32 %v364, 16
      %v459 = vshll.u32 %v364, 16
      %v461 = vrot.slane %v459, 1
      %v462 = vor.u32 %v457, %v461
      %v464 = vshll.u32 %v428, 16
      %v466 = vrot.slane %v464, 1
      %v467 = vsel %vm443, %v462, %v466
      %v469 = vshrl.u32 %v365, 16
      %v471 = vshll.u32 %v365, 16
      %v473 = vrot.slane %v471, 1
      %v474 = vor.u32 %v469, %v473
      %v476 = vshll.u32 %v429, 16
      %v478 = vrot.slane %v476, 1
      %v479 = vsel %vm443, %v474, %v478
      %v481 = vshrl.u32 %v366, 16
      %v483 = vshll.u32 %v366, 16
      %v485 = vrot.slane %v483, 1
      %v486 = vor.u32 %v481, %v485
      %v488 = vshll.u32 %v430, 16
      %v490 = vrot.slane %v488, 1
      %v491 = vsel %vm443, %v486, %v490
      %v493 = vshrl.u32 %v367, 16
      %v495 = vshll.u32 %v367, 16
      %v497 = vrot.slane %v495, 1
      %v498 = vor.u32 %v493, %v497
      %v500 = vshll.u32 %v431, 16
      %v502 = vrot.slane %v500, 1
      %v503 = vsel %vm443, %v498, %v502
      %v505 = vshrl.u32 %v368, 16
      %v507 = vshll.u32 %v368, 16
      %v509 = vrot.slane %v507, 1
      %v510 = vor.u32 %v505, %v509
      %v512 = vshll.u32 %v432, 16
      %v514 = vrot.slane %v512, 1
      %v515 = vsel %vm443, %v510, %v514
      %v517 = vshrl.u32 %v369, 16
      %v519 = vshll.u32 %v369, 16
      %v521 = vrot.slane %v519, 1
      %v522 = vor.u32 %v517, %v521
      %v524 = vshll.u32 %v433, 16
      %v526 = vrot.slane %v524, 1
      %v527 = vsel %vm443, %v522, %v526
      %v529 = vshrl.u32 %v370, 16
      %v531 = vshll.u32 %v370, 16
      %v533 = vrot.slane %v531, 1
      %v534 = vor.u32 %v529, %v533
      %v536 = vshll.u32 %v434, 16
      %v538 = vrot.slane %v536, 1
      %v539 = vsel %vm443, %v534, %v538
      %v541 = vshrl.u32 %v371, 16
      %v543 = vshll.u32 %v371, 16
      %v545 = vrot.slane %v543, 1
      %v546 = vor.u32 %v541, %v545
      %v548 = vshll.u32 %v435, 16
      %v550 = vrot.slane %v548, 1
      %v551 = vsel %vm443, %v546, %v550
      %v553 = vshrl.u32 %v372, 16
      %v555 = vshll.u32 %v372, 16
      %v557 = vrot.slane %v555, 1
      %v558 = vor.u32 %v553, %v557
      %v560 = vshll.u32 %v436, 16
      %v562 = vrot.slane %v560, 1
      %v563 = vsel %vm443, %v558, %v562
      %v565 = vshrl.u32 %v373, 16
      %v567 = vshll.u32 %v373, 16
      %v569 = vrot.slane %v567, 1
      %v570 = vor.u32 %v565, %v569
      %v572 = vshll.u32 %v437, 16
      %v574 = vrot.slane %v572, 1
      %v575 = vsel %vm443, %v570, %v574
      %v577 = vshrl.u32 %v374, 16
      %v579 = vshll.u32 %v374, 16
      %v581 = vrot.slane %v579, 1
      %v582 = vor.u32 %v577, %v581
      %v584 = vshll.u32 %v438, 16
      %v586 = vrot.slane %v584, 1
      %v587 = vsel %vm443, %v582, %v586
      %v589 = vshrl.u32 %v375, 16
      %v591 = vshll.u32 %v375, 16
      %v593 = vrot.slane %v591, 1
      %v594 = vor.u32 %v589, %v593
      %v596 = vshll.u32 %v439, 16
      %v598 = vrot.slane %v596, 1
      %v599 = vsel %vm443, %v594, %v598
      %v601 = vshrl.u32 %v376, 16
      %v603 = vshll.u32 %v376, 16
      %v605 = vrot.slane %v603, 1
      %v606 = vor.u32 %v601, %v605
      %v608 = vshll.u32 %v440, 16
      %v610 = vrot.slane %v608, 1
      %v611 = vsel %vm443, %v606, %v610
      %v613 = vshrl.u32 %v377, 16
      %v615 = vshll.u32 %v377, 16
      %v617 = vrot.slane %v615, 1
      %v618 = vor.u32 %v613, %v617
      %v620 = vshll.u32 %v441, 16
      %v622 = vrot.slane %v620, 1
      %v623 = vsel %vm443, %v618, %v622
      %v625 = vshrl.u32 %v378, 16
      %v627 = vshll.u32 %v378, 16
      %v629 = vrot.slane %v627, 1
      %v630 = vor.u32 %v625, %v629
      %v632 = vshll.u32 %v442, 16
      %v634 = vrot.slane %v632, 1
      %v635 = vsel %vm443, %v630, %v634
      %vm652 = vcmask 1046528
      %v653 = vrot.slane %v363, 1
      %v654 = vrot.slane %v427, 1
      %v655 = vsel %vm652, %v653, %v654
      %v656 = vrot.slane %v364, 1
      %v657 = vrot.slane %v428, 1
      %v658 = vsel %vm652, %v656, %v657
      %v659 = vrot.slane %v365, 1
      %v660 = vrot.slane %v429, 1
      %v661 = vsel %vm652, %v659, %v660
      %v662 = vrot.slane %v366, 1
      %v663 = vrot.slane %v430, 1
      %v664 = vsel %vm652, %v662, %v663
      %v665 = vrot.slane %v367, 1
      %v666 = vrot.slane %v431, 1
      %v667 = vsel %vm652, %v665, %v666
      %v668 = vrot.slane %v368, 1
      %v669 = vrot.slane %v432, 1
      %v670 = vsel %vm652, %v668, %v669
      %v671 = vrot.slane %v369, 1
      %v672 = vrot.slane %v433, 1
      %v673 = vsel %vm652, %v671, %v672
      %v674 = vrot.slane %v370, 1
      %v675 = vrot.slane %v434, 1
      %v676 = vsel %vm652, %v674, %v675
      %v677 = vrot.slane %v371, 1
      %v678 = vrot.slane %v435, 1
      %v679 = vsel %vm652, %v677, %v678
      %v680 = vrot.slane %v372, 1
      %v681 = vrot.slane %v436, 1
      %v682 = vsel %vm652, %v680, %v681
      %v683 = vrot.slane %v373, 1
      %v684 = vrot.slane %v437, 1
      %v685 = vsel %vm652, %v683, %v684
      %v686 = vrot.slane %v374, 1
      %v687 = vrot.slane %v438, 1
      %v688 = vsel %vm652, %v686, %v687
      %v689 = vrot.slane %v375, 1
      %v690 = vrot.slane %v439, 1
      %v691 = vsel %vm652, %v689, %v690
      %v692 = vrot.slane %v376, 1
      %v693 = vrot.slane %v440, 1
      %v694 = vsel %vm652, %v692, %v693
      %v695 = vrot.slane %v377, 1
      %v696 = vrot.slane %v441, 1
      %v697 = vsel %vm652, %v695, %v696
      %v698 = vrot.slane %v378, 1
      %v699 = vrot.slane %v442, 1
      %v700 = vsel %vm652, %v698, %v699
      %v719 = vunpack.c.l.b16 %v293
      %v720 = vunpack.c.l.b16 %v294
      %v721 = vpack.c.b16 %v720, %v719
      %v724 = vunpack.c.l.b16 %v295
      %v725 = vpack.c.b16 %v724, %v724
      %v727 = vshrl.u32 %v721, 16
      %v729 = vshll.u32 %v721, 16
      %v731 = vrot.slane %v729, 1
      %v732 = vor.u32 %v727, %v731
      %v734 = vshll.u32 %v725, 16
      %v736 = vrot.slane %v734, 1
      %v737 = vsel %vm443, %v732, %v736
      %v739 = vrot.slane %v721, 1
      %v740 = vrot.slane %v725, 1
      %v741 = vsel %vm652, %v739, %v740
      %v745 = vunpack.c.l.b16 %v296
      %v746 = vunpack.c.l.b16 %v297
      %v747 = vpack.c.b16 %v746, %v745
      %v750 = vunpack.c.l.b16 %v298
      %v751 = vpack.c.b16 %v750, %v750
      %v753 = vshrl.u32 %v747, 16
      %v755 = vshll.u32 %v747, 16
      %v757 = vrot.slane %v755, 1
      %v758 = vor.u32 %v753, %v757
      %v760 = vshll.u32 %v751, 16
      %v762 = vrot.slane %v760, 1
      %v763 = vsel %vm443, %v758, %v762
      %v765 = vrot.slane %v747, 1
      %v766 = vrot.slane %v751, 1
      %v767 = vsel %vm652, %v765, %v766
      %v769 = vld [vmem:[%s1] sm:$0xf]
      %v770 = vld [vmem:[%s1 + $0x4] sm:$0xf]
      %v771 = vld [vmem:[%s1 + $0x8] sm:$0xf]
      %v772 = vld [vmem:[%s1 + $0xc] sm:$0xf]
      %v773 = vld [vmem:[%s1 + $0x10] sm:$0xf]
      %v774 = vld [vmem:[%s1 + $0x14] sm:$0xf]
      %v775 = vld [vmem:[%s1 + $0x18] sm:$0xf]
      %v776 = vld [vmem:[%s1 + $0x1c] sm:$0xf]
      %v777 = vld [vmem:[%s1 + $0x20] sm:$0xf]
      %v778 = vld [vmem:[%s1 + $0x24] sm:$0xf]
      %v779 = vld [vmem:[%s1 + $0x28] sm:$0xf]
      %v780 = vld [vmem:[%s1 + $0x2c] sm:$0xf]
      %v781 = vld [vmem:[%s1 + $0x30] sm:$0xf]
      %v782 = vld [vmem:[%s1 + $0x34] sm:$0xf]
      %v783 = vld [vmem:[%s1 + $0x38] sm:$0xf]
      %v784 = vld [vmem:[%s1 + $0x3c] sm:$0xf]
      %v785 = vld [vmem:[%s1 + $0x40] sm:$0xf]
      %v786 = vld [vmem:[%s1 + $0x44] sm:$0xf]
      %v787 = vld [vmem:[%s1 + $0x48] sm:$0xf]
      %v788 = vld [vmem:[%s1 + $0x4c] sm:$0xf]
      %v789 = vld [vmem:[%s1 + $0x50] sm:$0xf]
      %v790 = vld [vmem:[%s1 + $0x54] sm:$0xf]
      %v791 = vld [vmem:[%s1 + $0x58] sm:$0xf]
      %v792 = vld [vmem:[%s1 + $0x5c] sm:$0xf]
      %v793 = vld [vmem:[%s1 + $0x60] sm:$0xf]
      %v794 = vld [vmem:[%s1 + $0x64] sm:$0xf]
      %v795 = vld [vmem:[%s1 + $0x68] sm:$0xf]
      %v796 = vld [vmem:[%s1 + $0x6c] sm:$0xf]
      %v797 = vld [vmem:[%s1 + $0x70] sm:$0xf]
      %v798 = vld [vmem:[%s1 + $0x74] sm:$0xf]
      %v799 = vld [vmem:[%s1 + $0x78] sm:$0xf]
      %v800 = vld [vmem:[%s1 + $0x7c] sm:$0xf]
      %v801 = vld [vmem:[%s1 + $0x80] sm:$0xf]
      %v802 = vld [vmem:[%s1 + $0x84] sm:$0xf]
      %v803 = vld [vmem:[%s1 + $0x88] sm:$0xf]
      %v804 = vld [vmem:[%s1 + $0x8c] sm:$0xf]
      %v805 = vld [vmem:[%s1 + $0x90] sm:$0xf]
      %v806 = vld [vmem:[%s1 + $0x94] sm:$0xf]
      %v807 = vld [vmem:[%s1 + $0x98] sm:$0xf]
      %v808 = vld [vmem:[%s1 + $0x9c] sm:$0xf]
      %v809 = vld [vmem:[%s1 + $0xa0] sm:$0xf]
      %v810 = vld [vmem:[%s1 + $0xa4] sm:$0xf]
      %v811 = vld [vmem:[%s1 + $0xa8] sm:$0xf]
      %v812 = vld [vmem:[%s1 + $0xac] sm:$0xf]
      %v813 = vld [vmem:[%s1 + $0xb0] sm:$0xf]
      %v814 = vld [vmem:[%s1 + $0xb4] sm:$0xf]
      %v815 = vld [vmem:[%s1 + $0xb8] sm:$0xf]
      %v816 = vld [vmem:[%s1 + $0xbc] sm:$0xf]
      %v817 = vld [vmem:[%s1 + $0xc0] sm:$0xf]
      %v818 = vld [vmem:[%s1 + $0xc4] sm:$0xf]
      %v819 = vld [vmem:[%s1 + $0xc8] sm:$0xf]
      %v820 = vld [vmem:[%s1 + $0xcc] sm:$0xf]
      %v821 = vld [vmem:[%s1 + $0xd0] sm:$0xf]
      %v822 = vld [vmem:[%s1 + $0xd4] sm:$0xf]
      %v823 = vld [vmem:[%s1 + $0xd8] sm:$0xf]
      %v824 = vld [vmem:[%s1 + $0xdc] sm:$0xf]
      %v825 = vld [vmem:[%s1 + $0xe0] sm:$0xf]
      %v826 = vld [vmem:[%s1 + $0xe4] sm:$0xf]
      %v827 = vld [vmem:[%s1 + $0xe8] sm:$0xf]
      %v828 = vld [vmem:[%s1 + $0xec] sm:$0xf]
      %v829 = vld [vmem:[%s1 + $0xf0] sm:$0xf]
      %v830 = vld [vmem:[%s1 + $0xf4] sm:$0xf]
      %v831 = vld [vmem:[%s1 + $0xf8] sm:$0xf]
      %v832 = vld [vmem:[%s1 + $0xfc] sm:$0xf]
      %v833 = vld [vmem:[%s1 + $0x100] sm:$0xf]
      %v834 = vld [vmem:[%s1 + $0x104] sm:$0xf]
      %v835 = vld [vmem:[%s1 + $0x108] sm:$0xf]
      %v836 = vld [vmem:[%s1 + $0x10c] sm:$0xf]
      %v837 = vld [vmem:[%s1 + $0x110] sm:$0xf]
      %v838 = vld [vmem:[%s1 + $0x114] sm:$0xf]
      %v839 = vld [vmem:[%s1 + $0x118] sm:$0xf]
      %v840 = vld [vmem:[%s1 + $0x11c] sm:$0xf]
      %v841 = vld [vmem:[%s1 + $0x120] sm:$0xf]
      %v842 = vld [vmem:[%s1 + $0x124] sm:$0xf]
      %v843 = vld [vmem:[%s1 + $0x128] sm:$0xf]
      %v844 = vld [vmem:[%s1 + $0x12c] sm:$0xf]
      %v845 = vld [vmem:[%s1 + $0x130] sm:$0xf]
      %v846 = vld [vmem:[%s1 + $0x134] sm:$0xf]
      %v847 = vld [vmem:[%s1 + $0x138] sm:$0xf]
      %v848 = vld [vmem:[%s1 + $0x13c] sm:$0xf]
      %v849 = vld [vmem:[%s1 + $0x140] sm:$0xf]
      %v850 = vld [vmem:[%s1 + $0x144] sm:$0xf]
      %v851 = vld [vmem:[%s1 + $0x148] sm:$0xf]
      %v852 = vld [vmem:[%s1 + $0x14c] sm:$0xf]
      %v853 = vld [vmem:[%s1 + $0x150] sm:$0xf]
      %v854 = vld [vmem:[%s1 + $0x154] sm:$0xf]
      %v855 = vld [vmem:[%s1 + $0x158] sm:$0xf]
      %v856 = vld [vmem:[%s1 + $0x15c] sm:$0xf]
      %v857 = vld [vmem:[%s1 + $0x160] sm:$0xf]
      %v858 = vld [vmem:[%s1 + $0x164] sm:$0xf]
      %v859 = vld [vmem:[%s1 + $0x168] sm:$0xf]
      %v860 = vld [vmem:[%s1 + $0x16c] sm:$0xf]
      %v861 = vld [vmem:[%s1 + $0x170] sm:$0xf]
      %v862 = vld [vmem:[%s1 + $0x174] sm:$0xf]
      %v863 = vld [vmem:[%s1 + $0x178] sm:$0xf]
      %v864 = vld [vmem:[%s1 + $0x17c] sm:$0xf]
      %v865 = vld [vmem:[%s1 + $0x180] sm:$0xf]
      %v866 = vld [vmem:[%s1 + $0x184] sm:$0xf]
      %v867 = vld [vmem:[%s1 + $0x188] sm:$0xf]
      %v868 = vld [vmem:[%s1 + $0x18c] sm:$0xf]
      %v869 = vld [vmem:[%s1 + $0x190] sm:$0xf]
      %v870 = vld [vmem:[%s1 + $0x194] sm:$0xf]
      %v871 = vld [vmem:[%s1 + $0x198] sm:$0xf]
      %v872 = vld [vmem:[%s1 + $0x19c] sm:$0xf]
      %v873 = vld [vmem:[%s1 + $0x1a0] sm:$0xf]
      %v874 = vld [vmem:[%s1 + $0x1a4] sm:$0xf]
      %v875 = vld [vmem:[%s1 + $0x1a8] sm:$0xf]
      %v876 = vld [vmem:[%s1 + $0x1ac] sm:$0xf]
      %v877 = vld [vmem:[%s1 + $0x1b0] sm:$0xf]
      %v878 = vld [vmem:[%s1 + $0x1b4] sm:$0xf]
      %v879 = vld [vmem:[%s1 + $0x1b8] sm:$0xf]
      %v880 = vld [vmem:[%s1 + $0x1bc] sm:$0xf]
      %v881 = vld [vmem:[%s1 + $0x1c0] sm:$0xf]
      %v882 = vld [vmem:[%s1 + $0x1c4] sm:$0xf]
      %v883 = vld [vmem:[%s1 + $0x1c8] sm:$0xf]
      %v884 = vld [vmem:[%s1 + $0x1cc] sm:$0xf]
      %v885 = vld [vmem:[%s1 + $0x1d0] sm:$0xf]
      %v886 = vld [vmem:[%s1 + $0x1d4] sm:$0xf]
      %v887 = vld [vmem:[%s1 + $0x1d8] sm:$0xf]
      %v888 = vld [vmem:[%s1 + $0x1dc] sm:$0xf]
      %v889 = vld [vmem:[%s1 + $0x1e0] sm:$0xf]
      %v890 = vld [vmem:[%s1 + $0x1e4] sm:$0xf]
      %v891 = vld [vmem:[%s1 + $0x1e8] sm:$0xf]
      %v892 = vld [vmem:[%s1 + $0x1ec] sm:$0xf]
      %v893 = vld [vmem:[%s1 + $0x1f0] sm:$0xf]
      %v894 = vld [vmem:[%s1 + $0x1f4] sm:$0xf]
      %v895 = vld [vmem:[%s1 + $0x1f8] sm:$0xf]
      %v896 = vld [vmem:[%s1 + $0x1fc] sm:$0xf]
      %v897 = vld [vmem:[%s1 + $0x200] sm:$0xf]
      %v898 = vld [vmem:[%s1 + $0x204] sm:$0xf]
      %v899 = vld [vmem:[%s1 + $0x208] sm:$0xf]
      %v900 = vld [vmem:[%s1 + $0x20c] sm:$0xf]
      %v901 = vld [vmem:[%s1 + $0x210] sm:$0xf]
      %v902 = vld [vmem:[%s1 + $0x214] sm:$0xf]
      %v903 = vld [vmem:[%s1 + $0x218] sm:$0xf]
      %v904 = vld [vmem:[%s1 + $0x21c] sm:$0xf]
      %v905 = vld [vmem:[%s1 + $0x220] sm:$0xf]
      %v906 = vld [vmem:[%s1 + $0x224] sm:$0xf]
      %v907 = vld [vmem:[%s1 + $0x228] sm:$0xf]
      %v908 = vld [vmem:[%s1 + $0x22c] sm:$0xf]
      %v909 = vld [vmem:[%s1 + $0x230] sm:$0xf]
      %v910 = vld [vmem:[%s1 + $0x234] sm:$0xf]
      %v911 = vld [vmem:[%s1 + $0x238] sm:$0xf]
      %v912 = vld [vmem:[%s1 + $0x23c] sm:$0xf]
      %v913 = vld [vmem:[%s2] sm:$0x1]
      %v915 = vlaneseq
      %v916 = vshrl.u32 %v915, 7
      %v917 = vsub.s32 0, %v916
      %v918 = vrot.slane %v913, %v917
      %v1064 = vunpack.c.l.b16 %v769
      %v1065 = vunpack.c.l.b16 %v770
      %v1066 = vunpack.c.l.b16 %v771
      %v1067 = vunpack.c.l.b16 %v772
      %v1068 = vunpack.c.l.b16 %v773
      %v1069 = vunpack.c.l.b16 %v774
      %v1070 = vunpack.c.l.b16 %v775
      %v1071 = vunpack.c.l.b16 %v776
      %v1072 = vunpack.c.l.b16 %v777
      %v1073 = vunpack.c.l.b16 %v778
      %v1074 = vunpack.c.l.b16 %v779
      %v1075 = vunpack.c.l.b16 %v780
      %v1076 = vunpack.c.l.b16 %v781
      %v1077 = vunpack.c.l.b16 %v782
      %v1078 = vunpack.c.l.b16 %v783
      %v1079 = vunpack.c.l.b16 %v784
      %v1080 = vunpack.c.l.b16 %v785
      %v1081 = vunpack.c.l.b16 %v786
      %v1082 = vunpack.c.l.b16 %v787
      %v1083 = vunpack.c.l.b16 %v788
      %v1084 = vunpack.c.l.b16 %v789
      %v1085 = vunpack.c.l.b16 %v790
      %v1086 = vunpack.c.l.b16 %v791
      %v1087 = vunpack.c.l.b16 %v792
      %v1088 = vunpack.c.l.b16 %v793
      %v1089 = vunpack.c.l.b16 %v794
      %v1090 = vunpack.c.l.b16 %v795
      %v1091 = vunpack.c.l.b16 %v796
      %v1092 = vunpack.c.l.b16 %v797
      %v1093 = vunpack.c.l.b16 %v798
      %v1094 = vunpack.c.l.b16 %v799
      %v1095 = vunpack.c.l.b16 %v800
      %v1096 = vunpack.c.l.b16 %v801
      %v1097 = vunpack.c.l.b16 %v802
      %v1098 = vunpack.c.l.b16 %v803
      %v1099 = vunpack.c.l.b16 %v804
      %v1100 = vunpack.c.l.b16 %v805
      %v1101 = vunpack.c.l.b16 %v806
      %v1102 = vunpack.c.l.b16 %v807
      %v1103 = vunpack.c.l.b16 %v808
      %v1104 = vunpack.c.l.b16 %v809
      %v1105 = vunpack.c.l.b16 %v810
      %v1106 = vunpack.c.l.b16 %v811
      %v1107 = vunpack.c.l.b16 %v812
      %v1108 = vunpack.c.l.b16 %v813
      %v1109 = vunpack.c.l.b16 %v814
      %v1110 = vunpack.c.l.b16 %v815
      %v1111 = vunpack.c.l.b16 %v816
      %v1112 = vunpack.c.l.b16 %v817
      %v1113 = vunpack.c.l.b16 %v818
      %v1114 = vunpack.c.l.b16 %v819
      %v1115 = vunpack.c.l.b16 %v820
      %v1116 = vunpack.c.l.b16 %v821
      %v1117 = vunpack.c.l.b16 %v822
      %v1118 = vunpack.c.l.b16 %v823
      %v1119 = vunpack.c.l.b16 %v824
      %v1120 = vunpack.c.l.b16 %v825
      %v1121 = vunpack.c.l.b16 %v826
      %v1122 = vunpack.c.l.b16 %v827
      %v1123 = vunpack.c.l.b16 %v828
      %v1124 = vunpack.c.l.b16 %v829
      %v1125 = vunpack.c.l.b16 %v830
      %v1126 = vunpack.c.l.b16 %v831
      %v1127 = vunpack.c.l.b16 %v832
      %v1128 = vunpack.c.l.b16 %v833
      %v1129 = vunpack.c.l.b16 %v834
      %v1130 = vunpack.c.l.b16 %v835
      %v1131 = vunpack.c.l.b16 %v836
      %v1132 = vunpack.c.l.b16 %v837
      %v1133 = vunpack.c.l.b16 %v838
      %v1134 = vunpack.c.l.b16 %v839
      %v1135 = vunpack.c.l.b16 %v840
      %v1136 = vunpack.c.l.b16 %v841
      %v1137 = vunpack.c.l.b16 %v842
      %v1138 = vunpack.c.l.b16 %v843
      %v1139 = vunpack.c.l.b16 %v844
      %v1140 = vunpack.c.l.b16 %v845
      %v1141 = vunpack.c.l.b16 %v846
      %v1142 = vunpack.c.l.b16 %v847
      %v1143 = vunpack.c.l.b16 %v848
      %v1144 = vunpack.c.l.b16 %v849
      %v1145 = vunpack.c.l.b16 %v850
      %v1146 = vunpack.c.l.b16 %v851
      %v1147 = vunpack.c.l.b16 %v852
      %v1148 = vunpack.c.l.b16 %v853
      %v1149 = vunpack.c.l.b16 %v854
      %v1150 = vunpack.c.l.b16 %v855
      %v1151 = vunpack.c.l.b16 %v856
      %v1152 = vunpack.c.l.b16 %v857
      %v1153 = vunpack.c.l.b16 %v858
      %v1154 = vunpack.c.l.b16 %v859
      %v1155 = vunpack.c.l.b16 %v860
      %v1156 = vunpack.c.l.b16 %v861
      %v1157 = vunpack.c.l.b16 %v862
      %v1158 = vunpack.c.l.b16 %v863
      %v1159 = vunpack.c.l.b16 %v864
      %v1160 = vunpack.c.l.b16 %v865
      %v1161 = vunpack.c.l.b16 %v866
      %v1162 = vunpack.c.l.b16 %v867
      %v1163 = vunpack.c.l.b16 %v868
      %v1164 = vunpack.c.l.b16 %v869
      %v1165 = vunpack.c.l.b16 %v870
      %v1166 = vunpack.c.l.b16 %v871
      %v1167 = vunpack.c.l.b16 %v872
      %v1168 = vunpack.c.l.b16 %v873
      %v1169 = vunpack.c.l.b16 %v874
      %v1170 = vunpack.c.l.b16 %v875
      %v1171 = vunpack.c.l.b16 %v876
      %v1172 = vunpack.c.l.b16 %v877
      %v1173 = vunpack.c.l.b16 %v878
      %v1174 = vunpack.c.l.b16 %v879
      %v1175 = vunpack.c.l.b16 %v880
      %v1176 = vunpack.c.l.b16 %v881
      %v1177 = vunpack.c.l.b16 %v882
      %v1178 = vunpack.c.l.b16 %v883
      %v1179 = vunpack.c.l.b16 %v884
      %v1180 = vunpack.c.l.b16 %v885
      %v1181 = vunpack.c.l.b16 %v886
      %v1182 = vunpack.c.l.b16 %v887
      %v1183 = vunpack.c.l.b16 %v888
      %v1184 = vunpack.c.l.b16 %v889
      %v1185 = vunpack.c.l.b16 %v890
      %v1186 = vunpack.c.l.b16 %v891
      %v1187 = vunpack.c.l.b16 %v892
      %v1188 = vunpack.c.l.b16 %v893
      %v1189 = vunpack.c.l.b16 %v894
      %v1190 = vunpack.c.l.b16 %v895
      %v1191 = vunpack.c.l.b16 %v896
      %v1192 = vunpack.c.l.b16 %v897
      %v1193 = vunpack.c.l.b16 %v898
      %v1194 = vunpack.c.l.b16 %v899
      %v1195 = vunpack.c.l.b16 %v900
      %v1196 = vunpack.c.l.b16 %v901
      %v1197 = vunpack.c.l.b16 %v902
      %v1198 = vunpack.c.l.b16 %v903
      %v1199 = vunpack.c.l.b16 %v904
      %v1200 = vunpack.c.l.b16 %v905
      %v1201 = vunpack.c.l.b16 %v906
      %v1202 = vunpack.c.l.b16 %v907
      %v1203 = vunpack.c.l.b16 %v908
      %v1204 = vunpack.c.l.b16 %v909
      %v1205 = vunpack.c.l.b16 %v910
      %v1206 = vunpack.c.l.b16 %v911
      %v1207 = vunpack.c.l.b16 %v912
      %v1208 = vpack.c.b16 %v1065, %v1064
      %v1209 = vpack.c.b16 %v1067, %v1066
      %v1210 = vpack.c.b16 %v1069, %v1068
      %v1211 = vpack.c.b16 %v1071, %v1070
      %v1212 = vpack.c.b16 %v1073, %v1072
      %v1213 = vpack.c.b16 %v1075, %v1074
      %v1214 = vpack.c.b16 %v1077, %v1076
      %v1215 = vpack.c.b16 %v1079, %v1078
      %v1216 = vpack.c.b16 %v1081, %v1080
      %v1217 = vpack.c.b16 %v1083, %v1082
      %v1218 = vpack.c.b16 %v1085, %v1084
      %v1219 = vpack.c.b16 %v1087, %v1086
      %v1220 = vpack.c.b16 %v1089, %v1088
      %v1221 = vpack.c.b16 %v1091, %v1090
      %v1222 = vpack.c.b16 %v1093, %v1092
      %v1223 = vpack.c.b16 %v1095, %v1094
      %v1224 = vpack.c.b16 %v1097, %v1096
      %v1225 = vpack.c.b16 %v1099, %v1098
      %v1226 = vpack.c.b16 %v1101, %v1100
      %v1227 = vpack.c.b16 %v1103, %v1102
      %v1228 = vpack.c.b16 %v1105, %v1104
      %v1229 = vpack.c.b16 %v1107, %v1106
      %v1230 = vpack.c.b16 %v1109, %v1108
      %v1231 = vpack.c.b16 %v1111, %v1110
      %v1232 = vpack.c.b16 %v1113, %v1112
      %v1233 = vpack.c.b16 %v1115, %v1114
      %v1234 = vpack.c.b16 %v1117, %v1116
      %v1235 = vpack.c.b16 %v1119, %v1118
      %v1236 = vpack.c.b16 %v1121, %v1120
      %v1237 = vpack.c.b16 %v1123, %v1122
      %v1238 = vpack.c.b16 %v1125, %v1124
      %v1239 = vpack.c.b16 %v1127, %v1126
      %v1240 = vpack.c.b16 %v1129, %v1128
      %v1241 = vpack.c.b16 %v1131, %v1130
      %v1242 = vpack.c.b16 %v1133, %v1132
      %v1243 = vpack.c.b16 %v1135, %v1134
      %v1244 = vpack.c.b16 %v1137, %v1136
      %v1245 = vpack.c.b16 %v1139, %v1138
      %v1246 = vpack.c.b16 %v1141, %v1140
      %v1247 = vpack.c.b16 %v1143, %v1142
      %v1248 = vpack.c.b16 %v1145, %v1144
      %v1249 = vpack.c.b16 %v1147, %v1146
      %v1250 = vpack.c.b16 %v1149, %v1148
      %v1251 = vpack.c.b16 %v1151, %v1150
      %v1252 = vpack.c.b16 %v1153, %v1152
      %v1253 = vpack.c.b16 %v1155, %v1154
      %v1254 = vpack.c.b16 %v1157, %v1156
      %v1255 = vpack.c.b16 %v1159, %v1158
      %v1256 = vpack.c.b16 %v1161, %v1160
      %v1257 = vpack.c.b16 %v1163, %v1162
      %v1258 = vpack.c.b16 %v1165, %v1164
      %v1259 = vpack.c.b16 %v1167, %v1166
      %v1260 = vpack.c.b16 %v1169, %v1168
      %v1261 = vpack.c.b16 %v1171, %v1170
      %v1262 = vpack.c.b16 %v1173, %v1172
      %v1263 = vpack.c.b16 %v1175, %v1174
      %v1264 = vpack.c.b16 %v1177, %v1176
      %v1265 = vpack.c.b16 %v1179, %v1178
      %v1266 = vpack.c.b16 %v1181, %v1180
      %v1267 = vpack.c.b16 %v1183, %v1182
      %v1268 = vpack.c.b16 %v1185, %v1184
      %v1269 = vpack.c.b16 %v1187, %v1186
      %v1270 = vpack.c.b16 %v1189, %v1188
      %v1271 = vpack.c.b16 %v1191, %v1190
      %v1272 = vpack.c.b16 %v1193, %v1192
      %v1273 = vpack.c.b16 %v1195, %v1194
      %v1274 = vpack.c.b16 %v1197, %v1196
      %v1275 = vpack.c.b16 %v1199, %v1198
      %v1276 = vpack.c.b16 %v1201, %v1200
      %v1277 = vpack.c.b16 %v1203, %v1202
      %v1278 = vpack.c.b16 %v1205, %v1204
      %v1279 = vpack.c.b16 %v1207, %v1206
      %1352 = vmatprep.subr.bf16.mxu0 0
      %1353 = vmatpush1.bf16.msra.mxu0 %v1208
      %1354 = vmatprep.subr.bf16.mxu0 0
      %1355 = vmatpush1.bf16.msra.mxu0 %v1209
      %1356 = vmatprep.subr.bf16.mxu0 0
      %1357 = vmatpush1.bf16.msra.mxu0 %v1210
      %1358 = vmatprep.subr.bf16.mxu0 0
      %1359 = vmatpush1.bf16.msra.mxu0 %v1211
      %1360 = vmatprep.subr.bf16.mxu0 0
      %1361 = vmatpush1.bf16.msra.mxu0 %v1212
      %1362 = vmatprep.subr.bf16.mxu0 0
      %1363 = vmatpush1.bf16.msra.mxu0 %v1213
      %1364 = vmatprep.subr.bf16.mxu0 0
      %1365 = vmatpush1.bf16.msra.mxu0 %v1214
      %1366 = vmatprep.subr.bf16.mxu0 0
      %1367 = vmatpush1.bf16.msra.mxu0 %v1215
      %1368 = vmatprep.subr.bf16.mxu0 0
      %1369 = vmatpush1.bf16.msra.mxu0 %v1216
      %1370 = vmatprep.subr.bf16.mxu0 0
      %1371 = vmatpush1.bf16.msra.mxu0 %v1217
      %1372 = vmatprep.subr.bf16.mxu0 0
      %1373 = vmatpush1.bf16.msra.mxu0 %v1218
      %1374 = vmatprep.subr.bf16.mxu0 0
      %1375 = vmatpush1.bf16.msra.mxu0 %v1219
      %1376 = vmatprep.subr.bf16.mxu0 0
      %1377 = vmatpush1.bf16.msra.mxu0 %v1220
      %1378 = vmatprep.subr.bf16.mxu0 0
      %1379 = vmatpush1.bf16.msra.mxu0 %v1221
      %1380 = vmatprep.subr.bf16.mxu0 0
      %1381 = vmatpush1.bf16.msra.mxu0 %v1222
      %1382 = vmatprep.subr.bf16.mxu0 0
      %1383 = vmatpush1.bf16.msra.mxu0 %v1223
      %1384 = vmatprep.mubr.bf16.mxu0 %v455
      %1385 = vmatmul.mubr.bf16.gmra.mrb[0].mxu0 %v363
      %v1386 = vpop.f32.mrb[0].mxu0
      %v1387 = vadd.f32 %v918, %v1386
      %v1388 = vpop.f32.mrb[0].mxu0
      %v1389 = vpop.f32.mrb[0].mxu0
      %v1390 = vadd.f32 %v918, %v1389
      %v1391 = vpop.f32.mrb[0].mxu0
      %1392 = vmatprep.mubr.bf16.mxu0 %v467
      %1393 = vmatmul.mubr.bf16.gmra.mrb[0].mxu0 %v364
      %v1394 = vpop.f32.mrb[0].mxu0
      %v1395 = vadd.f32 %v918, %v1394
      %v1396 = vpop.f32.mrb[0].mxu0
      %v1397 = vpop.f32.mrb[0].mxu0
      %v1398 = vadd.f32 %v918, %v1397
      %v1399 = vpop.f32.mrb[0].mxu0
      %1400 = vmatprep.mubr.bf16.mxu0 %v479
      %1401 = vmatmul.mubr.bf16.gmra.mrb[0].mxu0 %v365
      %v1402 = vpop.f32.mrb[0].mxu0
      %v1403 = vadd.f32 %v918, %v1402
      %v1404 = vpop.f32.mrb[0].mxu0
      %v1405 = vpop.f32.mrb[0].mxu0
      %v1406 = vadd.f32 %v918, %v1405
      %v1407 = vpop.f32.mrb[0].mxu0
      %1408 = vmatprep.mubr.bf16.mxu0 %v491
      %1409 = vmatmul.mubr.bf16.gmra.mrb[0].mxu0 %v366
      %v1410 = vpop.f32.mrb[0].mxu0
      %v1411 = vadd.f32 %v918, %v1410
      %v1412 = vpop.f32.mrb[0].mxu0
      %v1413 = vpop.f32.mrb[0].mxu0
      %v1414 = vadd.f32 %v918, %v1413
      %v1415 = vpop.f32.mrb[0].mxu0
      %1416 = vmatprep.mubr.bf16.mxu0 %v503
      %1417 = vmatmul.mubr.bf16.gmra.mrb[0].mxu0 %v367
      %v1418 = vpop.f32.mrb[0].mxu0
      %v1419 = vadd.f32 %v918, %v1418
      %v1420 = vpop.f32.mrb[0].mxu0
      %v1421 = vpop.f32.mrb[0].mxu0
      %v1422 = vadd.f32 %v918, %v1421
      %v1423 = vpop.f32.mrb[0].mxu0
      %1424 = vmatprep.mubr.bf16.mxu0 %v515
      %1425 = vmatmul.mubr.bf16.gmra.mrb[0].mxu0 %v368
      %v1426 = vpop.f32.mrb[0].mxu0
      %v1427 = vadd.f32 %v918, %v1426
      %v1428 = vpop.f32.mrb[0].mxu0
      %v1429 = vpop.f32.mrb[0].mxu0
      %v1430 = vadd.f32 %v918, %v1429
      %v1431 = vpop.f32.mrb[0].mxu0
      %1432 = vmatprep.mubr.bf16.mxu0 %v527
      %1433 = vmatmul.mubr.bf16.gmra.mrb[0].mxu0 %v369
      %v1434 = vpop.f32.mrb[0].mxu0
      %v1435 = vadd.f32 %v918, %v1434
      %v1436 = vpop.f32.mrb[0].mxu0
      %v1437 = vpop.f32.mrb[0].mxu0
      %v1438 = vadd.f32 %v918, %v1437
      %v1439 = vpop.f32.mrb[0].mxu0
      %1440 = vmatprep.mubr.bf16.mxu0 %v539
      %1441 = vmatmul.mubr.bf16.gmra.mrb[0].mxu0 %v370
      %v1442 = vpop.f32.mrb[0].mxu0
      %v1443 = vadd.f32 %v918, %v1442
      %v1444 = vpop.f32.mrb[0].mxu0
      %v1445 = vpop.f32.mrb[0].mxu0
      %v1446 = vadd.f32 %v918, %v1445
      %v1447 = vpop.f32.mrb[0].mxu0
      %1448 = vmatprep.mubr.bf16.mxu0 %v551
      %1449 = vmatmul.mubr.bf16.gmra.mrb[0].mxu0 %v371
      %v1450 = vpop.f32.mrb[0].mxu0
      %v1451 = vadd.f32 %v918, %v1450
      %v1452 = vpop.f32.mrb[0].mxu0
      %v1453 = vpop.f32.mrb[0].mxu0
      %v1454 = vadd.f32 %v918, %v1453
      %v1455 = vpop.f32.mrb[0].mxu0
      %1456 = vmatprep.mubr.bf16.mxu0 %v563
      %1457 = vmatmul.mubr.bf16.gmra.mrb[0].mxu0 %v372
      %v1458 = vpop.f32.mrb[0].mxu0
      %v1459 = vadd.f32 %v918, %v1458
      %v1460 = vpop.f32.mrb[0].mxu0
      %v1461 = vpop.f32.mrb[0].mxu0
      %v1462 = vadd.f32 %v918, %v1461
      %v1463 = vpop.f32.mrb[0].mxu0
      %1464 = vmatprep.mubr.bf16.mxu0 %v575
      %1465 = vmatmul.mubr.bf16.gmra.mrb[0].mxu0 %v373
      %v1466 = vpop.f32.mrb[0].mxu0
      %v1467 = vadd.f32 %v918, %v1466
      %v1468 = vpop.f32.mrb[0].mxu0
      %v1469 = vpop.f32.mrb[0].mxu0
      %v1470 = vadd.f32 %v918, %v1469
      %v1471 = vpop.f32.mrb[0].mxu0
      %1472 = vmatprep.mubr.bf16.mxu0 %v587
      %1473 = vmatmul.mubr.bf16.gmra.mrb[0].mxu0 %v374
      %v1474 = vpop.f32.mrb[0].mxu0
      %v1475 = vadd.f32 %v918, %v1474
      %v1476 = vpop.f32.mrb[0].mxu0
      %v1477 = vpop.f32.mrb[0].mxu0
      %v1478 = vadd.f32 %v918, %v1477
      %v1479 = vpop.f32.mrb[0].mxu0
      %1480 = vmatprep.mubr.bf16.mxu0 %v599
      %1481 = vmatmul.mubr.bf16.gmra.mrb[0].mxu0 %v375
      %v1482 = vpop.f32.mrb[0].mxu0
      %v1483 = vadd.f32 %v918, %v1482
      %v1484 = vpop.f32.mrb[0].mxu0
      %v1485 = vpop.f32.mrb[0].mxu0
      %v1486 = vadd.f32 %v918, %v1485
      %v1487 = vpop.f32.mrb[0].mxu0
      %1488 = vmatprep.mubr.bf16.mxu0 %v611
      %1489 = vmatmul.mubr.bf16.gmra.mrb[0].mxu0 %v376
      %v1490 = vpop.f32.mrb[0].mxu0
      %v1491 = vadd.f32 %v918, %v1490
      %v1492 = vpop.f32.mrb[0].mxu0
      %v1493 = vpop.f32.mrb[0].mxu0
      %v1494 = vadd.f32 %v918, %v1493
      %v1495 = vpop.f32.mrb[0].mxu0
      %1496 = vmatprep.mubr.bf16.mxu0 %v623
      %1497 = vmatmul.mubr.bf16.gmra.mrb[0].mxu0 %v377
      %v1498 = vpop.f32.mrb[0].mxu0
      %v1499 = vadd.f32 %v918, %v1498
      %v1500 = vpop.f32.mrb[0].mxu0
      %v1501 = vpop.f32.mrb[0].mxu0
      %v1502 = vadd.f32 %v918, %v1501
      %v1503 = vpop.f32.mrb[0].mxu0
      %1504 = vmatprep.mubr.bf16.mxu0 %v635
      %1505 = vmatmul.mubr.bf16.gmra.mrb[0].mxu0 %v378
      %v1506 = vpop.f32.mrb[0].mxu0
      %v1507 = vadd.f32 %v918, %v1506
      %v1508 = vpop.f32.mrb[0].mxu0
      %v1509 = vpop.f32.mrb[0].mxu0
      %v1510 = vadd.f32 %v918, %v1509
      %v1511 = vpop.f32.mrb[0].mxu0
      %1512 = vdwg.mxu0
      %1513 = vmatprep.subr.bf16.mxu0 0
      %1514 = vmatpush1.bf16.msra.mxu0 %v1224
      %1515 = vmatprep.subr.bf16.mxu0 0
      %1516 = vmatpush1.bf16.msra.mxu0 %v1225
      %1517 = vmatprep.subr.bf16.mxu0 0
      %1518 = vmatpush1.bf16.msra.mxu0 %v1226
      %1519 = vmatprep.subr.bf16.mxu0 0
      %1520 = vmatpush1.bf16.msra.mxu0 %v1227
      %1521 = vmatprep.subr.bf16.mxu0 0
      %1522 = vmatpush1.bf16.msra.mxu0 %v1228
      %1523 = vmatprep.subr.bf16.mxu0 0
      %1524 = vmatpush1.bf16.msra.mxu0 %v1229
      %1525 = vmatprep.subr.bf16.mxu0 0
      %1526 = vmatpush1.bf16.msra.mxu0 %v1230
      %1527 = vmatprep.subr.bf16.mxu0 0
      %1528 = vmatpush1.bf16.msra.mxu0 %v1231
      %1529 = vmatprep.subr.bf16.mxu0 0
      %1530 = vmatpush1.bf16.msra.mxu0 %v1232
      %1531 = vmatprep.subr.bf16.mxu0 0
      %1532 = vmatpush1.bf16.msra.mxu0 %v1233
      %1533 = vmatprep.subr.bf16.mxu0 0
      %1534 = vmatpush1.bf16.msra.mxu0 %v1234
      %1535 = vmatprep.subr.bf16.mxu0 0
      %1536 = vmatpush1.bf16.msra.mxu0 %v1235
      %1537 = vmatprep.subr.bf16.mxu0 0
      %1538 = vmatpush1.bf16.msra.mxu0 %v1236
      %1539 = vmatprep.subr.bf16.mxu0 0
      %1540 = vmatpush1.bf16.msra.mxu0 %v1237
      %1541 = vmatprep.subr.bf16.mxu0 0
      %1542 = vmatpush1.bf16.msra.mxu0 %v1238
      %1543 = vmatprep.subr.bf16.mxu0 0
      %1544 = vmatpush1.bf16.msra.mxu0 %v1239
      %1545 = vmatprep.mubr.bf16.mxu0 %v364
      %1546 = vmatmul.mubr.bf16.gmra.mrb[0].mxu0 %v655
      %v1547 = vpop.f32.mrb[0].mxu0
      %v1548 = vadd.f32 %v1387, %v1547
      %v1549 = vpop.f32.mrb[0].mxu0
      %v1550 = vpop.f32.mrb[0].mxu0
      %v1551 = vadd.f32 %v1390, %v1550
      %v1552 = vpop.f32.mrb[0].mxu0
      %1553 = vmatprep.mubr.bf16.mxu0 %v365
      %1554 = vmatmul.mubr.bf16.gmra.mrb[0].mxu0 %v658
      %v1555 = vpop.f32.mrb[0].mxu0
      %v1556 = vadd.f32 %v1395, %v1555
      %v1557 = vpop.f32.mrb[0].mxu0
      %v1558 = vpop.f32.mrb[0].mxu0
      %v1559 = vadd.f32 %v1398, %v1558
      %v1560 = vpop.f32.mrb[0].mxu0
      %1561 = vmatprep.mubr.bf16.mxu0 %v366
      %1562 = vmatmul.mubr.bf16.gmra.mrb[0].mxu0 %v661
      %v1563 = vpop.f32.mrb[0].mxu0
      %v1564 = vadd.f32 %v1403, %v1563
      %v1565 = vpop.f32.mrb[0].mxu0
      %v1566 = vpop.f32.mrb[0].mxu0
      %v1567 = vadd.f32 %v1406, %v1566
      %v1568 = vpop.f32.mrb[0].mxu0
      %1569 = vmatprep.mubr.bf16.mxu0 %v367
      %1570 = vmatmul.mubr.bf16.gmra.mrb[0].mxu0 %v664
      %v1571 = vpop.f32.mrb[0].mxu0
      %v1572 = vadd.f32 %v1411, %v1571
      %v1573 = vpop.f32.mrb[0].mxu0
      %v1574 = vpop.f32.mrb[0].mxu0
      %v1575 = vadd.f32 %v1414, %v1574
      %v1576 = vpop.f32.mrb[0].mxu0
      %1577 = vmatprep.mubr.bf16.mxu0 %v368
      %1578 = vmatmul.mubr.bf16.gmra.mrb[0].mxu0 %v667
      %v1579 = vpop.f32.mrb[0].mxu0
      %v1580 = vadd.f32 %v1419, %v1579
      %v1581 = vpop.f32.mrb[0].mxu0
      %v1582 = vpop.f32.mrb[0].mxu0
      %v1583 = vadd.f32 %v1422, %v1582
      %v1584 = vpop.f32.mrb[0].mxu0
      %1585 = vmatprep.mubr.bf16.mxu0 %v369
      %1586 = vmatmul.mubr.bf16.gmra.mrb[0].mxu0 %v670
      %v1587 = vpop.f32.mrb[0].mxu0
      %v1588 = vadd.f32 %v1427, %v1587
      %v1589 = vpop.f32.mrb[0].mxu0
      %v1590 = vpop.f32.mrb[0].mxu0
      %v1591 = vadd.f32 %v1430, %v1590
      %v1592 = vpop.f32.mrb[0].mxu0
      %1593 = vmatprep.mubr.bf16.mxu0 %v370
      %1594 = vmatmul.mubr.bf16.gmra.mrb[0].mxu0 %v673
      %v1595 = vpop.f32.mrb[0].mxu0
      %v1596 = vadd.f32 %v1435, %v1595
      %v1597 = vpop.f32.mrb[0].mxu0
      %v1598 = vpop.f32.mrb[0].mxu0
      %v1599 = vadd.f32 %v1438, %v1598
      %v1600 = vpop.f32.mrb[0].mxu0
      %1601 = vmatprep.mubr.bf16.mxu0 %v371
      %1602 = vmatmul.mubr.bf16.gmra.mrb[0].mxu0 %v676
      %v1603 = vpop.f32.mrb[0].mxu0
      %v1604 = vadd.f32 %v1443, %v1603
      %v1605 = vpop.f32.mrb[0].mxu0
      %v1606 = vpop.f32.mrb[0].mxu0
      %v1607 = vadd.f32 %v1446, %v1606
      %v1608 = vpop.f32.mrb[0].mxu0
      %1609 = vmatprep.mubr.bf16.mxu0 %v372
      %1610 = vmatmul.mubr.bf16.gmra.mrb[0].mxu0 %v679
      %v1611 = vpop.f32.mrb[0].mxu0
      %v1612 = vadd.f32 %v1451, %v1611
      %v1613 = vpop.f32.mrb[0].mxu0
      %v1614 = vpop.f32.mrb[0].mxu0
      %v1615 = vadd.f32 %v1454, %v1614
      %v1616 = vpop.f32.mrb[0].mxu0
      %1617 = vmatprep.mubr.bf16.mxu0 %v373
      %1618 = vmatmul.mubr.bf16.gmra.mrb[0].mxu0 %v682
      %v1619 = vpop.f32.mrb[0].mxu0
      %v1620 = vadd.f32 %v1459, %v1619
      %v1621 = vpop.f32.mrb[0].mxu0
      %v1622 = vpop.f32.mrb[0].mxu0
      %v1623 = vadd.f32 %v1462, %v1622
      %v1624 = vpop.f32.mrb[0].mxu0
      %1625 = vmatprep.mubr.bf16.mxu0 %v374
      %1626 = vmatmul.mubr.bf16.gmra.mrb[0].mxu0 %v685
      %v1627 = vpop.f32.mrb[0].mxu0
      %v1628 = vadd.f32 %v1467, %v1627
      %v1629 = vpop.f32.mrb[0].mxu0
      %v1630 = vpop.f32.mrb[0].mxu0
      %v1631 = vadd.f32 %v1470, %v1630
      %v1632 = vpop.f32.mrb[0].mxu0
      %1633 = vmatprep.mubr.bf16.mxu0 %v375
      %1634 = vmatmul.mubr.bf16.gmra.mrb[0].mxu0 %v688
      %v1635 = vpop.f32.mrb[0].mxu0
      %v1636 = vadd.f32 %v1475, %v1635
      %v1637 = vpop.f32.mrb[0].mxu0
      %v1638 = vpop.f32.mrb[0].mxu0
      %v1639 = vadd.f32 %v1478, %v1638
      %v1640 = vpop.f32.mrb[0].mxu0
      %1641 = vmatprep.mubr.bf16.mxu0 %v376
      %1642 = vmatmul.mubr.bf16.gmra.mrb[0].mxu0 %v691
      %v1643 = vpop.f32.mrb[0].mxu0
      %v1644 = vadd.f32 %v1483, %v1643
      %v1645 = vpop.f32.mrb[0].mxu0
      %v1646 = vpop.f32.mrb[0].mxu0
      %v1647 = vadd.f32 %v1486, %v1646
      %v1648 = vpop.f32.mrb[0].mxu0
      %1649 = vmatprep.mubr.bf16.mxu0 %v377
      %1650 = vmatmul.mubr.bf16.gmra.mrb[0].mxu0 %v694
      %v1651 = vpop.f32.mrb[0].mxu0
      %v1652 = vadd.f32 %v1491, %v1651
      %v1653 = vpop.f32.mrb[0].mxu0
      %v1654 = vpop.f32.mrb[0].mxu0
      %v1655 = vadd.f32 %v1494, %v1654
      %v1656 = vpop.f32.mrb[0].mxu0
      %1657 = vmatprep.mubr.bf16.mxu0 %v378
      %1658 = vmatmul.mubr.bf16.gmra.mrb[0].mxu0 %v697
      %v1659 = vpop.f32.mrb[0].mxu0
      %v1660 = vadd.f32 %v1499, %v1659
      %v1661 = vpop.f32.mrb[0].mxu0
      %v1662 = vpop.f32.mrb[0].mxu0
      %v1663 = vadd.f32 %v1502, %v1662
      %v1664 = vpop.f32.mrb[0].mxu0
      %1665 = vmatprep.mubr.bf16.mxu0 %v721
      %1666 = vmatmul.mubr.bf16.gmra.mrb[0].mxu0 %v700
      %v1667 = vpop.f32.mrb[0].mxu0
      %v1668 = vadd.f32 %v1507, %v1667
      %v1669 = vpop.f32.mrb[0].mxu0
      %v1670 = vpop.f32.mrb[0].mxu0
      %v1671 = vadd.f32 %v1510, %v1670
      %v1672 = vpop.f32.mrb[0].mxu0
      %1673 = vdwg.mxu0
      %1674 = vmatprep.subr.bf16.mxu0 0
      %1675 = vmatpush1.bf16.msra.mxu0 %v1240
      %1676 = vmatprep.subr.bf16.mxu0 0
      %1677 = vmatpush1.bf16.msra.mxu0 %v1241
      %1678 = vmatprep.subr.bf16.mxu0 0
      %1679 = vmatpush1.bf16.msra.mxu0 %v1242
      %1680 = vmatprep.subr.bf16.mxu0 0
      %1681 = vmatpush1.bf16.msra.mxu0 %v1243
      %1682 = vmatprep.subr.bf16.mxu0 0
      %1683 = vmatpush1.bf16.msra.mxu0 %v1244
      %1684 = vmatprep.subr.bf16.mxu0 0
      %1685 = vmatpush1.bf16.msra.mxu0 %v1245
      %1686 = vmatprep.subr.bf16.mxu0 0
      %1687 = vmatpush1.bf16.msra.mxu0 %v1246
      %1688 = vmatprep.subr.bf16.mxu0 0
      %1689 = vmatpush1.bf16.msra.mxu0 %v1247
      %1690 = vmatprep.subr.bf16.mxu0 0
      %1691 = vmatpush1.bf16.msra.mxu0 %v1248
      %1692 = vmatprep.subr.bf16.mxu0 0
      %1693 = vmatpush1.bf16.msra.mxu0 %v1249
      %1694 = vmatprep.subr.bf16.mxu0 0
      %1695 = vmatpush1.bf16.msra.mxu0 %v1250
      %1696 = vmatprep.subr.bf16.mxu0 0
      %1697 = vmatpush1.bf16.msra.mxu0 %v1251
      %1698 = vmatprep.subr.bf16.mxu0 0
      %1699 = vmatpush1.bf16.msra.mxu0 %v1252
      %1700 = vmatprep.subr.bf16.mxu0 0
      %1701 = vmatpush1.bf16.msra.mxu0 %v1253
      %1702 = vmatprep.subr.bf16.mxu0 0
      %1703 = vmatpush1.bf16.msra.mxu0 %v1254
      %1704 = vmatprep.subr.bf16.mxu0 0
      %1705 = vmatpush1.bf16.msra.mxu0 %v1255
      %1706 = vmatprep.mubr.bf16.mxu0 %v658
      %1707 = vmatmul.mubr.bf16.gmra.mrb[0].mxu0 %v467
      %v1708 = vpop.f32.mrb[0].mxu0
      %v1709 = vadd.f32 %v1548, %v1708
      %v1710 = vpop.f32.mrb[0].mxu0
      %v1711 = vpop.f32.mrb[0].mxu0
      %v1712 = vadd.f32 %v1551, %v1711
      %v1713 = vpop.f32.mrb[0].mxu0
      %1714 = vmatprep.mubr.bf16.mxu0 %v661
      %1715 = vmatmul.mubr.bf16.gmra.mrb[0].mxu0 %v479
      %v1716 = vpop.f32.mrb[0].mxu0
      %v1717 = vadd.f32 %v1556, %v1716
      %v1718 = vpop.f32.mrb[0].mxu0
      %v1719 = vpop.f32.mrb[0].mxu0
      %v1720 = vadd.f32 %v1559, %v1719
      %v1721 = vpop.f32.mrb[0].mxu0
      %1722 = vmatprep.mubr.bf16.mxu0 %v664
      %1723 = vmatmul.mubr.bf16.gmra.mrb[0].mxu0 %v491
      %v1724 = vpop.f32.mrb[0].mxu0
      %v1725 = vadd.f32 %v1564, %v1724
      %v1726 = vpop.f32.mrb[0].mxu0
      %v1727 = vpop.f32.mrb[0].mxu0
      %v1728 = vadd.f32 %v1567, %v1727
      %v1729 = vpop.f32.mrb[0].mxu0
      %1730 = vmatprep.mubr.bf16.mxu0 %v667
      %1731 = vmatmul.mubr.bf16.gmra.mrb[0].mxu0 %v503
      %v1732 = vpop.f32.mrb[0].mxu0
      %v1733 = vadd.f32 %v1572, %v1732
      %v1734 = vpop.f32.mrb[0].mxu0
      %v1735 = vpop.f32.mrb[0].mxu0
      %v1736 = vadd.f32 %v1575, %v1735
      %v1737 = vpop.f32.mrb[0].mxu0
      %1738 = vmatprep.mubr.bf16.mxu0 %v670
      %1739 = vmatmul.mubr.bf16.gmra.mrb[0].mxu0 %v515
      %v1740 = vpop.f32.mrb[0].mxu0
      %v1741 = vadd.f32 %v1580, %v1740
      %v1742 = vpop.f32.mrb[0].mxu0
      %v1743 = vpop.f32.mrb[0].mxu0
      %v1744 = vadd.f32 %v1583, %v1743
      %v1745 = vpop.f32.mrb[0].mxu0
      %1746 = vmatprep.mubr.bf16.mxu0 %v673
      %1747 = vmatmul.mubr.bf16.gmra.mrb[0].mxu0 %v527
      %v1748 = vpop.f32.mrb[0].mxu0
      %v1749 = vadd.f32 %v1588, %v1748
      %v1750 = vpop.f32.mrb[0].mxu0
      %v1751 = vpop.f32.mrb[0].mxu0
      %v1752 = vadd.f32 %v1591, %v1751
      %v1753 = vpop.f32.mrb[0].mxu0
      %1754 = vmatprep.mubr.bf16.mxu0 %v676
      %1755 = vmatmul.mubr.bf16.gmra.mrb[0].mxu0 %v539
      %v1756 = vpop.f32.mrb[0].mxu0
      %v1757 = vadd.f32 %v1596, %v1756
      %v1758 = vpop.f32.mrb[0].mxu0
      %v1759 = vpop.f32.mrb[0].mxu0
      %v1760 = vadd.f32 %v1599, %v1759
      %v1761 = vpop.f32.mrb[0].mxu0
      %1762 = vmatprep.mubr.bf16.mxu0 %v679
      %1763 = vmatmul.mubr.bf16.gmra.mrb[0].mxu0 %v551
      %v1764 = vpop.f32.mrb[0].mxu0
      %v1765 = vadd.f32 %v1604, %v1764
      %v1766 = vpop.f32.mrb[0].mxu0
      %v1767 = vpop.f32.mrb[0].mxu0
      %v1768 = vadd.f32 %v1607, %v1767
      %v1769 = vpop.f32.mrb[0].mxu0
      %1770 = vmatprep.mubr.bf16.mxu0 %v682
      %1771 = vmatmul.mubr.bf16.gmra.mrb[0].mxu0 %v563
      %v1772 = vpop.f32.mrb[0].mxu0
      %v1773 = vadd.f32 %v1612, %v1772
      %v1774 = vpop.f32.mrb[0].mxu0
      %v1775 = vpop.f32.mrb[0].mxu0
      %v1776 = vadd.f32 %v1615, %v1775
      %v1777 = vpop.f32.mrb[0].mxu0
      %1778 = vmatprep.mubr.bf16.mxu0 %v685
      %1779 = vmatmul.mubr.bf16.gmra.mrb[0].mxu0 %v575
      %v1780 = vpop.f32.mrb[0].mxu0
      %v1781 = vadd.f32 %v1620, %v1780
      %v1782 = vpop.f32.mrb[0].mxu0
      %v1783 = vpop.f32.mrb[0].mxu0
      %v1784 = vadd.f32 %v1623, %v1783
      %v1785 = vpop.f32.mrb[0].mxu0
      %1786 = vmatprep.mubr.bf16.mxu0 %v688
      %1787 = vmatmul.mubr.bf16.gmra.mrb[0].mxu0 %v587
      %v1788 = vpop.f32.mrb[0].mxu0
      %v1789 = vadd.f32 %v1628, %v1788
      %v1790 = vpop.f32.mrb[0].mxu0
      %v1791 = vpop.f32.mrb[0].mxu0
      %v1792 = vadd.f32 %v1631, %v1791
      %v1793 = vpop.f32.mrb[0].mxu0
      %1794 = vmatprep.mubr.bf16.mxu0 %v691
      %1795 = vmatmul.mubr.bf16.gmra.mrb[0].mxu0 %v599
      %v1796 = vpop.f32.mrb[0].mxu0
      %v1797 = vadd.f32 %v1636, %v1796
      %v1798 = vpop.f32.mrb[0].mxu0
      %v1799 = vpop.f32.mrb[0].mxu0
      %v1800 = vadd.f32 %v1639, %v1799
      %v1801 = vpop.f32.mrb[0].mxu0
      %1802 = vmatprep.mubr.bf16.mxu0 %v694
      %1803 = vmatmul.mubr.bf16.gmra.mrb[0].mxu0 %v611
      %v1804 = vpop.f32.mrb[0].mxu0
      %v1805 = vadd.f32 %v1644, %v1804
      %v1806 = vpop.f32.mrb[0].mxu0
      %v1807 = vpop.f32.mrb[0].mxu0
      %v1808 = vadd.f32 %v1647, %v1807
      %v1809 = vpop.f32.mrb[0].mxu0
      %1810 = vmatprep.mubr.bf16.mxu0 %v697
      %1811 = vmatmul.mubr.bf16.gmra.mrb[0].mxu0 %v623
      %v1812 = vpop.f32.mrb[0].mxu0
      %v1813 = vadd.f32 %v1652, %v1812
      %v1814 = vpop.f32.mrb[0].mxu0
      %v1815 = vpop.f32.mrb[0].mxu0
      %v1816 = vadd.f32 %v1655, %v1815
      %v1817 = vpop.f32.mrb[0].mxu0
      %1818 = vmatprep.mubr.bf16.mxu0 %v700
      %1819 = vmatmul.mubr.bf16.gmra.mrb[0].mxu0 %v635
      %v1820 = vpop.f32.mrb[0].mxu0
      %v1821 = vadd.f32 %v1660, %v1820
      %v1822 = vpop.f32.mrb[0].mxu0
      %v1823 = vpop.f32.mrb[0].mxu0
      %v1824 = vadd.f32 %v1663, %v1823
      %v1825 = vpop.f32.mrb[0].mxu0
      %1826 = vmatprep.mubr.bf16.mxu0 %v741
      %1827 = vmatmul.mubr.bf16.gmra.mrb[0].mxu0 %v737
      %v1828 = vpop.f32.mrb[0].mxu0
      %v1829 = vadd.f32 %v1668, %v1828
      %v1830 = vpop.f32.mrb[0].mxu0
      %v1831 = vpop.f32.mrb[0].mxu0
      %v1832 = vadd.f32 %v1671, %v1831
      %v1833 = vpop.f32.mrb[0].mxu0
      %1834 = vdwg.mxu0
      %1835 = vmatprep.subr.bf16.mxu0 0
      %1836 = vmatpush1.bf16.msra.mxu0 %v1256
      %1837 = vmatprep.subr.bf16.mxu0 0
      %1838 = vmatpush1.bf16.msra.mxu0 %v1257
      %1839 = vmatprep.subr.bf16.mxu0 0
      %1840 = vmatpush1.bf16.msra.mxu0 %v1258
      %1841 = vmatprep.subr.bf16.mxu0 0
      %1842 = vmatpush1.bf16.msra.mxu0 %v1259
      %1843 = vmatprep.subr.bf16.mxu0 0
      %1844 = vmatpush1.bf16.msra.mxu0 %v1260
      %1845 = vmatprep.subr.bf16.mxu0 0
      %1846 = vmatpush1.bf16.msra.mxu0 %v1261
      %1847 = vmatprep.subr.bf16.mxu0 0
      %1848 = vmatpush1.bf16.msra.mxu0 %v1262
      %1849 = vmatprep.subr.bf16.mxu0 0
      %1850 = vmatpush1.bf16.msra.mxu0 %v1263
      %1851 = vmatprep.subr.bf16.mxu0 0
      %1852 = vmatpush1.bf16.msra.mxu0 %v1264
      %1853 = vmatprep.subr.bf16.mxu0 0
      %1854 = vmatpush1.bf16.msra.mxu0 %v1265
      %1855 = vmatprep.subr.bf16.mxu0 0
      %1856 = vmatpush1.bf16.msra.mxu0 %v1266
      %1857 = vmatprep.subr.bf16.mxu0 0
      %1858 = vmatpush1.bf16.msra.mxu0 %v1267
      %1859 = vmatprep.subr.bf16.mxu0 0
      %1860 = vmatpush1.bf16.msra.mxu0 %v1268
      %1861 = vmatprep.subr.bf16.mxu0 0
      %1862 = vmatpush1.bf16.msra.mxu0 %v1269
      %1863 = vmatprep.subr.bf16.mxu0 0
      %1864 = vmatpush1.bf16.msra.mxu0 %v1270
      %1865 = vmatprep.subr.bf16.mxu0 0
      %1866 = vmatpush1.bf16.msra.mxu0 %v1271
      %1867 = vmatprep.mubr.bf16.mxu0 %v479
      %1868 = vmatmul.mubr.bf16.gmra.mrb[0].mxu0 %v365
      %v1869 = vpop.f32.mrb[0].mxu0
      %v1870 = vadd.f32 %v1709, %v1869
      %v1871 = vpop.f32.mrb[0].mxu0
      %v1872 = vpop.f32.mrb[0].mxu0
      %v1873 = vadd.f32 %v1712, %v1872
      %v1874 = vpop.f32.mrb[0].mxu0
      %1875 = vmatprep.mubr.bf16.mxu0 %v491
      %1876 = vmatmul.mubr.bf16.gmra.mrb[0].mxu0 %v366
      %v1877 = vpop.f32.mrb[0].mxu0
      %v1878 = vadd.f32 %v1717, %v1877
      %v1879 = vpop.f32.mrb[0].mxu0
      %v1880 = vpop.f32.mrb[0].mxu0
      %v1881 = vadd.f32 %v1720, %v1880
      %v1882 = vpop.f32.mrb[0].mxu0
      %1883 = vmatprep.mubr.bf16.mxu0 %v503
      %1884 = vmatmul.mubr.bf16.gmra.mrb[0].mxu0 %v367
      %v1885 = vpop.f32.mrb[0].mxu0
      %v1886 = vadd.f32 %v1725, %v1885
      %v1887 = vpop.f32.mrb[0].mxu0
      %v1888 = vpop.f32.mrb[0].mxu0
      %v1889 = vadd.f32 %v1728, %v1888
      %v1890 = vpop.f32.mrb[0].mxu0
      %1891 = vmatprep.mubr.bf16.mxu0 %v515
      %1892 = vmatmul.mubr.bf16.gmra.mrb[0].mxu0 %v368
      %v1893 = vpop.f32.mrb[0].mxu0
      %v1894 = vadd.f32 %v1733, %v1893
      %v1895 = vpop.f32.mrb[0].mxu0
      %v1896 = vpop.f32.mrb[0].mxu0
      %v1897 = vadd.f32 %v1736, %v1896
      %v1898 = vpop.f32.mrb[0].mxu0
      %1899 = vmatprep.mubr.bf16.mxu0 %v527
      %1900 = vmatmul.mubr.bf16.gmra.mrb[0].mxu0 %v369
      %v1901 = vpop.f32.mrb[0].mxu0
      %v1902 = vadd.f32 %v1741, %v1901
      %v1903 = vpop.f32.mrb[0].mxu0
      %v1904 = vpop.f32.mrb[0].mxu0
      %v1905 = vadd.f32 %v1744, %v1904
      %v1906 = vpop.f32.mrb[0].mxu0
      %1907 = vmatprep.mubr.bf16.mxu0 %v539
      %1908 = vmatmul.mubr.bf16.gmra.mrb[0].mxu0 %v370
      %v1909 = vpop.f32.mrb[0].mxu0
      %v1910 = vadd.f32 %v1749, %v1909
      %v1911 = vpop.f32.mrb[0].mxu0
      %v1912 = vpop.f32.mrb[0].mxu0
      %v1913 = vadd.f32 %v1752, %v1912
      %v1914 = vpop.f32.mrb[0].mxu0
      %1915 = vmatprep.mubr.bf16.mxu0 %v551
      %1916 = vmatmul.mubr.bf16.gmra.mrb[0].mxu0 %v371
      %v1917 = vpop.f32.mrb[0].mxu0
      %v1918 = vadd.f32 %v1757, %v1917
      %v1919 = vpop.f32.mrb[0].mxu0
      %v1920 = vpop.f32.mrb[0].mxu0
      %v1921 = vadd.f32 %v1760, %v1920
      %v1922 = vpop.f32.mrb[0].mxu0
      %1923 = vmatprep.mubr.bf16.mxu0 %v563
      %1924 = vmatmul.mubr.bf16.gmra.mrb[0].mxu0 %v372
      %v1925 = vpop.f32.mrb[0].mxu0
      %v1926 = vadd.f32 %v1765, %v1925
      %v1927 = vpop.f32.mrb[0].mxu0
      %v1928 = vpop.f32.mrb[0].mxu0
      %v1929 = vadd.f32 %v1768, %v1928
      %v1930 = vpop.f32.mrb[0].mxu0
      %1931 = vmatprep.mubr.bf16.mxu0 %v575
      %1932 = vmatmul.mubr.bf16.gmra.mrb[0].mxu0 %v373
      %v1933 = vpop.f32.mrb[0].mxu0
      %v1934 = vadd.f32 %v1773, %v1933
      %v1935 = vpop.f32.mrb[0].mxu0
      %v1936 = vpop.f32.mrb[0].mxu0
      %v1937 = vadd.f32 %v1776, %v1936
      %v1938 = vpop.f32.mrb[0].mxu0
      %1939 = vmatprep.mubr.bf16.mxu0 %v587
      %1940 = vmatmul.mubr.bf16.gmra.mrb[0].mxu0 %v374
      %v1941 = vpop.f32.mrb[0].mxu0
      %v1942 = vadd.f32 %v1781, %v1941
      %v1943 = vpop.f32.mrb[0].mxu0
      %v1944 = vpop.f32.mrb[0].mxu0
      %v1945 = vadd.f32 %v1784, %v1944
      %v1946 = vpop.f32.mrb[0].mxu0
      %1947 = vmatprep.mubr.bf16.mxu0 %v599
      %1948 = vmatmul.mubr.bf16.gmra.mrb[0].mxu0 %v375
      %v1949 = vpop.f32.mrb[0].mxu0
      %v1950 = vadd.f32 %v1789, %v1949
      %v1951 = vpop.f32.mrb[0].mxu0
      %v1952 = vpop.f32.mrb[0].mxu0
      %v1953 = vadd.f32 %v1792, %v1952
      %v1954 = vpop.f32.mrb[0].mxu0
      %1955 = vmatprep.mubr.bf16.mxu0 %v611
      %1956 = vmatmul.mubr.bf16.gmra.mrb[0].mxu0 %v376
      %v1957 = vpop.f32.mrb[0].mxu0
      %v1958 = vadd.f32 %v1797, %v1957
      %v1959 = vpop.f32.mrb[0].mxu0
      %v1960 = vpop.f32.mrb[0].mxu0
      %v1961 = vadd.f32 %v1800, %v1960
      %v1962 = vpop.f32.mrb[0].mxu0
      %1963 = vmatprep.mubr.bf16.mxu0 %v623
      %1964 = vmatmul.mubr.bf16.gmra.mrb[0].mxu0 %v377
      %v1965 = vpop.f32.mrb[0].mxu0
      %v1966 = vadd.f32 %v1805, %v1965
      %v1967 = vpop.f32.mrb[0].mxu0
      %v1968 = vpop.f32.mrb[0].mxu0
      %v1969 = vadd.f32 %v1808, %v1968
      %v1970 = vpop.f32.mrb[0].mxu0
      %1971 = vmatprep.mubr.bf16.mxu0 %v635
      %1972 = vmatmul.mubr.bf16.gmra.mrb[0].mxu0 %v378
      %v1973 = vpop.f32.mrb[0].mxu0
      %v1974 = vadd.f32 %v1813, %v1973
      %v1975 = vpop.f32.mrb[0].mxu0
      %v1976 = vpop.f32.mrb[0].mxu0
      %v1977 = vadd.f32 %v1816, %v1976
      %v1978 = vpop.f32.mrb[0].mxu0
      %1979 = vmatprep.mubr.bf16.mxu0 %v737
      %1980 = vmatmul.mubr.bf16.gmra.mrb[0].mxu0 %v721
      %v1981 = vpop.f32.mrb[0].mxu0
      %v1982 = vadd.f32 %v1821, %v1981
      %v1983 = vpop.f32.mrb[0].mxu0
      %v1984 = vpop.f32.mrb[0].mxu0
      %v1985 = vadd.f32 %v1824, %v1984
      %v1986 = vpop.f32.mrb[0].mxu0
      %1987 = vmatprep.mubr.bf16.mxu0 %v763
      %1988 = vmatmul.mubr.bf16.gmra.mrb[0].mxu0 %v747
      %v1989 = vpop.f32.mrb[0].mxu0
      %v1990 = vadd.f32 %v1829, %v1989
      %v1991 = vpop.f32.mrb[0].mxu0
      %v1992 = vpop.f32.mrb[0].mxu0
      %v1993 = vadd.f32 %v1832, %v1992
      %v1994 = vpop.f32.mrb[0].mxu0
      %1995 = vdwg.mxu0
      %1996 = vmatprep.subr.bf16.mxu0 0
      %1997 = vmatpush1.bf16.msra.mxu0 %v1272
      %1998 = vmatprep.subr.bf16.mxu0 0
      %1999 = vmatpush1.bf16.msra.mxu0 %v1273
      %2000 = vmatprep.subr.bf16.mxu0 0
      %2001 = vmatpush1.bf16.msra.mxu0 %v1274
      %2002 = vmatprep.subr.bf16.mxu0 0
      %2003 = vmatpush1.bf16.msra.mxu0 %v1275
      %2004 = vmatprep.subr.bf16.mxu0 0
      %2005 = vmatpush1.bf16.msra.mxu0 %v1276
      %2006 = vmatprep.subr.bf16.mxu0 0
      %2007 = vmatpush1.bf16.msra.mxu0 %v1277
      %2008 = vmatprep.subr.bf16.mxu0 0
      %2009 = vmatpush1.bf16.msra.mxu0 %v1278
      %2010 = vmatprep.subr.bf16.mxu0 0
      %2011 = vmatpush1.bf16.msra.mxu0 %v1279
      %2012 = vmatprep.subr.bf16.mxu0 0
      %2013 = vmatpush1.bf16.msra.mxu0 0
      %2014 = vmatprep.subr.bf16.mxu0 0
      %2015 = vmatpush1.bf16.msra.mxu0 0
      %2016 = vmatprep.subr.bf16.mxu0 0
      %2017 = vmatpush1.bf16.msra.mxu0 0
      %2018 = vmatprep.subr.bf16.mxu0 0
      %2019 = vmatpush1.bf16.msra.mxu0 0
      %2020 = vmatprep.subr.bf16.mxu0 0
      %2021 = vmatpush1.bf16.msra.mxu0 0
      %2022 = vmatprep.subr.bf16.mxu0 0
      %2023 = vmatpush1.bf16.msra.mxu0 0
      %2024 = vmatprep.subr.bf16.mxu0 0
      %2025 = vmatpush1.bf16.msra.mxu0 0
      %2026 = vmatprep.subr.bf16.mxu0 0
      %2027 = vmatpush1.bf16.msra.mxu0 0
      %2028 = vmatprep.mubr.bf16.mxu0 0
      %2029 = vmatmul.mubr.bf16.gmra.mrb[0].mxu0 %v661
      %v2030 = vpop.f32.mrb[0].mxu0
      %v2031 = vadd.f32 %v1870, %v2030
      %v2032 = vpop.f32.mrb[0].mxu0
      %v2033 = vpop.f32.mrb[0].mxu0
      %v2034 = vadd.f32 %v1873, %v2033
      %v2035 = vpop.f32.mrb[0].mxu0
      %2036 = vmatprep.mubr.bf16.mxu0 0
      %2037 = vmatmul.mubr.bf16.gmra.mrb[0].mxu0 %v664
      %v2038 = vpop.f32.mrb[0].mxu0
      %v2039 = vadd.f32 %v1878, %v2038
      %v2040 = vpop.f32.mrb[0].mxu0
      %v2041 = vpop.f32.mrb[0].mxu0
      %v2042 = vadd.f32 %v1881, %v2041
      %v2043 = vpop.f32.mrb[0].mxu0
      %2044 = vmatprep.mubr.bf16.mxu0 0
      %2045 = vmatmul.mubr.bf16.gmra.mrb[0].mxu0 %v667
      %v2046 = vpop.f32.mrb[0].mxu0
      %v2047 = vadd.f32 %v1886, %v2046
      %v2048 = vpop.f32.mrb[0].mxu0
      %v2049 = vpop.f32.mrb[0].mxu0
      %v2050 = vadd.f32 %v1889, %v2049
      %v2051 = vpop.f32.mrb[0].mxu0
      %2052 = vmatprep.mubr.bf16.mxu0 0
      %2053 = vmatmul.mubr.bf16.gmra.mrb[0].mxu0 %v670
      %v2054 = vpop.f32.mrb[0].mxu0
      %v2055 = vadd.f32 %v1894, %v2054
      %v2056 = vpop.f32.mrb[0].mxu0
      %v2057 = vpop.f32.mrb[0].mxu0
      %v2058 = vadd.f32 %v1897, %v2057
      %v2059 = vpop.f32.mrb[0].mxu0
      %2060 = vmatprep.mubr.bf16.mxu0 0
      %2061 = vmatmul.mubr.bf16.gmra.mrb[0].mxu0 %v673
      %v2062 = vpop.f32.mrb[0].mxu0
      %v2063 = vadd.f32 %v1902, %v2062
      %v2064 = vpop.f32.mrb[0].mxu0
      %v2065 = vpop.f32.mrb[0].mxu0
      %v2066 = vadd.f32 %v1905, %v2065
      %v2067 = vpop.f32.mrb[0].mxu0
      %2068 = vmatprep.mubr.bf16.mxu0 0
      %2069 = vmatmul.mubr.bf16.gmra.mrb[0].mxu0 %v676
      %v2070 = vpop.f32.mrb[0].mxu0
      %v2071 = vadd.f32 %v1910, %v2070
      %v2072 = vpop.f32.mrb[0].mxu0
      %v2073 = vpop.f32.mrb[0].mxu0
      %v2074 = vadd.f32 %v1913, %v2073
      %v2075 = vpop.f32.mrb[0].mxu0
      %2076 = vmatprep.mubr.bf16.mxu0 0
      %2077 = vmatmul.mubr.bf16.gmra.mrb[0].mxu0 %v679
      %v2078 = vpop.f32.mrb[0].mxu0
      %v2079 = vadd.f32 %v1918, %v2078
      %v2080 = vpop.f32.mrb[0].mxu0
      %v2081 = vpop.f32.mrb[0].mxu0
      %v2082 = vadd.f32 %v1921, %v2081
      %v2083 = vpop.f32.mrb[0].mxu0
      %2084 = vmatprep.mubr.bf16.mxu0 0
      %2085 = vmatmul.mubr.bf16.gmra.mrb[0].mxu0 %v682
      %v2086 = vpop.f32.mrb[0].mxu0
      %v2087 = vadd.f32 %v1926, %v2086
      %v2088 = vpop.f32.mrb[0].mxu0
      %v2089 = vpop.f32.mrb[0].mxu0
      %v2090 = vadd.f32 %v1929, %v2089
      %v2091 = vpop.f32.mrb[0].mxu0
      %2092 = vmatprep.mubr.bf16.mxu0 0
      %2093 = vmatmul.mubr.bf16.gmra.mrb[0].mxu0 %v685
      %v2094 = vpop.f32.mrb[0].mxu0
      %v2095 = vadd.f32 %v1934, %v2094
      %v2096 = vpop.f32.mrb[0].mxu0
      %v2097 = vpop.f32.mrb[0].mxu0
      %v2098 = vadd.f32 %v1937, %v2097
      %v2099 = vpop.f32.mrb[0].mxu0
      %2100 = vmatprep.mubr.bf16.mxu0 0
      %2101 = vmatmul.mubr.bf16.gmra.mrb[0].mxu0 %v688
      %v2102 = vpop.f32.mrb[0].mxu0
      %v2103 = vadd.f32 %v1942, %v2102
      %v2104 = vpop.f32.mrb[0].mxu0
      %v2105 = vpop.f32.mrb[0].mxu0
      %v2106 = vadd.f32 %v1945, %v2105
      %v2107 = vpop.f32.mrb[0].mxu0
      %2108 = vmatprep.mubr.bf16.mxu0 0
      %2109 = vmatmul.mubr.bf16.gmra.mrb[0].mxu0 %v691
      %v2110 = vpop.f32.mrb[0].mxu0
      %v2111 = vadd.f32 %v1950, %v2110
      %v2112 = vpop.f32.mrb[0].mxu0
      %v2113 = vpop.f32.mrb[0].mxu0
      %v2114 = vadd.f32 %v1953, %v2113
      %v2115 = vpop.f32.mrb[0].mxu0
      %2116 = vmatprep.mubr.bf16.mxu0 0
      %2117 = vmatmul.mubr.bf16.gmra.mrb[0].mxu0 %v694
      %v2118 = vpop.f32.mrb[0].mxu0
      %v2119 = vadd.f32 %v1958, %v2118
      %v2120 = vpop.f32.mrb[0].mxu0
      %v2121 = vpop.f32.mrb[0].mxu0
      %v2122 = vadd.f32 %v1961, %v2121
      %v2123 = vpop.f32.mrb[0].mxu0
      %2124 = vmatprep.mubr.bf16.mxu0 0
      %2125 = vmatmul.mubr.bf16.gmra.mrb[0].mxu0 %v697
      %v2126 = vpop.f32.mrb[0].mxu0
      %v2127 = vadd.f32 %v1966, %v2126
      %v2128 = vpop.f32.mrb[0].mxu0
      %v2129 = vpop.f32.mrb[0].mxu0
      %v2130 = vadd.f32 %v1969, %v2129
      %v2131 = vpop.f32.mrb[0].mxu0
      %2132 = vmatprep.mubr.bf16.mxu0 0
      %2133 = vmatmul.mubr.bf16.gmra.mrb[0].mxu0 %v700
      %v2134 = vpop.f32.mrb[0].mxu0
      %v2135 = vadd.f32 %v1974, %v2134
      %v2136 = vpop.f32.mrb[0].mxu0
      %v2137 = vpop.f32.mrb[0].mxu0
      %v2138 = vadd.f32 %v1977, %v2137
      %v2139 = vpop.f32.mrb[0].mxu0
      %2140 = vmatprep.mubr.bf16.mxu0 0
      %2141 = vmatmul.mubr.bf16.gmra.mrb[0].mxu0 %v741
      %v2142 = vpop.f32.mrb[0].mxu0
      %v2143 = vadd.f32 %v1982, %v2142
      %v2144 = vpop.f32.mrb[0].mxu0
      %v2145 = vpop.f32.mrb[0].mxu0
      %v2146 = vadd.f32 %v1985, %v2145
      %v2147 = vpop.f32.mrb[0].mxu0
      %2148 = vmatprep.mubr.bf16.mxu0 0
      %2149 = vmatmul.mubr.bf16.gmra.mrb[0].mxu0 %v767
      %v2150 = vpop.f32.mrb[0].mxu0
      %v2151 = vadd.f32 %v1990, %v2150
      %v2152 = vpop.f32.mrb[0].mxu0
      %v2153 = vpop.f32.mrb[0].mxu0
      %v2154 = vadd.f32 %v1993, %v2153
      %v2155 = vpop.f32.mrb[0].mxu0
      %2156 = vdwg.mxu0
      %2157 = vst [vmem:[%s230] sm:$0xff] %v2031
      %2158 = vst [vmem:[%s230 + $0x8] sm:$0xff] %v2034
      %2159 = vst [vmem:[%s230 + $0x10] sm:$0xff] %v2039
      %2160 = vst [vmem:[%s230 + $0x18] sm:$0xff] %v2042
      %2161 = vst [vmem:[%s230 + $0x20] sm:$0xff] %v2047
      %2162 = vst [vmem:[%s230 + $0x28] sm:$0xff] %v2050
      %2163 = vst [vmem:[%s230 + $0x30] sm:$0xff] %v2055
      %2164 = vst [vmem:[%s230 + $0x38] sm:$0xff] %v2058
      %2165 = vst [vmem:[%s230 + $0x40] sm:$0xff] %v2063
      %2166 = vst [vmem:[%s230 + $0x48] sm:$0xff] %v2066
      %2167 = vst [vmem:[%s230 + $0x50] sm:$0xff] %v2071
      %2168 = vst [vmem:[%s230 + $0x58] sm:$0xff] %v2074
      %2169 = vst [vmem:[%s230 + $0x60] sm:$0xff] %v2079
      %2170 = vst [vmem:[%s230 + $0x68] sm:$0xff] %v2082
      %2171 = vst [vmem:[%s230 + $0x70] sm:$0xff] %v2087
      %2172 = vst [vmem:[%s230 + $0x78] sm:$0xff] %v2090
      %2173 = vst [vmem:[%s230 + $0x80] sm:$0xff] %v2095
      %2174 = vst [vmem:[%s230 + $0x88] sm:$0xff] %v2098
      %2175 = vst [vmem:[%s230 + $0x90] sm:$0xff] %v2103
      %2176 = vst [vmem:[%s230 + $0x98] sm:$0xff] %v2106
      %2177 = vst [vmem:[%s230 + $0xa0] sm:$0xff] %v2111
      %2178 = vst [vmem:[%s230 + $0xa8] sm:$0xff] %v2114
      %2179 = vst [vmem:[%s230 + $0xb0] sm:$0xff] %v2119
      %2180 = vst [vmem:[%s230 + $0xb8] sm:$0xff] %v2122
      %2181 = vst [vmem:[%s230 + $0xc0] sm:$0xff] %v2127
      %2182 = vst [vmem:[%s230 + $0xc8] sm:$0xff] %v2130
      %2183 = vst [vmem:[%s230 + $0xd0] sm:$0xff] %v2135
      %2184 = vst [vmem:[%s230 + $0xd8] sm:$0xff] %v2138
      %2185 = vst [vmem:[%s230 + $0xe0] sm:$0xff] %v2143
      %2186 = vst [vmem:[%s230 + $0xe8] sm:$0xff] %v2146
      %2187 = vst [vmem:[%s230 + $0xf0] sm:$0xff] %v2151
      %2188 = vst [vmem:[%s230 + $0xf8] sm:$0xff] %v2154
      %v2189 = vadd.f32 %v2031, %v2034
      %v2190 = vadd.f32 %v2189, %v2039
      %v2191 = vadd.f32 %v2190, %v2042
      %v2192 = vadd.f32 %v2191, %v2047
      %v2193 = vadd.f32 %v2192, %v2050
      %v2194 = vadd.f32 %v2193, %v2055
      %v2195 = vadd.f32 %v2194, %v2058
      %v2196 = vadd.f32 %v2195, %v2063
      %v2197 = vadd.f32 %v2196, %v2066
      %v2198 = vadd.f32 %v2197, %v2071
      %v2199 = vadd.f32 %v2198, %v2074
      %v2200 = vadd.f32 %v2199, %v2079
      %v2201 = vadd.f32 %v2200, %v2082
      %v2202 = vadd.f32 %v2201, %v2087
      %v2203 = vadd.f32 %v2202, %v2090
      %v2204 = vadd.f32 %v2203, %v2095
      %v2205 = vadd.f32 %v2204, %v2098
      %v2206 = vadd.f32 %v2205, %v2103
      %v2207 = vadd.f32 %v2206, %v2106
      %v2208 = vadd.f32 %v2207, %v2111
      %v2209 = vadd.f32 %v2208, %v2114
      %v2210 = vadd.f32 %v2209, %v2119
      %v2211 = vadd.f32 %v2210, %v2122
      %v2212 = vadd.f32 %v2211, %v2127
      %v2213 = vadd.f32 %v2212, %v2130
      %v2214 = vadd.f32 %v2213, %v2135
      %v2215 = vadd.f32 %v2214, %v2138
      %v2216 = vadd.f32 %v2215, %v2143
      %v2217 = vadd.f32 %v2216, %v2146
      %v2218 = vadd.f32 %v2217, %v2151
      %v2219 = vadd.f32 %v2218, %v2154
      %v2220 = vrot.slane %v2219, 4
      %v2221 = vadd.f32 %v2219, %v2220
      %v2222 = vrot.slane %v2221, 2
      %v2223 = vadd.f32 %v2221, %v2222
      %v2224 = vrot.slane %v2223, 1
      %v2225 = vadd.f32 %v2223, %v2224
      %v2226 = vmul.f32 %v2031, %v2031
      %v2227 = vmul.f32 %v2034, %v2034
      %v2228 = vmul.f32 %v2039, %v2039
      %v2229 = vmul.f32 %v2042, %v2042
      %v2230 = vmul.f32 %v2047, %v2047
      %v2231 = vmul.f32 %v2050, %v2050
      %v2232 = vmul.f32 %v2055, %v2055
      %v2233 = vmul.f32 %v2058, %v2058
      %v2234 = vmul.f32 %v2063, %v2063
      %v2235 = vmul.f32 %v2066, %v2066
      %v2236 = vmul.f32 %v2071, %v2071
      %v2237 = vmul.f32 %v2074, %v2074
      %v2238 = vmul.f32 %v2079, %v2079
      %v2239 = vmul.f32 %v2082, %v2082
      %v2240 = vmul.f32 %v2087, %v2087
      %v2241 = vmul.f32 %v2090, %v2090
      %v2242 = vmul.f32 %v2095, %v2095
      %v2243 = vmul.f32 %v2098, %v2098
      %v2244 = vmul.f32 %v2103, %v2103
      %v2245 = vmul.f32 %v2106, %v2106
      %v2246 = vmul.f32 %v2111, %v2111
      %v2247 = vmul.f32 %v2114, %v2114
      %v2248 = vmul.f32 %v2119, %v2119
      %v2249 = vmul.f32 %v2122, %v2122
      %v2250 = vmul.f32 %v2127, %v2127
      %v2251 = vmul.f32 %v2130, %v2130
      %v2252 = vmul.f32 %v2135, %v2135
      %v2253 = vmul.f32 %v2138, %v2138
      %v2254 = vmul.f32 %v2143, %v2143
      %v2255 = vmul.f32 %v2146, %v2146
      %v2256 = vmul.f32 %v2151, %v2151
      %v2257 = vmul.f32 %v2154, %v2154
      %v2258 = vadd.f32 %v2226, %v2227
      %v2259 = vadd.f32 %v2258, %v2228
      %v2260 = vadd.f32 %v2259, %v2229
      %v2261 = vadd.f32 %v2260, %v2230
      %v2262 = vadd.f32 %v2261, %v2231
      %v2263 = vadd.f32 %v2262, %v2232
      %v2264 = vadd.f32 %v2263, %v2233
      %v2265 = vadd.f32 %v2264, %v2234
      %v2266 = vadd.f32 %v2265, %v2235
      %v2267 = vadd.f32 %v2266, %v2236
      %v2268 = vadd.f32 %v2267, %v2237
      %v2269 = vadd.f32 %v2268, %v2238
      %v2270 = vadd.f32 %v2269, %v2239
      %v2271 = vadd.f32 %v2270, %v2240
      %v2272 = vadd.f32 %v2271, %v2241
      %v2273 = vadd.f32 %v2272, %v2242
      %v2274 = vadd.f32 %v2273, %v2243
      %v2275 = vadd.f32 %v2274, %v2244
      %v2276 = vadd.f32 %v2275, %v2245
      %v2277 = vadd.f32 %v2276, %v2246
      %v2278 = vadd.f32 %v2277, %v2247
      %v2279 = vadd.f32 %v2278, %v2248
      %v2280 = vadd.f32 %v2279, %v2249
      %v2281 = vadd.f32 %v2280, %v2250
      %v2282 = vadd.f32 %v2281, %v2251
      %v2283 = vadd.f32 %v2282, %v2252
      %v2284 = vadd.f32 %v2283, %v2253
      %v2285 = vadd.f32 %v2284, %v2254
      %v2286 = vadd.f32 %v2285, %v2255
      %v2287 = vadd.f32 %v2286, %v2256
      %v2288 = vadd.f32 %v2287, %v2257
      %v2289 = vrot.slane %v2288, 4
      %v2290 = vadd.f32 %v2288, %v2289
      %v2291 = vrot.slane %v2290, 2
      %v2292 = vadd.f32 %v2290, %v2291
      %v2293 = vrot.slane %v2292, 1
      %v2294 = vadd.f32 %v2292, %v2293
      %vm2295 = vcmask 1040384
      %v2296 = vsel %vm2295, %v2225, %v2294
      %2297 = vst [vmem:[%s239] sm:$0x3] %v2296
      %s2298 = sadd.s32 %s20, %s21
      %s2299 = smul.u32 32, %s2298
      %p2300 = scmp.lt.s32.totalorder %s2299, 63
      %s2301 = scalar_select %p2300, %s2299, 63
      %s2302 = smul.addr %s2301, 8
      %s2303 = scalar_lea.vmem %s3, %s2302
      %p2304 = scmp.lt.s32.totalorder %s20, 1
      %s2305 = scalar_select %p2304, %s20, 1
      %p2306 = scmp.lt.s32.totalorder %s21, 0
      %s2307 = scalar_select %p2306, %s21, 0
      %s2308 = sadd.s32 %s2307, %s2305
      %s2309 = smul.addr %s2308, 2
      %s2310 = scalar_lea.vmem %s4, %s2309
      // Predicated region
      $region33: #{_lambda_.4} parent=31 // pred_check
        %p2311 = pneg %p116
      $region34: #{_lambda_.4} parent=31 // pred_check_branch
        %2313 = sbr.rel (%p2311) target = $region36
      $region35: #{_lambda_.4} parent=31 // pred_region
        %s2314 = sadd.s32 %s20, %s21
        %s2315 = smul.u32 32, %s2314
      $region36: #{_lambda_.4} parent=31 // pred_fallthru
        _
      // Predicated region
      $region37: #{_lambda_.4} parent=31 // pred_check
        %p2316 = pneg %p144
      $region38: #{_lambda_.4} parent=31 // pred_check_branch
        %2318 = sbr.rel (%p2316) target = $region40
      $region39: #{_lambda_.4} parent=31 // pred_region
        _
      $region40: #{_lambda_.4} parent=31 // pred_fallthru
        _
    $region32: #{_lambda_.4} parent=5 // pred_fallthru
      _
    %p2319 = scmp.le.s32.totalorder 2, %s11
    // Predicated region
    $region41: #{_lambda_.4} parent=5 // pred_check
      %p2320 = pneg %p2319
    $region42: #{_lambda_.4} parent=5 // pred_check_branch
      %2322 = sbr.rel (%p2320) target = $region44
    $region43: #{_lambda_.4} parent=5 // pred_region
      %s2323 = ssub.s32 %s11, 2
      // Predicated region
      $region45: #{_lambda_.4} parent=43 // pred_check
        %p2324 = pneg %p122
      $region46: #{_lambda_.4} parent=43 // pred_check_branch
        %2326 = sbr.rel (%p2324) target = $region48
      $region47: #{_lambda_.4} parent=43 // pred_region
        %s2327 = sadd.s32 %s22, %s23
        %s2328 = smul.u32 32, %s2327
        %p2329 = scmp.lt.s32.totalorder %s2328, 63
        %s2330 = scalar_select %p2329, %s2328, 63
        %s2331 = smul.addr %s2330, 8
        %s2332 = scalar_lea.vmem %s3, %s2331
      $region48: #{_lambda_.4} parent=43 // pred_fallthru
        _
      // Predicated region
      $region49: #{_lambda_.4} parent=43 // pred_check
        %p2333 = pneg %p150
      $region50: #{_lambda_.4} parent=43 // pred_check_branch
        %2335 = sbr.rel (%p2333) target = $region52
      $region51: #{_lambda_.4} parent=43 // pred_region
        %p2336 = scmp.lt.s32.totalorder %s22, 1
        %s2337 = scalar_select %p2336, %s22, 1
        %p2338 = scmp.lt.s32.totalorder %s23, 0
        %s2339 = scalar_select %p2338, %s23, 0
        %s2340 = sadd.s32 %s2339, %s2337
        %s2341 = smul.addr %s2340, 2
        %s2342 = scalar_lea.vmem %s4, %s2341
      $region52: #{_lambda_.4} parent=43 // pred_fallthru
        _
    $region44: #{_lambda_.4} parent=5 // pred_fallthru
      _
  $region6: #{_lambda_.4} parent=0 // loop_footer
    %s15 = sadd.s32 1, %s11
  $region7: #{_lambda_.4} parent=0 // loop_footer_branch
    %10 = sbr.rel target = $region3
  $region8: #{_lambda_.4} parent=0 // loop_exit
    _

</llo_original>
